<compile_context>
chip_gen: v6e
topology: v6e:2x2x1
jax: 0.10.0
libtpu: 0.0.40
codegen_flags: <defaults>
</compile_context>

<pallas_src>
import jax
import jax.numpy as jnp
from jax.experimental import pallas as pl
from jax.experimental.pallas import tpu as pltpu

# ----------------------------- config (small) -----------------------------
NUM_EMBEDDINGS = 50
EMBEDDING_DIM = 24
PROBS_DIM = 8
HIDDEN = EMBEDDING_DIM + PROBS_DIM        # config.hidden_size = 32
NUM_HEADS = 4
HEAD_DIM = HIDDEN // NUM_HEADS            # 8
FF_SIZE = 64                              # config.feed_forward_size
NUM_LAYERS = 2                            # config.num_hidden_layers
SHAPE_OUTPUT = 16                         # config.shape_output
LN_EPS = 1e-12                            # config.layer_norm_eps
B = 2
S = 8

LANES = 128

# ---- f32 "const" slab layout (CONST_ROWS, 128) ----
#   rows 0..63                       : embedding table (50 rows used, cols 0..23)
#   rows 64+8l .. 64+8l+7 (layer l)  : ln1_g, ln1_b, ln2_g, ln2_b,
#                                      qkv bias(96), out-proj bias(32),
#                                      ff1 bias(64), ff2 bias(32)
#   row  64+8*NUM_LAYERS             : head bias (cols 0..15)
EMB_ROWS_PAD = 64
VEC_BASE = EMB_ROWS_PAD
HEAD_B_ROW = VEC_BASE + 8 * NUM_LAYERS
CONST_ROWS = HEAD_B_ROW + 8               # pad to a multiple of 8 rows

# ---- bf16 weight slab layout (W_ROWS, 128) ----
#   per layer l (base = 128*l):
#     rows base+0  .. base+31  : cols 0..95  = Wqkv (32,96), cols 96..127 = Wo (32,32)
#     rows base+32 .. base+63  : cols 0..63  = W1 (32,64)
#     rows base+64 .. base+127 : cols 0..31  = W2 (64,32)
#   rows 128*NUM_LAYERS .. +31 : cols 0..15  = head_w (32,16)
WL_ROWS = 128
HEADW_BASE = NUM_LAYERS * WL_ROWS
W_ROWS = HEADW_BASE + HIDDEN


# ----------------------------- kernel helpers -----------------------------
def _layernorm(v, g, b, eps=LN_EPS):
    mu = jnp.mean(v, axis=-1, keepdims=True)
    var = jnp.mean((v - mu) ** 2, axis=-1, keepdims=True)
    return (v - mu) * jax.lax.rsqrt(var + eps) * g + b


def _erf(x):
    # Abramowitz & Stegun 7.1.26, |error| <= 1.5e-7.  Uses only exp / mul /
    # add / div / select, all of which have Mosaic lowerings.
    p = 0.3275911
    a1, a2, a3, a4, a5 = 0.254829592, -0.284496736, 1.421413741, -1.453152027, 1.061405429
    ax = jnp.where(x >= 0.0, x, -x)
    t = 1.0 / (1.0 + p * ax)
    poly = ((((a5 * t + a4) * t + a3) * t + a2) * t + a1) * t
    y = 1.0 - poly * jnp.exp(-ax * ax)
    return jnp.where(x >= 0.0, y, -y)


def _gelu(x):
    # PyTorch nn.GELU default (exact, erf-based)
    return 0.5 * x * (1.0 + _erf(x * 0.7071067811865476))


# ----------------------------- fused kernel -----------------------------
def reformer_kernel(ids_ref, probs_ref, const_ref, w_ref, out_ref):
    f32, bf16 = jnp.float32, jnp.bfloat16
    scale = 1.0 / float(HEAD_DIM) ** 0.5

    # ---- embedding gather (one-hot matmul, exact f32) + concat with probs ----
    ids = ids_ref[...]                                            # (B*S, 1) int32
    iota = jax.lax.broadcasted_iota(jnp.int32, (B * S, EMB_ROWS_PAD), 1)
    onehot = (iota == ids).astype(f32)                            # (B*S, 64)
    emb_tbl = const_ref[0:EMB_ROWS_PAD, 0:EMBEDDING_DIM]          # (64, 24) f32
    emb = jnp.dot(onehot, emb_tbl, preferred_element_type=f32)    # (B*S, 24)
    x = jnp.concatenate([emb, probs_ref[...].astype(f32)], axis=-1)   # (B*S, 32)
    # firstDropout: identity (eval mode)

    for layer in range(NUM_LAYERS):
        vb = VEC_BASE + 8 * layer
        vv = const_ref[vb:vb + 8, :]                              # (8, 128) f32
        ln1_g, ln1_b = vv[0:1, :HIDDEN], vv[1:2, :HIDDEN]
        ln2_g, ln2_b = vv[2:3, :HIDDEN], vv[3:4, :HIDDEN]
        b_qkv = vv[4:5, :3 * HIDDEN]
        b_o = vv[5:6, :HIDDEN]
        b_ff1 = vv[6:7, :FF_SIZE]
        b_ff2 = vv[7:8, :HIDDEN]

        wb = WL_ROWS * layer
        wqkv = w_ref[wb:wb + HIDDEN, 0:3 * HIDDEN]                # (32, 96) bf16
        wo = w_ref[wb:wb + HIDDEN, 3 * HIDDEN:4 * HIDDEN]         # (32, 32) bf16
        w1 = w_ref[wb + 32:wb + 64, 0:FF_SIZE]                    # (32, 64) bf16
        w2 = w_ref[wb + 64:wb + 128, 0:HIDDEN]                    # (64, 32) bf16

        # ---- LayerNorm1 + multi-head self-attention (dropout1 = identity) ----
        res = x
        h = _layernorm(x, ln1_g, ln1_b)
        qkv = jnp.dot(h.astype(bf16), wqkv, preferred_element_type=f32) + b_qkv

        attn = jnp.zeros((B * S, HIDDEN), f32)
        for hh in range(NUM_HEADS):
            c0 = hh * HEAD_DIM
            qh = qkv[:, c0:c0 + HEAD_DIM].reshape(B, S, HEAD_DIM)
            kh = qkv[:, HIDDEN + c0:HIDDEN + c0 + HEAD_DIM].reshape(B, S, HEAD_DIM)
            vh = qkv[:, 2 * HIDDEN + c0:2 * HIDDEN + c0 + HEAD_DIM].reshape(B, S, HEAD_DIM)
            s = jnp.einsum('bqd,bkd->bqk', qh, kh, preferred_element_type=f32) * scale
            m = jnp.max(s, axis=-1, keepdims=True)
            e = jnp.exp(s - m)
            p = e * pl.reciprocal(jnp.sum(e, axis=-1, keepdims=True), approx=True)
            ctx = jnp.einsum('bqk,bkd->bqd', p, vh, preferred_element_type=f32)
            # project this head through its sublane-aligned rows of Wo and
            # accumulate -> no lane-dim concatenate of head outputs
            attn = attn + jnp.dot(ctx.reshape(B * S, HEAD_DIM).astype(bf16),
                                  wo[c0:c0 + HEAD_DIM, :],
                                  preferred_element_type=f32)
        x = attn + b_o + res

        # ---- LayerNorm2 + feed-forward (Linear -> GELU -> Linear, dropout2 = identity) ----
        res = x
        h2 = _layernorm(x, ln2_g, ln2_b)
        ff = jnp.dot(h2.astype(bf16), w1, preferred_element_type=f32) + b_ff1
        ff = _gelu(ff)
        ff = jnp.dot(ff.astype(bf16), w2, preferred_element_type=f32) + b_ff2
        x = ff + res

    # ---- classification head (exact f32 softmax so row sums == 1) ----
    head_w = w_ref[HEADW_BASE:HEADW_BASE + HIDDEN, 0:SHAPE_OUTPUT]    # (32, 16) bf16
    head_b = const_ref[HEAD_B_ROW:HEAD_B_ROW + 1, :SHAPE_OUTPUT]      # (1, 16) f32
    logits = jnp.dot(x.astype(bf16), head_w, preferred_element_type=f32) + head_b
    out = jax.nn.softmax(logits, axis=-1)
    # TODO(synk): output last dim is 16 lanes -> masked stores; irrelevant at this size.
    out_ref[...] = out.reshape(B, S, SHAPE_OUTPUT).astype(out_ref.dtype)


# ----------------------------- pallas_call wrapper -----------------------------
def reformer_forward(params, input_ids, probs):
    ids2d = input_ids.reshape(B * S, 1).astype(jnp.int32)
    probs2d = probs.reshape(B * S, PROBS_DIM).astype(jnp.float32)

    vmem = lambda: pl.BlockSpec(memory_space=pltpu.MemorySpace.VMEM)
    return pl.pallas_call(
        reformer_kernel,
        out_shape=jax.ShapeDtypeStruct((B, S, SHAPE_OUTPUT), jnp.float32),
        in_specs=[vmem(), vmem(), vmem(), vmem()],
        out_specs=vmem(),
        compiler_params=pltpu.CompilerParams(vmem_limit_bytes=4 * 1024 * 1024),
    )(ids2d, probs2d, params["const"], params["weights"])


# ----------------------------- deterministic parameter init -----------------------------
def _dense(key, fan_in, fan_out):
    kw, kb = jax.random.split(key)
    bound = 1.0 / (fan_in ** 0.5)
    w = jax.random.uniform(kw, (fan_in, fan_out), minval=-bound, maxval=bound,
                           dtype=jnp.float32)
    b = jax.random.uniform(kb, (fan_out,), minval=-bound, maxval=bound,
                           dtype=jnp.float32)
    return w, b


def init_params(key):
    k_emb, k_head, *k_blocks = jax.random.split(key, 2 + NUM_LAYERS)
    embedding = jax.random.normal(k_emb, (NUM_EMBEDDINGS, EMBEDDING_DIM),
                                  dtype=jnp.float32)
    head_w, head_b = _dense(k_head, HIDDEN, SHAPE_OUTPUT)

    const = jnp.zeros((CONST_ROWS, LANES), jnp.float32)
    const = const.at[:NUM_EMBEDDINGS, :EMBEDDING_DIM].set(embedding)
    const = const.at[HEAD_B_ROW, :SHAPE_OUTPUT].set(head_b)

    wslab = jnp.zeros((W_ROWS, LANES), jnp.float32)
    wslab = wslab.at[HEADW_BASE:HEADW_BASE + HIDDEN, :SHAPE_OUTPUT].set(head_w)

    for layer, k in enumerate(k_blocks):
        ks = jax.random.split(k, 6)
        wq, bq = _dense(ks[0], HIDDEN, HIDDEN)
        wk, bk = _dense(ks[1], HIDDEN, HIDDEN)
        wv, bv = _dense(ks[2], HIDDEN, HIDDEN)
        wo, bo = _dense(ks[3], HIDDEN, HIDDEN)
        w1, b1 = _dense(ks[4], HIDDEN, FF_SIZE)
        w2, b2 = _dense(ks[5], FF_SIZE, HIDDEN)

        vb = VEC_BASE + 8 * layer
        const = const.at[vb + 0, :HIDDEN].set(1.0)                 # ln1 gamma
        # vb+1: ln1 beta = 0
        const = const.at[vb + 2, :HIDDEN].set(1.0)                 # ln2 gamma
        # vb+3: ln2 beta = 0
        const = const.at[vb + 4, :3 * HIDDEN].set(jnp.concatenate([bq, bk, bv]))
        const = const.at[vb + 5, :HIDDEN].set(bo)
        const = const.at[vb + 6, :FF_SIZE].set(b1)
        const = const.at[vb + 7, :HIDDEN].set(b2)

        wb = WL_ROWS * layer
        wslab = wslab.at[wb:wb + HIDDEN, :3 * HIDDEN].set(
            jnp.concatenate([wq, wk, wv], axis=1))
        wslab = wslab.at[wb:wb + HIDDEN, 3 * HIDDEN:4 * HIDDEN].set(wo)
        wslab = wslab.at[wb + 32:wb + 64, :FF_SIZE].set(w1)
        wslab = wslab.at[wb + 64:wb + 128, :HIDDEN].set(w2)

    return {"const": const, "weights": wslab.astype(jnp.bfloat16)}


# ----------------------------- main -----------------------------
if __name__ == "__main__":
    key = jax.random.PRNGKey(0)
    k_ids, k_probs, k_params = jax.random.split(key, 3)

    input_ids = jax.random.randint(k_ids, (B, S), 0, NUM_EMBEDDINGS, dtype=jnp.int32)
    probs = jax.random.uniform(k_probs, (B, S, PROBS_DIM), dtype=jnp.float32)

    params = init_params(k_params)
    out = jax.block_until_ready(reformer_forward(params, input_ids, probs))

    assert out.shape == (B, S, SHAPE_OUTPUT)
    assert bool(jnp.all(jnp.isfinite(out)))
    # rows of the head softmax must sum to 1
    assert jnp.allclose(jnp.sum(out, axis=-1), 1.0, atol=1e-4)
    print("KERNEL_OK")
</pallas_src>

<mosaic_0001>
module attributes {stable_mosaic.version = 11 : i64} {
  func.func @reformer_kernel(%arg0: memref<16x1xi32, #tpu.memory_space<vmem>>, %arg1: memref<16x8xf32, #tpu.memory_space<vmem>>, %arg2: memref<88x128xf32, #tpu.memory_space<vmem>>, %arg3: memref<288x128xbf16, #tpu.memory_space<vmem>>, %arg4: memref<2x8x16xf32, #tpu.memory_space<vmem>>) attributes {dimension_semantics = [], scalar_prefetch = 0 : i64, scratch_operands = 0 : i64, tpu.core_type = #tpu.core_type<tc>} {
    %c0 = arith.constant 0 : index
    %c0_0 = arith.constant 0 : index
    %0 = vector.load %arg0[%c0, %c0_0] : memref<16x1xi32, #tpu.memory_space<vmem>>, vector<16x1xi32>
    %1 = tpu.iota {dimensions = array<i32: 1>} : vector<16x64xi32>
    %2 = vector.broadcast %0 : vector<16x1xi32> to vector<16x64xi32>
    %3 = arith.cmpi eq, %1, %2 : vector<16x64xi32>
    %4 = arith.extui %3 : vector<16x64xi1> to vector<16x64xi32>
    %5 = arith.sitofp %4 : vector<16x64xi32> to vector<16x64xf32>
    %c0_1 = arith.constant 0 : index
    %c0_2 = arith.constant 0 : index
    %6 = vector.load %arg2[%c0_1, %c0_2] : memref<88x128xf32, #tpu.memory_space<vmem>>, vector<64x24xf32>
    %cst = arith.constant dense<0.000000e+00> : vector<16x24xf32>
    %7 = tpu.matmul %5, %6, %cst {dimension_numbers = #tpu.dot_dimension_numbers<[1], [0], [0], [1], [0, 0, 1, 1], [], []>} : vector<16x64xf32>, vector<64x24xf32>, vector<16x24xf32> -> vector<16x24xf32>
    %c0_3 = arith.constant 0 : index
    %c0_4 = arith.constant 0 : index
    %8 = vector.load %arg1[%c0_3, %c0_4] : memref<16x8xf32, #tpu.memory_space<vmem>>, vector<16x8xf32>
    %9 = tpu.concatenate %7, %8 in 1 : vector<16x24xf32>, vector<16x8xf32> -> vector<16x32xf32>
    %c64 = arith.constant 64 : index
    %c0_5 = arith.constant 0 : index
    %10 = vector.load %arg2[%c64, %c0_5] : memref<88x128xf32, #tpu.memory_space<vmem>>, vector<8x128xf32>
    %11 = vector.extract_strided_slice %10 {offsets = [0, 0], sizes = [1, 32], strides = [1, 1]} : vector<8x128xf32> to vector<1x32xf32>
    %12 = vector.extract_strided_slice %10 {offsets = [1, 0], sizes = [1, 32], strides = [1, 1]} : vector<8x128xf32> to vector<1x32xf32>
    %13 = vector.extract_strided_slice %10 {offsets = [2, 0], sizes = [1, 32], strides = [1, 1]} : vector<8x128xf32> to vector<1x32xf32>
    %14 = vector.extract_strided_slice %10 {offsets = [3, 0], sizes = [1, 32], strides = [1, 1]} : vector<8x128xf32> to vector<1x32xf32>
    %15 = vector.extract_strided_slice %10 {offsets = [4, 0], sizes = [1, 96], strides = [1, 1]} : vector<8x128xf32> to vector<1x96xf32>
    %16 = vector.extract_strided_slice %10 {offsets = [5, 0], sizes = [1, 32], strides = [1, 1]} : vector<8x128xf32> to vector<1x32xf32>
    %17 = vector.extract_strided_slice %10 {offsets = [6, 0], sizes = [1, 64], strides = [1, 1]} : vector<8x128xf32> to vector<1x64xf32>
    %18 = vector.extract_strided_slice %10 {offsets = [7, 0], sizes = [1, 32], strides = [1, 1]} : vector<8x128xf32> to vector<1x32xf32>
    %c0_6 = arith.constant 0 : index
    %c0_7 = arith.constant 0 : index
    %19 = vector.load %arg3[%c0_6, %c0_7] : memref<288x128xbf16, #tpu.memory_space<vmem>>, vector<32x96xbf16>
    %c0_8 = arith.constant 0 : index
    %c96 = arith.constant 96 : index
    %20 = vector.load %arg3[%c0_8, %c96] : memref<288x128xbf16, #tpu.memory_space<vmem>>, vector<32x32xbf16>
    %c32 = arith.constant 32 : index
    %c0_9 = arith.constant 0 : index
    %21 = vector.load %arg3[%c32, %c0_9] : memref<288x128xbf16, #tpu.memory_space<vmem>>, vector<32x64xbf16>
    %c64_10 = arith.constant 64 : index
    %c0_11 = arith.constant 0 : index
    %22 = vector.load %arg3[%c64_10, %c0_11] : memref<288x128xbf16, #tpu.memory_space<vmem>>, vector<64x32xbf16>
    %cst_12 = arith.constant dense<0.000000e+00> : vector<16xf32>
    %23 = vector.multi_reduction <add>, %9, %cst_12 [1] : vector<16x32xf32> to vector<16xf32>
    %24 = vector.shape_cast %23 : vector<16xf32> to vector<16x1xf32>
    %cst_13 = arith.constant 3.200000e+01 : f32
    %25 = vector.broadcast %cst_13 : f32 to vector<16x1xf32>
    %26 = arith.divf %24, %25 : vector<16x1xf32>
    %27 = vector.broadcast %26 : vector<16x1xf32> to vector<16x32xf32>
    %28 = arith.subf %9, %27 : vector<16x32xf32>
    %29 = arith.mulf %28, %28 : vector<16x32xf32>
    %cst_14 = arith.constant dense<0.000000e+00> : vector<16xf32>
    %30 = vector.multi_reduction <add>, %29, %cst_14 [1] : vector<16x32xf32> to vector<16xf32>
    %31 = vector.shape_cast %30 : vector<16xf32> to vector<16x1xf32>
    %cst_15 = arith.constant 3.200000e+01 : f32
    %32 = vector.broadcast %cst_15 : f32 to vector<16x1xf32>
    %33 = arith.divf %31, %32 : vector<16x1xf32>
    %34 = vector.broadcast %26 : vector<16x1xf32> to vector<16x32xf32>
    %35 = arith.subf %9, %34 : vector<16x32xf32>
    %cst_16 = arith.constant 9.99999996E-13 : f32
    %36 = vector.broadcast %cst_16 : f32 to vector<16x1xf32>
    %37 = arith.addf %33, %36 : vector<16x1xf32>
    %38 = math.rsqrt %37 : vector<16x1xf32>
    %39 = vector.broadcast %38 : vector<16x1xf32> to vector<16x32xf32>
    %40 = arith.mulf %35, %39 : vector<16x32xf32>
    %41 = vector.broadcast %11 : vector<1x32xf32> to vector<16x32xf32>
    %42 = arith.mulf %40, %41 : vector<16x32xf32>
    %43 = vector.broadcast %12 : vector<1x32xf32> to vector<16x32xf32>
    %44 = arith.addf %42, %43 : vector<16x32xf32>
    %45 = arith.truncf %44 : vector<16x32xf32> to vector<16x32xbf16>
    %cst_17 = arith.constant dense<0.000000e+00> : vector<16x96xf32>
    %46 = tpu.matmul %45, %19, %cst_17 {dimension_numbers = #tpu.dot_dimension_numbers<[1], [0], [0], [1], [0, 0, 1, 1], [], []>} : vector<16x32xbf16>, vector<32x96xbf16>, vector<16x96xf32> -> vector<16x96xf32>
    %47 = vector.broadcast %15 : vector<1x96xf32> to vector<16x96xf32>
    %48 = arith.addf %46, %47 : vector<16x96xf32>
    %cst_18 = arith.constant 0.000000e+00 : f32
    %49 = vector.broadcast %cst_18 : f32 to vector<16x32xf32>
    %50 = vector.extract_strided_slice %48 {offsets = [0, 0], sizes = [16, 8], strides = [1, 1]} : vector<16x96xf32> to vector<16x8xf32>
    %51 = vector.shape_cast %50 : vector<16x8xf32> to vector<2x8x8xf32>
    %52 = vector.extract_strided_slice %48 {offsets = [0, 32], sizes = [16, 8], strides = [1, 1]} : vector<16x96xf32> to vector<16x8xf32>
    %53 = vector.shape_cast %52 : vector<16x8xf32> to vector<2x8x8xf32>
    %54 = vector.extract_strided_slice %48 {offsets = [0, 64], sizes = [16, 8], strides = [1, 1]} : vector<16x96xf32> to vector<16x8xf32>
    %55 = vector.shape_cast %54 : vector<16x8xf32> to vector<2x8x8xf32>
    "tpu.trace_start"() <{level = 10 : i32, message = "bqd,bkd->bqk"}> : () -> ()
    %cst_19 = arith.constant dense<0.000000e+00> : vector<2x8x8xf32>
    %56 = tpu.matmul %51, %53, %cst_19 {dimension_numbers = #tpu.dot_dimension_numbers<[2], [2], [1], [1], [0, 0, 0, 1, 1, 1], [0], [0]>} : vector<2x8x8xf32>, vector<2x8x8xf32>, vector<2x8x8xf32> -> vector<2x8x8xf32>
    "tpu.trace_stop"() : () -> ()
    %cst_20 = arith.constant 0.353553385 : f32
    %57 = vector.broadcast %cst_20 : f32 to vector<2x8x8xf32>
    %58 = arith.mulf %56, %57 : vector<2x8x8xf32>
    %cst_21 = arith.constant dense<0xFF800000> : vector<2x8xf32>
    %59 = vector.multi_reduction <maximumf>, %58, %cst_21 [2] : vector<2x8x8xf32> to vector<2x8xf32>
    %60 = vector.shape_cast %59 : vector<2x8xf32> to vector<2x8x1xf32>
    %61 = vector.broadcast %60 : vector<2x8x1xf32> to vector<2x8x8xf32>
    %62 = arith.subf %58, %61 : vector<2x8x8xf32>
    %63 = math.exp %62 : vector<2x8x8xf32>
    %cst_22 = arith.constant dense<0.000000e+00> : vector<2x8xf32>
    %64 = vector.multi_reduction <add>, %63, %cst_22 [2] : vector<2x8x8xf32> to vector<2x8xf32>
    %65 = vector.shape_cast %64 : vector<2x8xf32> to vector<2x8x1xf32>
    %66 = tpu.reciprocal %65 {approx = true} : vector<2x8x1xf32> -> vector<2x8x1xf32>
    %67 = vector.broadcast %66 : vector<2x8x1xf32> to vector<2x8x8xf32>
    %68 = arith.mulf %63, %67 : vector<2x8x8xf32>
    "tpu.trace_start"() <{level = 10 : i32, message = "bqk,bkd->bqd"}> : () -> ()
    %cst_23 = arith.constant dense<0.000000e+00> : vector<2x8x8xf32>
    %69 = tpu.matmul %68, %55, %cst_23 {dimension_numbers = #tpu.dot_dimension_numbers<[2], [1], [1], [2], [0, 0, 0, 1, 1, 2], [0], [0]>} : vector<2x8x8xf32>, vector<2x8x8xf32>, vector<2x8x8xf32> -> vector<2x8x8xf32>
    "tpu.trace_stop"() : () -> ()
    %70 = vector.shape_cast %69 : vector<2x8x8xf32> to vector<16x8xf32>
    %71 = arith.truncf %70 : vector<16x8xf32> to vector<16x8xbf16>
    %72 = vector.extract_strided_slice %20 {offsets = [0, 0], sizes = [8, 32], strides = [1, 1]} : vector<32x32xbf16> to vector<8x32xbf16>
    %cst_24 = arith.constant dense<0.000000e+00> : vector<16x32xf32>
    %73 = tpu.matmul %71, %72, %cst_24 {dimension_numbers = #tpu.dot_dimension_numbers<[1], [0], [0], [1], [0, 0, 1, 1], [], []>} : vector<16x8xbf16>, vector<8x32xbf16>, vector<16x32xf32> -> vector<16x32xf32>
    %74 = arith.addf %49, %73 : vector<16x32xf32>
    %75 = vector.extract_strided_slice %48 {offsets = [0, 8], sizes = [16, 8], strides = [1, 1]} : vector<16x96xf32> to vector<16x8xf32>
    %76 = vector.shape_cast %75 : vector<16x8xf32> to vector<2x8x8xf32>
    %77 = vector.extract_strided_slice %48 {offsets = [0, 40], sizes = [16, 8], strides = [1, 1]} : vector<16x96xf32> to vector<16x8xf32>
    %78 = vector.shape_cast %77 : vector<16x8xf32> to vector<2x8x8xf32>
    %79 = vector.extract_strided_slice %48 {offsets = [0, 72], sizes = [16, 8], strides = [1, 1]} : vector<16x96xf32> to vector<16x8xf32>
    %80 = vector.shape_cast %79 : vector<16x8xf32> to vector<2x8x8xf32>
    "tpu.trace_start"() <{level = 10 : i32, message = "bqd,bkd->bqk"}> : () -> ()
    %cst_25 = arith.constant dense<0.000000e+00> : vector<2x8x8xf32>
    %81 = tpu.matmul %76, %78, %cst_25 {dimension_numbers = #tpu.dot_dimension_numbers<[2], [2], [1], [1], [0, 0, 0, 1, 1, 1], [0], [0]>} : vector<2x8x8xf32>, vector<2x8x8xf32>, vector<2x8x8xf32> -> vector<2x8x8xf32>
    "tpu.trace_stop"() : () -> ()
    %cst_26 = arith.constant 0.353553385 : f32
    %82 = vector.broadcast %cst_26 : f32 to vector<2x8x8xf32>
    %83 = arith.mulf %81, %82 : vector<2x8x8xf32>
    %cst_27 = arith.constant dense<0xFF800000> : vector<2x8xf32>
    %84 = vector.multi_reduction <maximumf>, %83, %cst_27 [2] : vector<2x8x8xf32> to vector<2x8xf32>
    %85 = vector.shape_cast %84 : vector<2x8xf32> to vector<2x8x1xf32>
    %86 = vector.broadcast %85 : vector<2x8x1xf32> to vector<2x8x8xf32>
    %87 = arith.subf %83, %86 : vector<2x8x8xf32>
    %88 = math.exp %87 : vector<2x8x8xf32>
    %cst_28 = arith.constant dense<0.000000e+00> : vector<2x8xf32>
    %89 = vector.multi_reduction <add>, %88, %cst_28 [2] : vector<2x8x8xf32> to vector<2x8xf32>
    %90 = vector.shape_cast %89 : vector<2x8xf32> to vector<2x8x1xf32>
    %91 = tpu.reciprocal %90 {approx = true} : vector<2x8x1xf32> -> vector<2x8x1xf32>
    %92 = vector.broadcast %91 : vector<2x8x1xf32> to vector<2x8x8xf32>
    %93 = arith.mulf %88, %92 : vector<2x8x8xf32>
    "tpu.trace_start"() <{level = 10 : i32, message = "bqk,bkd->bqd"}> : () -> ()
    %cst_29 = arith.constant dense<0.000000e+00> : vector<2x8x8xf32>
    %94 = tpu.matmul %93, %80, %cst_29 {dimension_numbers = #tpu.dot_dimension_numbers<[2], [1], [1], [2], [0, 0, 0, 1, 1, 2], [0], [0]>} : vector<2x8x8xf32>, vector<2x8x8xf32>, vector<2x8x8xf32> -> vector<2x8x8xf32>
    "tpu.trace_stop"() : () -> ()
    %95 = vector.shape_cast %94 : vector<2x8x8xf32> to vector<16x8xf32>
    %96 = arith.truncf %95 : vector<16x8xf32> to vector<16x8xbf16>
    %97 = vector.extract_strided_slice %20 {offsets = [8, 0], sizes = [8, 32], strides = [1, 1]} : vector<32x32xbf16> to vector<8x32xbf16>
    %cst_30 = arith.constant dense<0.000000e+00> : vector<16x32xf32>
    %98 = tpu.matmul %96, %97, %cst_30 {dimension_numbers = #tpu.dot_dimension_numbers<[1], [0], [0], [1], [0, 0, 1, 1], [], []>} : vector<16x8xbf16>, vector<8x32xbf16>, vector<16x32xf32> -> vector<16x32xf32>
    %99 = arith.addf %74, %98 : vector<16x32xf32>
    %100 = vector.extract_strided_slice %48 {offsets = [0, 16], sizes = [16, 8], strides = [1, 1]} : vector<16x96xf32> to vector<16x8xf32>
    %101 = vector.shape_cast %100 : vector<16x8xf32> to vector<2x8x8xf32>
    %102 = vector.extract_strided_slice %48 {offsets = [0, 48], sizes = [16, 8], strides = [1, 1]} : vector<16x96xf32> to vector<16x8xf32>
    %103 = vector.shape_cast %102 : vector<16x8xf32> to vector<2x8x8xf32>
    %104 = vector.extract_strided_slice %48 {offsets = [0, 80], sizes = [16, 8], strides = [1, 1]} : vector<16x96xf32> to vector<16x8xf32>
    %105 = vector.shape_cast %104 : vector<16x8xf32> to vector<2x8x8xf32>
    "tpu.trace_start"() <{level = 10 : i32, message = "bqd,bkd->bqk"}> : () -> ()
    %cst_31 = arith.constant dense<0.000000e+00> : vector<2x8x8xf32>
    %106 = tpu.matmul %101, %103, %cst_31 {dimension_numbers = #tpu.dot_dimension_numbers<[2], [2], [1], [1], [0, 0, 0, 1, 1, 1], [0], [0]>} : vector<2x8x8xf32>, vector<2x8x8xf32>, vector<2x8x8xf32> -> vector<2x8x8xf32>
    "tpu.trace_stop"() : () -> ()
    %cst_32 = arith.constant 0.353553385 : f32
    %107 = vector.broadcast %cst_32 : f32 to vector<2x8x8xf32>
    %108 = arith.mulf %106, %107 : vector<2x8x8xf32>
    %cst_33 = arith.constant dense<0xFF800000> : vector<2x8xf32>
    %109 = vector.multi_reduction <maximumf>, %108, %cst_33 [2] : vector<2x8x8xf32> to vector<2x8xf32>
    %110 = vector.shape_cast %109 : vector<2x8xf32> to vector<2x8x1xf32>
    %111 = vector.broadcast %110 : vector<2x8x1xf32> to vector<2x8x8xf32>
    %112 = arith.subf %108, %111 : vector<2x8x8xf32>
    %113 = math.exp %112 : vector<2x8x8xf32>
    %cst_34 = arith.constant dense<0.000000e+00> : vector<2x8xf32>
    %114 = vector.multi_reduction <add>, %113, %cst_34 [2] : vector<2x8x8xf32> to vector<2x8xf32>
    %115 = vector.shape_cast %114 : vector<2x8xf32> to vector<2x8x1xf32>
    %116 = tpu.reciprocal %115 {approx = true} : vector<2x8x1xf32> -> vector<2x8x1xf32>
    %117 = vector.broadcast %116 : vector<2x8x1xf32> to vector<2x8x8xf32>
    %118 = arith.mulf %113, %117 : vector<2x8x8xf32>
    "tpu.trace_start"() <{level = 10 : i32, message = "bqk,bkd->bqd"}> : () -> ()
    %cst_35 = arith.constant dense<0.000000e+00> : vector<2x8x8xf32>
    %119 = tpu.matmul %118, %105, %cst_35 {dimension_numbers = #tpu.dot_dimension_numbers<[2], [1], [1], [2], [0, 0, 0, 1, 1, 2], [0], [0]>} : vector<2x8x8xf32>, vector<2x8x8xf32>, vector<2x8x8xf32> -> vector<2x8x8xf32>
    "tpu.trace_stop"() : () -> ()
    %120 = vector.shape_cast %119 : vector<2x8x8xf32> to vector<16x8xf32>
    %121 = arith.truncf %120 : vector<16x8xf32> to vector<16x8xbf16>
    %122 = vector.extract_strided_slice %20 {offsets = [16, 0], sizes = [8, 32], strides = [1, 1]} : vector<32x32xbf16> to vector<8x32xbf16>
    %cst_36 = arith.constant dense<0.000000e+00> : vector<16x32xf32>
    %123 = tpu.matmul %121, %122, %cst_36 {dimension_numbers = #tpu.dot_dimension_numbers<[1], [0], [0], [1], [0, 0, 1, 1], [], []>} : vector<16x8xbf16>, vector<8x32xbf16>, vector<16x32xf32> -> vector<16x32xf32>
    %124 = arith.addf %99, %123 : vector<16x32xf32>
    %125 = vector.extract_strided_slice %48 {offsets = [0, 24], sizes = [16, 8], strides = [1, 1]} : vector<16x96xf32> to vector<16x8xf32>
    %126 = vector.shape_cast %125 : vector<16x8xf32> to vector<2x8x8xf32>
    %127 = vector.extract_strided_slice %48 {offsets = [0, 56], sizes = [16, 8], strides = [1, 1]} : vector<16x96xf32> to vector<16x8xf32>
    %128 = vector.shape_cast %127 : vector<16x8xf32> to vector<2x8x8xf32>
    %129 = vector.extract_strided_slice %48 {offsets = [0, 88], sizes = [16, 8], strides = [1, 1]} : vector<16x96xf32> to vector<16x8xf32>
    %130 = vector.shape_cast %129 : vector<16x8xf32> to vector<2x8x8xf32>
    "tpu.trace_start"() <{level = 10 : i32, message = "bqd,bkd->bqk"}> : () -> ()
    %cst_37 = arith.constant dense<0.000000e+00> : vector<2x8x8xf32>
    %131 = tpu.matmul %126, %128, %cst_37 {dimension_numbers = #tpu.dot_dimension_numbers<[2], [2], [1], [1], [0, 0, 0, 1, 1, 1], [0], [0]>} : vector<2x8x8xf32>, vector<2x8x8xf32>, vector<2x8x8xf32> -> vector<2x8x8xf32>
    "tpu.trace_stop"() : () -> ()
    %cst_38 = arith.constant 0.353553385 : f32
    %132 = vector.broadcast %cst_38 : f32 to vector<2x8x8xf32>
    %133 = arith.mulf %131, %132 : vector<2x8x8xf32>
    %cst_39 = arith.constant dense<0xFF800000> : vector<2x8xf32>
    %134 = vector.multi_reduction <maximumf>, %133, %cst_39 [2] : vector<2x8x8xf32> to vector<2x8xf32>
    %135 = vector.shape_cast %134 : vector<2x8xf32> to vector<2x8x1xf32>
    %136 = vector.broadcast %135 : vector<2x8x1xf32> to vector<2x8x8xf32>
    %137 = arith.subf %133, %136 : vector<2x8x8xf32>
    %138 = math.exp %137 : vector<2x8x8xf32>
    %cst_40 = arith.constant dense<0.000000e+00> : vector<2x8xf32>
    %139 = vector.multi_reduction <add>, %138, %cst_40 [2] : vector<2x8x8xf32> to vector<2x8xf32>
    %140 = vector.shape_cast %139 : vector<2x8xf32> to vector<2x8x1xf32>
    %141 = tpu.reciprocal %140 {approx = true} : vector<2x8x1xf32> -> vector<2x8x1xf32>
    %142 = vector.broadcast %141 : vector<2x8x1xf32> to vector<2x8x8xf32>
    %143 = arith.mulf %138, %142 : vector<2x8x8xf32>
    "tpu.trace_start"() <{level = 10 : i32, message = "bqk,bkd->bqd"}> : () -> ()
    %cst_41 = arith.constant dense<0.000000e+00> : vector<2x8x8xf32>
    %144 = tpu.matmul %143, %130, %cst_41 {dimension_numbers = #tpu.dot_dimension_numbers<[2], [1], [1], [2], [0, 0, 0, 1, 1, 2], [0], [0]>} : vector<2x8x8xf32>, vector<2x8x8xf32>, vector<2x8x8xf32> -> vector<2x8x8xf32>
    "tpu.trace_stop"() : () -> ()
    %145 = vector.shape_cast %144 : vector<2x8x8xf32> to vector<16x8xf32>
    %146 = arith.truncf %145 : vector<16x8xf32> to vector<16x8xbf16>
    %147 = vector.extract_strided_slice %20 {offsets = [24, 0], sizes = [8, 32], strides = [1, 1]} : vector<32x32xbf16> to vector<8x32xbf16>
    %cst_42 = arith.constant dense<0.000000e+00> : vector<16x32xf32>
    %148 = tpu.matmul %146, %147, %cst_42 {dimension_numbers = #tpu.dot_dimension_numbers<[1], [0], [0], [1], [0, 0, 1, 1], [], []>} : vector<16x8xbf16>, vector<8x32xbf16>, vector<16x32xf32> -> vector<16x32xf32>
    %149 = arith.addf %124, %148 : vector<16x32xf32>
    %150 = vector.broadcast %16 : vector<1x32xf32> to vector<16x32xf32>
    %151 = arith.addf %149, %150 : vector<16x32xf32>
    %152 = arith.addf %151, %9 : vector<16x32xf32>
    %cst_43 = arith.constant dense<0.000000e+00> : vector<16xf32>
    %153 = vector.multi_reduction <add>, %152, %cst_43 [1] : vector<16x32xf32> to vector<16xf32>
    %154 = vector.shape_cast %153 : vector<16xf32> to vector<16x1xf32>
    %cst_44 = arith.constant 3.200000e+01 : f32
    %155 = vector.broadcast %cst_44 : f32 to vector<16x1xf32>
    %156 = arith.divf %154, %155 : vector<16x1xf32>
    %157 = vector.broadcast %156 : vector<16x1xf32> to vector<16x32xf32>
    %158 = arith.subf %152, %157 : vector<16x32xf32>
    %159 = arith.mulf %158, %158 : vector<16x32xf32>
    %cst_45 = arith.constant dense<0.000000e+00> : vector<16xf32>
    %160 = vector.multi_reduction <add>, %159, %cst_45 [1] : vector<16x32xf32> to vector<16xf32>
    %161 = vector.shape_cast %160 : vector<16xf32> to vector<16x1xf32>
    %cst_46 = arith.constant 3.200000e+01 : f32
    %162 = vector.broadcast %cst_46 : f32 to vector<16x1xf32>
    %163 = arith.divf %161, %162 : vector<16x1xf32>
    %164 = vector.broadcast %156 : vector<16x1xf32> to vector<16x32xf32>
    %165 = arith.subf %152, %164 : vector<16x32xf32>
    %cst_47 = arith.constant 9.99999996E-13 : f32
    %166 = vector.broadcast %cst_47 : f32 to vector<16x1xf32>
    %167 = arith.addf %163, %166 : vector<16x1xf32>
    %168 = math.rsqrt %167 : vector<16x1xf32>
    %169 = vector.broadcast %168 : vector<16x1xf32> to vector<16x32xf32>
    %170 = arith.mulf %165, %169 : vector<16x32xf32>
    %171 = vector.broadcast %13 : vector<1x32xf32> to vector<16x32xf32>
    %172 = arith.mulf %170, %171 : vector<16x32xf32>
    %173 = vector.broadcast %14 : vector<1x32xf32> to vector<16x32xf32>
    %174 = arith.addf %172, %173 : vector<16x32xf32>
    %175 = arith.truncf %174 : vector<16x32xf32> to vector<16x32xbf16>
    %cst_48 = arith.constant dense<0.000000e+00> : vector<16x64xf32>
    %176 = tpu.matmul %175, %21, %cst_48 {dimension_numbers = #tpu.dot_dimension_numbers<[1], [0], [0], [1], [0, 0, 1, 1], [], []>} : vector<16x32xbf16>, vector<32x64xbf16>, vector<16x64xf32> -> vector<16x64xf32>
    %177 = vector.broadcast %17 : vector<1x64xf32> to vector<16x64xf32>
    %178 = arith.addf %176, %177 : vector<16x64xf32>
    %cst_49 = arith.constant 5.000000e-01 : f32
    %179 = vector.broadcast %cst_49 : f32 to vector<16x64xf32>
    %180 = arith.mulf %179, %178 : vector<16x64xf32>
    %cst_50 = arith.constant 0.707106769 : f32
    %181 = vector.broadcast %cst_50 : f32 to vector<16x64xf32>
    %182 = arith.mulf %178, %181 : vector<16x64xf32>
    %cst_51 = arith.constant 0.000000e+00 : f32
    %183 = vector.broadcast %cst_51 : f32 to vector<16x64xf32>
    %184 = arith.cmpf oge, %182, %183 : vector<16x64xf32>
    %cst_52 = arith.constant 0.000000e+00 : f32
    %185 = vector.broadcast %cst_52 : f32 to vector<16x64xf32>
    %186 = arith.subf %185, %182 : vector<16x64xf32>
    %187 = arith.select %184, %182, %186 : vector<16x64xi1>, vector<16x64xf32>
    %cst_53 = arith.constant 0.327591091 : f32
    %188 = vector.broadcast %cst_53 : f32 to vector<16x64xf32>
    %189 = arith.mulf %188, %187 : vector<16x64xf32>
    %cst_54 = arith.constant 1.000000e+00 : f32
    %190 = vector.broadcast %cst_54 : f32 to vector<16x64xf32>
    %191 = arith.addf %190, %189 : vector<16x64xf32>
    %cst_55 = arith.constant 1.000000e+00 : f32
    %192 = vector.broadcast %cst_55 : f32 to vector<16x64xf32>
    %193 = arith.divf %192, %191 : vector<16x64xf32>
    %cst_56 = arith.constant 1.06140542 : f32
    %194 = vector.broadcast %cst_56 : f32 to vector<16x64xf32>
    %195 = arith.mulf %194, %193 : vector<16x64xf32>
    %cst_57 = arith.constant -1.45315206 : f32
    %196 = vector.broadcast %cst_57 : f32 to vector<16x64xf32>
    %197 = arith.addf %195, %196 : vector<16x64xf32>
    %198 = arith.mulf %197, %193 : vector<16x64xf32>
    %cst_58 = arith.constant 1.42141378 : f32
    %199 = vector.broadcast %cst_58 : f32 to vector<16x64xf32>
    %200 = arith.addf %198, %199 : vector<16x64xf32>
    %201 = arith.mulf %200, %193 : vector<16x64xf32>
    %cst_59 = arith.constant -0.284496725 : f32
    %202 = vector.broadcast %cst_59 : f32 to vector<16x64xf32>
    %203 = arith.addf %201, %202 : vector<16x64xf32>
    %204 = arith.mulf %203, %193 : vector<16x64xf32>
    %cst_60 = arith.constant 0.254829586 : f32
    %205 = vector.broadcast %cst_60 : f32 to vector<16x64xf32>
    %206 = arith.addf %204, %205 : vector<16x64xf32>
    %207 = arith.mulf %206, %193 : vector<16x64xf32>
    %cst_61 = arith.constant 0.000000e+00 : f32
    %208 = vector.broadcast %cst_61 : f32 to vector<16x64xf32>
    %209 = arith.subf %208, %187 : vector<16x64xf32>
    %210 = arith.mulf %209, %187 : vector<16x64xf32>
    %211 = math.exp %210 : vector<16x64xf32>
    %212 = arith.mulf %207, %211 : vector<16x64xf32>
    %cst_62 = arith.constant 1.000000e+00 : f32
    %213 = vector.broadcast %cst_62 : f32 to vector<16x64xf32>
    %214 = arith.subf %213, %212 : vector<16x64xf32>
    %cst_63 = arith.constant 0.000000e+00 : f32
    %215 = vector.broadcast %cst_63 : f32 to vector<16x64xf32>
    %216 = arith.cmpf oge, %182, %215 : vector<16x64xf32>
    %cst_64 = arith.constant 0.000000e+00 : f32
    %217 = vector.broadcast %cst_64 : f32 to vector<16x64xf32>
    %218 = arith.subf %217, %214 : vector<16x64xf32>
    %219 = arith.select %216, %214, %218 : vector<16x64xi1>, vector<16x64xf32>
    %cst_65 = arith.constant 1.000000e+00 : f32
    %220 = vector.broadcast %cst_65 : f32 to vector<16x64xf32>
    %221 = arith.addf %220, %219 : vector<16x64xf32>
    %222 = arith.mulf %180, %221 : vector<16x64xf32>
    %223 = arith.truncf %222 : vector<16x64xf32> to vector<16x64xbf16>
    %cst_66 = arith.constant dense<0.000000e+00> : vector<16x32xf32>
    %224 = tpu.matmul %223, %22, %cst_66 {dimension_numbers = #tpu.dot_dimension_numbers<[1], [0], [0], [1], [0, 0, 1, 1], [], []>} : vector<16x64xbf16>, vector<64x32xbf16>, vector<16x32xf32> -> vector<16x32xf32>
    %225 = vector.broadcast %18 : vector<1x32xf32> to vector<16x32xf32>
    %226 = arith.addf %224, %225 : vector<16x32xf32>
    %227 = arith.addf %226, %152 : vector<16x32xf32>
    %c72 = arith.constant 72 : index
    %c0_67 = arith.constant 0 : index
    %228 = vector.load %arg2[%c72, %c0_67] : memref<88x128xf32, #tpu.memory_space<vmem>>, vector<8x128xf32>
    %229 = vector.extract_strided_slice %228 {offsets = [0, 0], sizes = [1, 32], strides = [1, 1]} : vector<8x128xf32> to vector<1x32xf32>
    %230 = vector.extract_strided_slice %228 {offsets = [1, 0], sizes = [1, 32], strides = [1, 1]} : vector<8x128xf32> to vector<1x32xf32>
    %231 = vector.extract_strided_slice %228 {offsets = [2, 0], sizes = [1, 32], strides = [1, 1]} : vector<8x128xf32> to vector<1x32xf32>
    %232 = vector.extract_strided_slice %228 {offsets = [3, 0], sizes = [1, 32], strides = [1, 1]} : vector<8x128xf32> to vector<1x32xf32>
    %233 = vector.extract_strided_slice %228 {offsets = [4, 0], sizes = [1, 96], strides = [1, 1]} : vector<8x128xf32> to vector<1x96xf32>
    %234 = vector.extract_strided_slice %228 {offsets = [5, 0], sizes = [1, 32], strides = [1, 1]} : vector<8x128xf32> to vector<1x32xf32>
    %235 = vector.extract_strided_slice %228 {offsets = [6, 0], sizes = [1, 64], strides = [1, 1]} : vector<8x128xf32> to vector<1x64xf32>
    %236 = vector.extract_strided_slice %228 {offsets = [7, 0], sizes = [1, 32], strides = [1, 1]} : vector<8x128xf32> to vector<1x32xf32>
    %c128 = arith.constant 128 : index
    %c0_68 = arith.constant 0 : index
    %237 = vector.load %arg3[%c128, %c0_68] : memref<288x128xbf16, #tpu.memory_space<vmem>>, vector<32x96xbf16>
    %c128_69 = arith.constant 128 : index
    %c96_70 = arith.constant 96 : index
    %238 = vector.load %arg3[%c128_69, %c96_70] : memref<288x128xbf16, #tpu.memory_space<vmem>>, vector<32x32xbf16>
    %c160 = arith.constant 160 : index
    %c0_71 = arith.constant 0 : index
    %239 = vector.load %arg3[%c160, %c0_71] : memref<288x128xbf16, #tpu.memory_space<vmem>>, vector<32x64xbf16>
    %c192 = arith.constant 192 : index
    %c0_72 = arith.constant 0 : index
    %240 = vector.load %arg3[%c192, %c0_72] : memref<288x128xbf16, #tpu.memory_space<vmem>>, vector<64x32xbf16>
    %cst_73 = arith.constant dense<0.000000e+00> : vector<16xf32>
    %241 = vector.multi_reduction <add>, %227, %cst_73 [1] : vector<16x32xf32> to vector<16xf32>
    %242 = vector.shape_cast %241 : vector<16xf32> to vector<16x1xf32>
    %cst_74 = arith.constant 3.200000e+01 : f32
    %243 = vector.broadcast %cst_74 : f32 to vector<16x1xf32>
    %244 = arith.divf %242, %243 : vector<16x1xf32>
    %245 = vector.broadcast %244 : vector<16x1xf32> to vector<16x32xf32>
    %246 = arith.subf %227, %245 : vector<16x32xf32>
    %247 = arith.mulf %246, %246 : vector<16x32xf32>
    %cst_75 = arith.constant dense<0.000000e+00> : vector<16xf32>
    %248 = vector.multi_reduction <add>, %247, %cst_75 [1] : vector<16x32xf32> to vector<16xf32>
    %249 = vector.shape_cast %248 : vector<16xf32> to vector<16x1xf32>
    %cst_76 = arith.constant 3.200000e+01 : f32
    %250 = vector.broadcast %cst_76 : f32 to vector<16x1xf32>
    %251 = arith.divf %249, %250 : vector<16x1xf32>
    %252 = vector.broadcast %244 : vector<16x1xf32> to vector<16x32xf32>
    %253 = arith.subf %227, %252 : vector<16x32xf32>
    %cst_77 = arith.constant 9.99999996E-13 : f32
    %254 = vector.broadcast %cst_77 : f32 to vector<16x1xf32>
    %255 = arith.addf %251, %254 : vector<16x1xf32>
    %256 = math.rsqrt %255 : vector<16x1xf32>
    %257 = vector.broadcast %256 : vector<16x1xf32> to vector<16x32xf32>
    %258 = arith.mulf %253, %257 : vector<16x32xf32>
    %259 = vector.broadcast %229 : vector<1x32xf32> to vector<16x32xf32>
    %260 = arith.mulf %258, %259 : vector<16x32xf32>
    %261 = vector.broadcast %230 : vector<1x32xf32> to vector<16x32xf32>
    %262 = arith.addf %260, %261 : vector<16x32xf32>
    %263 = arith.truncf %262 : vector<16x32xf32> to vector<16x32xbf16>
    %cst_78 = arith.constant dense<0.000000e+00> : vector<16x96xf32>
    %264 = tpu.matmul %263, %237, %cst_78 {dimension_numbers = #tpu.dot_dimension_numbers<[1], [0], [0], [1], [0, 0, 1, 1], [], []>} : vector<16x32xbf16>, vector<32x96xbf16>, vector<16x96xf32> -> vector<16x96xf32>
    %265 = vector.broadcast %233 : vector<1x96xf32> to vector<16x96xf32>
    %266 = arith.addf %264, %265 : vector<16x96xf32>
    %cst_79 = arith.constant 0.000000e+00 : f32
    %267 = vector.broadcast %cst_79 : f32 to vector<16x32xf32>
    %268 = vector.extract_strided_slice %266 {offsets = [0, 0], sizes = [16, 8], strides = [1, 1]} : vector<16x96xf32> to vector<16x8xf32>
    %269 = vector.shape_cast %268 : vector<16x8xf32> to vector<2x8x8xf32>
    %270 = vector.extract_strided_slice %266 {offsets = [0, 32], sizes = [16, 8], strides = [1, 1]} : vector<16x96xf32> to vector<16x8xf32>
    %271 = vector.shape_cast %270 : vector<16x8xf32> to vector<2x8x8xf32>
    %272 = vector.extract_strided_slice %266 {offsets = [0, 64], sizes = [16, 8], strides = [1, 1]} : vector<16x96xf32> to vector<16x8xf32>
    %273 = vector.shape_cast %272 : vector<16x8xf32> to vector<2x8x8xf32>
    "tpu.trace_start"() <{level = 10 : i32, message = "bqd,bkd->bqk"}> : () -> ()
    %cst_80 = arith.constant dense<0.000000e+00> : vector<2x8x8xf32>
    %274 = tpu.matmul %269, %271, %cst_80 {dimension_numbers = #tpu.dot_dimension_numbers<[2], [2], [1], [1], [0, 0, 0, 1, 1, 1], [0], [0]>} : vector<2x8x8xf32>, vector<2x8x8xf32>, vector<2x8x8xf32> -> vector<2x8x8xf32>
    "tpu.trace_stop"() : () -> ()
    %cst_81 = arith.constant 0.353553385 : f32
    %275 = vector.broadcast %cst_81 : f32 to vector<2x8x8xf32>
    %276 = arith.mulf %274, %275 : vector<2x8x8xf32>
    %cst_82 = arith.constant dense<0xFF800000> : vector<2x8xf32>
    %277 = vector.multi_reduction <maximumf>, %276, %cst_82 [2] : vector<2x8x8xf32> to vector<2x8xf32>
    %278 = vector.shape_cast %277 : vector<2x8xf32> to vector<2x8x1xf32>
    %279 = vector.broadcast %278 : vector<2x8x1xf32> to vector<2x8x8xf32>
    %280 = arith.subf %276, %279 : vector<2x8x8xf32>
    %281 = math.exp %280 : vector<2x8x8xf32>
    %cst_83 = arith.constant dense<0.000000e+00> : vector<2x8xf32>
    %282 = vector.multi_reduction <add>, %281, %cst_83 [2] : vector<2x8x8xf32> to vector<2x8xf32>
    %283 = vector.shape_cast %282 : vector<2x8xf32> to vector<2x8x1xf32>
    %284 = tpu.reciprocal %283 {approx = true} : vector<2x8x1xf32> -> vector<2x8x1xf32>
    %285 = vector.broadcast %284 : vector<2x8x1xf32> to vector<2x8x8xf32>
    %286 = arith.mulf %281, %285 : vector<2x8x8xf32>
    "tpu.trace_start"() <{level = 10 : i32, message = "bqk,bkd->bqd"}> : () -> ()
    %cst_84 = arith.constant dense<0.000000e+00> : vector<2x8x8xf32>
    %287 = tpu.matmul %286, %273, %cst_84 {dimension_numbers = #tpu.dot_dimension_numbers<[2], [1], [1], [2], [0, 0, 0, 1, 1, 2], [0], [0]>} : vector<2x8x8xf32>, vector<2x8x8xf32>, vector<2x8x8xf32> -> vector<2x8x8xf32>
    "tpu.trace_stop"() : () -> ()
    %288 = vector.shape_cast %287 : vector<2x8x8xf32> to vector<16x8xf32>
    %289 = arith.truncf %288 : vector<16x8xf32> to vector<16x8xbf16>
    %290 = vector.extract_strided_slice %238 {offsets = [0, 0], sizes = [8, 32], strides = [1, 1]} : vector<32x32xbf16> to vector<8x32xbf16>
    %cst_85 = arith.constant dense<0.000000e+00> : vector<16x32xf32>
    %291 = tpu.matmul %289, %290, %cst_85 {dimension_numbers = #tpu.dot_dimension_numbers<[1], [0], [0], [1], [0, 0, 1, 1], [], []>} : vector<16x8xbf16>, vector<8x32xbf16>, vector<16x32xf32> -> vector<16x32xf32>
    %292 = arith.addf %267, %291 : vector<16x32xf32>
    %293 = vector.extract_strided_slice %266 {offsets = [0, 8], sizes = [16, 8], strides = [1, 1]} : vector<16x96xf32> to vector<16x8xf32>
    %294 = vector.shape_cast %293 : vector<16x8xf32> to vector<2x8x8xf32>
    %295 = vector.extract_strided_slice %266 {offsets = [0, 40], sizes = [16, 8], strides = [1, 1]} : vector<16x96xf32> to vector<16x8xf32>
    %296 = vector.shape_cast %295 : vector<16x8xf32> to vector<2x8x8xf32>
    %297 = vector.extract_strided_slice %266 {offsets = [0, 72], sizes = [16, 8], strides = [1, 1]} : vector<16x96xf32> to vector<16x8xf32>
    %298 = vector.shape_cast %297 : vector<16x8xf32> to vector<2x8x8xf32>
    "tpu.trace_start"() <{level = 10 : i32, message = "bqd,bkd->bqk"}> : () -> ()
    %cst_86 = arith.constant dense<0.000000e+00> : vector<2x8x8xf32>
    %299 = tpu.matmul %294, %296, %cst_86 {dimension_numbers = #tpu.dot_dimension_numbers<[2], [2], [1], [1], [0, 0, 0, 1, 1, 1], [0], [0]>} : vector<2x8x8xf32>, vector<2x8x8xf32>, vector<2x8x8xf32> -> vector<2x8x8xf32>
    "tpu.trace_stop"() : () -> ()
    %cst_87 = arith.constant 0.353553385 : f32
    %300 = vector.broadcast %cst_87 : f32 to vector<2x8x8xf32>
    %301 = arith.mulf %299, %300 : vector<2x8x8xf32>
    %cst_88 = arith.constant dense<0xFF800000> : vector<2x8xf32>
    %302 = vector.multi_reduction <maximumf>, %301, %cst_88 [2] : vector<2x8x8xf32> to vector<2x8xf32>
    %303 = vector.shape_cast %302 : vector<2x8xf32> to vector<2x8x1xf32>
    %304 = vector.broadcast %303 : vector<2x8x1xf32> to vector<2x8x8xf32>
    %305 = arith.subf %301, %304 : vector<2x8x8xf32>
    %306 = math.exp %305 : vector<2x8x8xf32>
    %cst_89 = arith.constant dense<0.000000e+00> : vector<2x8xf32>
    %307 = vector.multi_reduction <add>, %306, %cst_89 [2] : vector<2x8x8xf32> to vector<2x8xf32>
    %308 = vector.shape_cast %307 : vector<2x8xf32> to vector<2x8x1xf32>
    %309 = tpu.reciprocal %308 {approx = true} : vector<2x8x1xf32> -> vector<2x8x1xf32>
    %310 = vector.broadcast %309 : vector<2x8x1xf32> to vector<2x8x8xf32>
    %311 = arith.mulf %306, %310 : vector<2x8x8xf32>
    "tpu.trace_start"() <{level = 10 : i32, message = "bqk,bkd->bqd"}> : () -> ()
    %cst_90 = arith.constant dense<0.000000e+00> : vector<2x8x8xf32>
    %312 = tpu.matmul %311, %298, %cst_90 {dimension_numbers = #tpu.dot_dimension_numbers<[2], [1], [1], [2], [0, 0, 0, 1, 1, 2], [0], [0]>} : vector<2x8x8xf32>, vector<2x8x8xf32>, vector<2x8x8xf32> -> vector<2x8x8xf32>
    "tpu.trace_stop"() : () -> ()
    %313 = vector.shape_cast %312 : vector<2x8x8xf32> to vector<16x8xf32>
    %314 = arith.truncf %313 : vector<16x8xf32> to vector<16x8xbf16>
    %315 = vector.extract_strided_slice %238 {offsets = [8, 0], sizes = [8, 32], strides = [1, 1]} : vector<32x32xbf16> to vector<8x32xbf16>
    %cst_91 = arith.constant dense<0.000000e+00> : vector<16x32xf32>
    %316 = tpu.matmul %314, %315, %cst_91 {dimension_numbers = #tpu.dot_dimension_numbers<[1], [0], [0], [1], [0, 0, 1, 1], [], []>} : vector<16x8xbf16>, vector<8x32xbf16>, vector<16x32xf32> -> vector<16x32xf32>
    %317 = arith.addf %292, %316 : vector<16x32xf32>
    %318 = vector.extract_strided_slice %266 {offsets = [0, 16], sizes = [16, 8], strides = [1, 1]} : vector<16x96xf32> to vector<16x8xf32>
    %319 = vector.shape_cast %318 : vector<16x8xf32> to vector<2x8x8xf32>
    %320 = vector.extract_strided_slice %266 {offsets = [0, 48], sizes = [16, 8], strides = [1, 1]} : vector<16x96xf32> to vector<16x8xf32>
    %321 = vector.shape_cast %320 : vector<16x8xf32> to vector<2x8x8xf32>
    %322 = vector.extract_strided_slice %266 {offsets = [0, 80], sizes = [16, 8], strides = [1, 1]} : vector<16x96xf32> to vector<16x8xf32>
    %323 = vector.shape_cast %322 : vector<16x8xf32> to vector<2x8x8xf32>
    "tpu.trace_start"() <{level = 10 : i32, message = "bqd,bkd->bqk"}> : () -> ()
    %cst_92 = arith.constant dense<0.000000e+00> : vector<2x8x8xf32>
    %324 = tpu.matmul %319, %321, %cst_92 {dimension_numbers = #tpu.dot_dimension_numbers<[2], [2], [1], [1], [0, 0, 0, 1, 1, 1], [0], [0]>} : vector<2x8x8xf32>, vector<2x8x8xf32>, vector<2x8x8xf32> -> vector<2x8x8xf32>
    "tpu.trace_stop"() : () -> ()
    %cst_93 = arith.constant 0.353553385 : f32
    %325 = vector.broadcast %cst_93 : f32 to vector<2x8x8xf32>
    %326 = arith.mulf %324, %325 : vector<2x8x8xf32>
    %cst_94 = arith.constant dense<0xFF800000> : vector<2x8xf32>
    %327 = vector.multi_reduction <maximumf>, %326, %cst_94 [2] : vector<2x8x8xf32> to vector<2x8xf32>
    %328 = vector.shape_cast %327 : vector<2x8xf32> to vector<2x8x1xf32>
    %329 = vector.broadcast %328 : vector<2x8x1xf32> to vector<2x8x8xf32>
    %330 = arith.subf %326, %329 : vector<2x8x8xf32>
    %331 = math.exp %330 : vector<2x8x8xf32>
    %cst_95 = arith.constant dense<0.000000e+00> : vector<2x8xf32>
    %332 = vector.multi_reduction <add>, %331, %cst_95 [2] : vector<2x8x8xf32> to vector<2x8xf32>
    %333 = vector.shape_cast %332 : vector<2x8xf32> to vector<2x8x1xf32>
    %334 = tpu.reciprocal %333 {approx = true} : vector<2x8x1xf32> -> vector<2x8x1xf32>
    %335 = vector.broadcast %334 : vector<2x8x1xf32> to vector<2x8x8xf32>
    %336 = arith.mulf %331, %335 : vector<2x8x8xf32>
    "tpu.trace_start"() <{level = 10 : i32, message = "bqk,bkd->bqd"}> : () -> ()
    %cst_96 = arith.constant dense<0.000000e+00> : vector<2x8x8xf32>
    %337 = tpu.matmul %336, %323, %cst_96 {dimension_numbers = #tpu.dot_dimension_numbers<[2], [1], [1], [2], [0, 0, 0, 1, 1, 2], [0], [0]>} : vector<2x8x8xf32>, vector<2x8x8xf32>, vector<2x8x8xf32> -> vector<2x8x8xf32>
    "tpu.trace_stop"() : () -> ()
    %338 = vector.shape_cast %337 : vector<2x8x8xf32> to vector<16x8xf32>
    %339 = arith.truncf %338 : vector<16x8xf32> to vector<16x8xbf16>
    %340 = vector.extract_strided_slice %238 {offsets = [16, 0], sizes = [8, 32], strides = [1, 1]} : vector<32x32xbf16> to vector<8x32xbf16>
    %cst_97 = arith.constant dense<0.000000e+00> : vector<16x32xf32>
    %341 = tpu.matmul %339, %340, %cst_97 {dimension_numbers = #tpu.dot_dimension_numbers<[1], [0], [0], [1], [0, 0, 1, 1], [], []>} : vector<16x8xbf16>, vector<8x32xbf16>, vector<16x32xf32> -> vector<16x32xf32>
    %342 = arith.addf %317, %341 : vector<16x32xf32>
    %343 = vector.extract_strided_slice %266 {offsets = [0, 24], sizes = [16, 8], strides = [1, 1]} : vector<16x96xf32> to vector<16x8xf32>
    %344 = vector.shape_cast %343 : vector<16x8xf32> to vector<2x8x8xf32>
    %345 = vector.extract_strided_slice %266 {offsets = [0, 56], sizes = [16, 8], strides = [1, 1]} : vector<16x96xf32> to vector<16x8xf32>
    %346 = vector.shape_cast %345 : vector<16x8xf32> to vector<2x8x8xf32>
    %347 = vector.extract_strided_slice %266 {offsets = [0, 88], sizes = [16, 8], strides = [1, 1]} : vector<16x96xf32> to vector<16x8xf32>
    %348 = vector.shape_cast %347 : vector<16x8xf32> to vector<2x8x8xf32>
    "tpu.trace_start"() <{level = 10 : i32, message = "bqd,bkd->bqk"}> : () -> ()
    %cst_98 = arith.constant dense<0.000000e+00> : vector<2x8x8xf32>
    %349 = tpu.matmul %344, %346, %cst_98 {dimension_numbers = #tpu.dot_dimension_numbers<[2], [2], [1], [1], [0, 0, 0, 1, 1, 1], [0], [0]>} : vector<2x8x8xf32>, vector<2x8x8xf32>, vector<2x8x8xf32> -> vector<2x8x8xf32>
    "tpu.trace_stop"() : () -> ()
    %cst_99 = arith.constant 0.353553385 : f32
    %350 = vector.broadcast %cst_99 : f32 to vector<2x8x8xf32>
    %351 = arith.mulf %349, %350 : vector<2x8x8xf32>
    %cst_100 = arith.constant dense<0xFF800000> : vector<2x8xf32>
    %352 = vector.multi_reduction <maximumf>, %351, %cst_100 [2] : vector<2x8x8xf32> to vector<2x8xf32>
    %353 = vector.shape_cast %352 : vector<2x8xf32> to vector<2x8x1xf32>
    %354 = vector.broadcast %353 : vector<2x8x1xf32> to vector<2x8x8xf32>
    %355 = arith.subf %351, %354 : vector<2x8x8xf32>
    %356 = math.exp %355 : vector<2x8x8xf32>
    %cst_101 = arith.constant dense<0.000000e+00> : vector<2x8xf32>
    %357 = vector.multi_reduction <add>, %356, %cst_101 [2] : vector<2x8x8xf32> to vector<2x8xf32>
    %358 = vector.shape_cast %357 : vector<2x8xf32> to vector<2x8x1xf32>
    %359 = tpu.reciprocal %358 {approx = true} : vector<2x8x1xf32> -> vector<2x8x1xf32>
    %360 = vector.broadcast %359 : vector<2x8x1xf32> to vector<2x8x8xf32>
    %361 = arith.mulf %356, %360 : vector<2x8x8xf32>
    "tpu.trace_start"() <{level = 10 : i32, message = "bqk,bkd->bqd"}> : () -> ()
    %cst_102 = arith.constant dense<0.000000e+00> : vector<2x8x8xf32>
    %362 = tpu.matmul %361, %348, %cst_102 {dimension_numbers = #tpu.dot_dimension_numbers<[2], [1], [1], [2], [0, 0, 0, 1, 1, 2], [0], [0]>} : vector<2x8x8xf32>, vector<2x8x8xf32>, vector<2x8x8xf32> -> vector<2x8x8xf32>
    "tpu.trace_stop"() : () -> ()
    %363 = vector.shape_cast %362 : vector<2x8x8xf32> to vector<16x8xf32>
    %364 = arith.truncf %363 : vector<16x8xf32> to vector<16x8xbf16>
    %365 = vector.extract_strided_slice %238 {offsets = [24, 0], sizes = [8, 32], strides = [1, 1]} : vector<32x32xbf16> to vector<8x32xbf16>
    %cst_103 = arith.constant dense<0.000000e+00> : vector<16x32xf32>
    %366 = tpu.matmul %364, %365, %cst_103 {dimension_numbers = #tpu.dot_dimension_numbers<[1], [0], [0], [1], [0, 0, 1, 1], [], []>} : vector<16x8xbf16>, vector<8x32xbf16>, vector<16x32xf32> -> vector<16x32xf32>
    %367 = arith.addf %342, %366 : vector<16x32xf32>
    %368 = vector.broadcast %234 : vector<1x32xf32> to vector<16x32xf32>
    %369 = arith.addf %367, %368 : vector<16x32xf32>
    %370 = arith.addf %369, %227 : vector<16x32xf32>
    %cst_104 = arith.constant dense<0.000000e+00> : vector<16xf32>
    %371 = vector.multi_reduction <add>, %370, %cst_104 [1] : vector<16x32xf32> to vector<16xf32>
    %372 = vector.shape_cast %371 : vector<16xf32> to vector<16x1xf32>
    %cst_105 = arith.constant 3.200000e+01 : f32
    %373 = vector.broadcast %cst_105 : f32 to vector<16x1xf32>
    %374 = arith.divf %372, %373 : vector<16x1xf32>
    %375 = vector.broadcast %374 : vector<16x1xf32> to vector<16x32xf32>
    %376 = arith.subf %370, %375 : vector<16x32xf32>
    %377 = arith.mulf %376, %376 : vector<16x32xf32>
    %cst_106 = arith.constant dense<0.000000e+00> : vector<16xf32>
    %378 = vector.multi_reduction <add>, %377, %cst_106 [1] : vector<16x32xf32> to vector<16xf32>
    %379 = vector.shape_cast %378 : vector<16xf32> to vector<16x1xf32>
    %cst_107 = arith.constant 3.200000e+01 : f32
    %380 = vector.broadcast %cst_107 : f32 to vector<16x1xf32>
    %381 = arith.divf %379, %380 : vector<16x1xf32>
    %382 = vector.broadcast %374 : vector<16x1xf32> to vector<16x32xf32>
    %383 = arith.subf %370, %382 : vector<16x32xf32>
    %cst_108 = arith.constant 9.99999996E-13 : f32
    %384 = vector.broadcast %cst_108 : f32 to vector<16x1xf32>
    %385 = arith.addf %381, %384 : vector<16x1xf32>
    %386 = math.rsqrt %385 : vector<16x1xf32>
    %387 = vector.broadcast %386 : vector<16x1xf32> to vector<16x32xf32>
    %388 = arith.mulf %383, %387 : vector<16x32xf32>
    %389 = vector.broadcast %231 : vector<1x32xf32> to vector<16x32xf32>
    %390 = arith.mulf %388, %389 : vector<16x32xf32>
    %391 = vector.broadcast %232 : vector<1x32xf32> to vector<16x32xf32>
    %392 = arith.addf %390, %391 : vector<16x32xf32>
    %393 = arith.truncf %392 : vector<16x32xf32> to vector<16x32xbf16>
    %cst_109 = arith.constant dense<0.000000e+00> : vector<16x64xf32>
    %394 = tpu.matmul %393, %239, %cst_109 {dimension_numbers = #tpu.dot_dimension_numbers<[1], [0], [0], [1], [0, 0, 1, 1], [], []>} : vector<16x32xbf16>, vector<32x64xbf16>, vector<16x64xf32> -> vector<16x64xf32>
    %395 = vector.broadcast %235 : vector<1x64xf32> to vector<16x64xf32>
    %396 = arith.addf %394, %395 : vector<16x64xf32>
    %cst_110 = arith.constant 5.000000e-01 : f32
    %397 = vector.broadcast %cst_110 : f32 to vector<16x64xf32>
    %398 = arith.mulf %397, %396 : vector<16x64xf32>
    %cst_111 = arith.constant 0.707106769 : f32
    %399 = vector.broadcast %cst_111 : f32 to vector<16x64xf32>
    %400 = arith.mulf %396, %399 : vector<16x64xf32>
    %cst_112 = arith.constant 0.000000e+00 : f32
    %401 = vector.broadcast %cst_112 : f32 to vector<16x64xf32>
    %402 = arith.cmpf oge, %400, %401 : vector<16x64xf32>
    %cst_113 = arith.constant 0.000000e+00 : f32
    %403 = vector.broadcast %cst_113 : f32 to vector<16x64xf32>
    %404 = arith.subf %403, %400 : vector<16x64xf32>
    %405 = arith.select %402, %400, %404 : vector<16x64xi1>, vector<16x64xf32>
    %cst_114 = arith.constant 0.327591091 : f32
    %406 = vector.broadcast %cst_114 : f32 to vector<16x64xf32>
    %407 = arith.mulf %406, %405 : vector<16x64xf32>
    %cst_115 = arith.constant 1.000000e+00 : f32
    %408 = vector.broadcast %cst_115 : f32 to vector<16x64xf32>
    %409 = arith.addf %408, %407 : vector<16x64xf32>
    %cst_116 = arith.constant 1.000000e+00 : f32
    %410 = vector.broadcast %cst_116 : f32 to vector<16x64xf32>
    %411 = arith.divf %410, %409 : vector<16x64xf32>
    %cst_117 = arith.constant 1.06140542 : f32
    %412 = vector.broadcast %cst_117 : f32 to vector<16x64xf32>
    %413 = arith.mulf %412, %411 : vector<16x64xf32>
    %cst_118 = arith.constant -1.45315206 : f32
    %414 = vector.broadcast %cst_118 : f32 to vector<16x64xf32>
    %415 = arith.addf %413, %414 : vector<16x64xf32>
    %416 = arith.mulf %415, %411 : vector<16x64xf32>
    %cst_119 = arith.constant 1.42141378 : f32
    %417 = vector.broadcast %cst_119 : f32 to vector<16x64xf32>
    %418 = arith.addf %416, %417 : vector<16x64xf32>
    %419 = arith.mulf %418, %411 : vector<16x64xf32>
    %cst_120 = arith.constant -0.284496725 : f32
    %420 = vector.broadcast %cst_120 : f32 to vector<16x64xf32>
    %421 = arith.addf %419, %420 : vector<16x64xf32>
    %422 = arith.mulf %421, %411 : vector<16x64xf32>
    %cst_121 = arith.constant 0.254829586 : f32
    %423 = vector.broadcast %cst_121 : f32 to vector<16x64xf32>
    %424 = arith.addf %422, %423 : vector<16x64xf32>
    %425 = arith.mulf %424, %411 : vector<16x64xf32>
    %cst_122 = arith.constant 0.000000e+00 : f32
    %426 = vector.broadcast %cst_122 : f32 to vector<16x64xf32>
    %427 = arith.subf %426, %405 : vector<16x64xf32>
    %428 = arith.mulf %427, %405 : vector<16x64xf32>
    %429 = math.exp %428 : vector<16x64xf32>
    %430 = arith.mulf %425, %429 : vector<16x64xf32>
    %cst_123 = arith.constant 1.000000e+00 : f32
    %431 = vector.broadcast %cst_123 : f32 to vector<16x64xf32>
    %432 = arith.subf %431, %430 : vector<16x64xf32>
    %cst_124 = arith.constant 0.000000e+00 : f32
    %433 = vector.broadcast %cst_124 : f32 to vector<16x64xf32>
    %434 = arith.cmpf oge, %400, %433 : vector<16x64xf32>
    %cst_125 = arith.constant 0.000000e+00 : f32
    %435 = vector.broadcast %cst_125 : f32 to vector<16x64xf32>
    %436 = arith.subf %435, %432 : vector<16x64xf32>
    %437 = arith.select %434, %432, %436 : vector<16x64xi1>, vector<16x64xf32>
    %cst_126 = arith.constant 1.000000e+00 : f32
    %438 = vector.broadcast %cst_126 : f32 to vector<16x64xf32>
    %439 = arith.addf %438, %437 : vector<16x64xf32>
    %440 = arith.mulf %398, %439 : vector<16x64xf32>
    %441 = arith.truncf %440 : vector<16x64xf32> to vector<16x64xbf16>
    %cst_127 = arith.constant dense<0.000000e+00> : vector<16x32xf32>
    %442 = tpu.matmul %441, %240, %cst_127 {dimension_numbers = #tpu.dot_dimension_numbers<[1], [0], [0], [1], [0, 0, 1, 1], [], []>} : vector<16x64xbf16>, vector<64x32xbf16>, vector<16x32xf32> -> vector<16x32xf32>
    %443 = vector.broadcast %236 : vector<1x32xf32> to vector<16x32xf32>
    %444 = arith.addf %442, %443 : vector<16x32xf32>
    %445 = arith.addf %444, %370 : vector<16x32xf32>
    %c256 = arith.constant 256 : index
    %c0_128 = arith.constant 0 : index
    %446 = vector.load %arg3[%c256, %c0_128] : memref<288x128xbf16, #tpu.memory_space<vmem>>, vector<32x16xbf16>
    %c80 = arith.constant 80 : index
    %c0_129 = arith.constant 0 : index
    %447 = vector.load %arg2[%c80, %c0_129] : memref<88x128xf32, #tpu.memory_space<vmem>>, vector<1x16xf32>
    %448 = arith.truncf %445 : vector<16x32xf32> to vector<16x32xbf16>
    %cst_130 = arith.constant dense<0.000000e+00> : vector<16x16xf32>
    %449 = tpu.matmul %448, %446, %cst_130 {dimension_numbers = #tpu.dot_dimension_numbers<[1], [0], [0], [1], [0, 0, 1, 1], [], []>} : vector<16x32xbf16>, vector<32x16xbf16>, vector<16x16xf32> -> vector<16x16xf32>
    %450 = vector.broadcast %447 : vector<1x16xf32> to vector<16x16xf32>
    %451 = arith.addf %449, %450 : vector<16x16xf32>
    %cst_131 = arith.constant dense<0xFF800000> : vector<16xf32>
    %452 = vector.multi_reduction <maximumf>, %451, %cst_131 [1] : vector<16x16xf32> to vector<16xf32>
    %cst_132 = arith.constant 0xFF800000 : f32
    %453 = vector.broadcast %cst_132 : f32 to vector<16xf32>
    %454 = arith.maximumf %453, %452 : vector<16xf32>
    %455 = vector.shape_cast %454 : vector<16xf32> to vector<16x1xf32>
    %456 = vector.broadcast %455 : vector<16x1xf32> to vector<16x16xf32>
    %457 = arith.subf %451, %456 : vector<16x16xf32>
    %458 = math.exp %457 : vector<16x16xf32>
    %cst_133 = arith.constant dense<0.000000e+00> : vector<16xf32>
    %459 = vector.multi_reduction <add>, %458, %cst_133 [1] : vector<16x16xf32> to vector<16xf32>
    %460 = vector.shape_cast %459 : vector<16xf32> to vector<16x1xf32>
    %461 = vector.broadcast %460 : vector<16x1xf32> to vector<16x16xf32>
    %462 = arith.divf %458, %461 : vector<16x16xf32>
    %463 = vector.shape_cast %462 : vector<16x16xf32> to vector<2x8x16xf32>
    %c0_134 = arith.constant 0 : index
    %c0_135 = arith.constant 0 : index
    %c0_136 = arith.constant 0 : index
    %464 = vector.load %arg4[%c0_134, %c0_135, %c0_136] : memref<2x8x16xf32, #tpu.memory_space<vmem>>, vector<2x8x16xf32>
    tpu.vector_store %arg4[%c0_134, %c0_135, %c0_136], %463 {strides = array<i32>} : memref<2x8x16xf32, #tpu.memory_space<vmem>>, vector<2x8x16xf32>,
    return
  }
}

</mosaic_0001>

<llo_original>
// kernel: tpu_custom_call.1
$region0: #{tpu_custom_call.1}
  #allocation0 [shape = 'u32[]', space=smem, size = 0x4, offset = 0x4, fixed_abs, tag = 'smem constant byte address 0x4 - core index']
  #allocation1 [shape = 'u32[144,128]{1,0:T(1,128)}', space=vmem, size = 0x12000, scoped, tag = 'internal scratch']
  %s0 = inlined_call_operand.vmem [shape: s32[16,1], index: 0, kind: input, shape index: {}]
  %s1 = inlined_call_operand.vmem [shape: f32[16,8], index: 1, kind: input, shape index: {}]
  %s2 = inlined_call_operand.hbm [shape: f32[88,128], index: 2, kind: input, shape index: {}]
  %s3 = inlined_call_operand.hbm [shape: bf16[288,128], index: 3, kind: input, shape index: {}]
  %s4 = inlined_call_operand.hbm [shape: f32[2,8,16], index: 4, kind: output, shape index: {}]
  %s5 = sld [smem:[#allocation0]]
  $region34: #{tpu_custom_call.1} parent=0
    _
  %s7 = ssub.s32 1, %s5
  %s8 = scalar_select 0, %s7, %s5
  $region1: #{tpu_custom_call.1} parent=0
    #allocation2 [shape = 'u8[45056]{0}', space=vmem, size = 0xb000, scoped, tag = 'input window, operand 2, single buffered']
    #allocation3 [shape = 's32[1]{0}', space=sflag, size = 0x4, scoped, tag = 'scoped memory for tpu_custom_call.1']
    #allocation4 [shape = 's32[1]{0}', space=sflag, size = 0x4, scoped, tag = 'scoped memory for tpu_custom_call.1']
    #allocation5 [shape = 'u8[73728]{0}', space=vmem, size = 0x12000, scoped, tag = 'input window, operand 3, single buffered']
    #allocation6 [shape = 's32[1]{0}', space=sflag, size = 0x4, scoped, tag = 'scoped memory for tpu_custom_call.1']
    #allocation7 [shape = 'u8[8192]{0}', space=vmem, size = 0x2000, scoped, tag = 'output window, operand 0, single buffered']
    %9 = vsyncpa [#allocation3], 0
    %10 = vsyncpa [#allocation6], 0
    %11 = vsyncpa [#allocation4], 0
    // Predicated region
    $region2: #{tpu_custom_call.1} parent=1 // pred_check
      _
    $region3: #{tpu_custom_call.1} parent=1 // pred_check_branch
      %13 = sbr.rel (0) target = $region5
    $region4: #{tpu_custom_call.1} parent=1 // pred_region
      _
    $region5: #{tpu_custom_call.1} parent=1 // pred_fallthru
      _
    // Predicated region
    $region6: #{tpu_custom_call.1} parent=1 // pred_check
      _
    $region7: #{tpu_custom_call.1} parent=1 // pred_check_branch
      %15 = sbr.rel (0) target = $region9
    $region8: #{tpu_custom_call.1} parent=1 // pred_region
      _
    $region9: #{tpu_custom_call.1} parent=1 // pred_fallthru
      _
    // Predicated region
    $region10: #{tpu_custom_call.1} parent=1 // pred_check
      _
    $region11: #{tpu_custom_call.1} parent=1 // pred_check_branch
      %17 = sbr.rel (0) target = $region13
    $region12: #{tpu_custom_call.1} parent=1 // pred_region
      %s19 = ssub.s32 1408, 1408
      %20 = vsyncadd [#allocation3], %s19
      %s21 = sshll.u32 [#allocation2], 4
      %s22 = int_to_ptr.vmem [resolvable:$true] %s21
      %27 = dma.hbm_to_vmem [thread:$0]  %s2, 1408, %s22, [#allocation3], 128, 128, 8
    $region13: #{tpu_custom_call.1} parent=1 // pred_fallthru
      _
    // Predicated region
    $region14: #{tpu_custom_call.1} parent=1 // pred_check
      _
    $region15: #{tpu_custom_call.1} parent=1 // pred_check_branch
      %29 = sbr.rel (0) target = $region17
    $region16: #{tpu_custom_call.1} parent=1 // pred_region
      %s31 = ssub.s32 2304, 2304
      %32 = vsyncadd [#allocation6], %s31
      %s33 = sshll.u32 [#allocation5], 4
      %s34 = int_to_ptr.vmem [resolvable:$true] %s33
      %39 = dma.hbm_to_vmem [thread:$0]  %s3, 2304, %s34, [#allocation6], 64, 64, 4
    $region17: #{tpu_custom_call.1} parent=1 // pred_fallthru
      _
    // Predicated region
    $region18: #{tpu_custom_call.1} parent=1 // pred_check
      _
    $region19: #{tpu_custom_call.1} parent=1 // pred_check_branch
      %41 = sbr.rel (0) target = $region21
    $region20: #{tpu_custom_call.1} parent=1 // pred_region
      %42 = dma.done [#allocation3], 1408
    $region21: #{tpu_custom_call.1} parent=1 // pred_fallthru
      _
    // Predicated region
    $region22: #{tpu_custom_call.1} parent=1 // pred_check
      _
    $region23: #{tpu_custom_call.1} parent=1 // pred_check_branch
      %44 = sbr.rel (0) target = $region25
    $region24: #{tpu_custom_call.1} parent=1 // pred_region
      %45 = dma.done [#allocation6], 2304
    $region25: #{tpu_custom_call.1} parent=1 // pred_fallthru
      _
    %v47 = vld [vmem:[%s0] sm:$0xff]
    %v48 = vld [vmem:[%s0 + $0x8] sm:$0xff]
    %v49 = vlaneseq
    %v50 = vand.u32 %v49, 127
    %51 = vset.pattern.permute.xlu0 0
    %52 = vperm.xlu0 %51, %v47
    %v53 = vpop.permute.xlu0 %52
    %54 = vset.pattern.permute.xlu0 0
    %55 = vperm.xlu0 %54, %v48
    %v56 = vpop.permute.xlu0 %55
    %vm57 = vcmp.eq.s32.totalorder %v50, %v53
    %vm58 = vcmp.eq.s32.totalorder %v50, %v56
    %v59 = vsel %vm57, 1, 0
    %v60 = vsel %vm58, 1, 0
    %v61 = vcvt.s32.f32 %v59
    %v62 = vcvt.s32.f32 %v60
    %v63 = vld [vmem:[#allocation2] sm:$0xff]
    %v64 = vld [vmem:[#allocation2 + $0x8] sm:$0xff]
    %v65 = vld [vmem:[#allocation2 + $0x10] sm:$0xff]
    %v66 = vld [vmem:[#allocation2 + $0x18] sm:$0xff]
    %v67 = vld [vmem:[#allocation2 + $0x20] sm:$0xff]
    %v68 = vld [vmem:[#allocation2 + $0x28] sm:$0xff]
    %v69 = vld [vmem:[#allocation2 + $0x30] sm:$0xff]
    %v70 = vld [vmem:[#allocation2 + $0x38] sm:$0xff]
    %vm71 = vcmask 523264
    %v73 = vsel %vm71, %v61, 0
    %v76 = vsel %vm71, %v62, 0
    %78 = vmatprep.subr.mxu0 0.0
    %79 = vmatpush1.msra.mxu0 0.0
    %80 = vmatprep.subr.mxu0 0.0
    %81 = vmatpush1.msra.mxu0 0.0
    %82 = vmatprep.subr.mxu0 0.0
    %83 = vmatpush1.msra.mxu0 0.0
    %84 = vmatprep.subr.mxu0 0.0
    %85 = vmatpush1.msra.mxu0 0.0
    %86 = vmatprep.subr.mxu0 0.0
    %87 = vmatpush1.msra.mxu0 0.0
    %88 = vmatprep.subr.mxu0 0.0
    %89 = vmatpush1.msra.mxu0 0.0
    %90 = vmatprep.subr.mxu0 0.0
    %91 = vmatpush1.msra.mxu0 0.0
    %92 = vmatprep.subr.mxu0 0.0
    %93 = vmatpush1.msra.mxu0 0.0
    %94 = vmatprep.subr.mxu0 0.0
    %95 = vmatpush1.msra.mxu0 %v70
    %96 = vmatprep.subr.mxu0 0.0
    %97 = vmatpush1.msra.mxu0 %v69
    %98 = vmatprep.subr.mxu0 0.0
    %99 = vmatpush1.msra.mxu0 %v68
    %100 = vmatprep.subr.mxu0 0.0
    %101 = vmatpush1.msra.mxu0 %v67
    %102 = vmatprep.subr.mxu0 0.0
    %103 = vmatpush1.msra.mxu0 %v66
    %104 = vmatprep.subr.mxu0 0.0
    %105 = vmatpush1.msra.mxu0 %v65
    %106 = vmatprep.subr.mxu0 0.0
    %107 = vmatpush1.msra.mxu0 %v64
    %108 = vmatprep.subr.mxu0 0.0
    %109 = vmatpush1.msra.mxu0 %v63
    %110 = vmatprep.subr.mxu0 0.0
    %111 = vmatpush2.msra.mxu0 0.0
    %112 = vmatprep.subr.mxu0 0.0
    %113 = vmatpush2.msra.mxu0 0.0
    %114 = vmatprep.subr.mxu0 0.0
    %115 = vmatpush2.msra.mxu0 0.0
    %116 = vmatprep.subr.mxu0 0.0
    %117 = vmatpush2.msra.mxu0 0.0
    %118 = vmatprep.subr.mxu0 0.0
    %119 = vmatpush2.msra.mxu0 0.0
    %120 = vmatprep.subr.mxu0 0.0
    %121 = vmatpush2.msra.mxu0 0.0
    %122 = vmatprep.subr.mxu0 0.0
    %123 = vmatpush2.msra.mxu0 0.0
    %124 = vmatprep.subr.mxu0 0.0
    %125 = vmatpush2.msra.mxu0 0.0
    %126 = vmatprep.subr.mxu0 0.0
    %127 = vmatpush2.msra.mxu0 0.0
    %128 = vmatprep.subr.mxu0 0.0
    %129 = vmatpush2.msra.mxu0 0.0
    %130 = vmatprep.subr.mxu0 0.0
    %131 = vmatpush2.msra.mxu0 0.0
    %132 = vmatprep.subr.mxu0 0.0
    %133 = vmatpush2.msra.mxu0 0.0
    %134 = vmatprep.subr.mxu0 0.0
    %135 = vmatpush2.msra.mxu0 0.0
    %136 = vmatprep.subr.mxu0 0.0
    %137 = vmatpush2.msra.mxu0 0.0
    %138 = vmatprep.subr.mxu0 0.0
    %139 = vmatpush2.msra.mxu0 0.0
    %140 = vmatprep.subr.mxu0 0.0
    %141 = vmatpush2.msra.mxu0 0.0
    %142 = vmatprep.mubr.f32.mxu0 0.0
    %143 = vmatmul.mubr.f32.gmra.mxu0 %v73
    %v144 = vpop.f32.mrf.mxu0
    %v145 = vadd.f32 0.0, %v144
    %v146 = vpop.f32.mrf.mxu0
    %147 = vmatprep.mubr.f32.mxu0 0.0
    %148 = vmatmul.mubr.f32.gmra.mxu0 %v76
    %v149 = vpop.f32.mrf.mxu0
    %v150 = vadd.f32 0.0, %v149
    %v151 = vpop.f32.mrf.mxu0
    %152 = vdwg.mxu0
    %v153 = vld [vmem:[%s1] sm:$0xff]
    %v154 = vld [vmem:[%s1 + $0x8] sm:$0xff]
    %157 = vrot.lane.b32.xlu0 %v153, 24
    %v158 = vpop.permute.xlu0 %157
    %159 = vrot.lane.b32.xlu0 %v154, 24
    %v160 = vpop.permute.xlu0 %159
    %vm163 = vcmask 195584
    %v164 = vsel %vm163, %v145, %v158
    %v165 = vsel %vm163, %v150, %v160
    %v166 = vld [vmem:[#allocation2 + $0x40] sm:$0xff]
    %v167 = vld [vmem:[#allocation5] sm:$0xf]
    %v168 = vld [vmem:[#allocation5 + $0x4] sm:$0xf]
    %v169 = vld [vmem:[#allocation5 + $0x8] sm:$0xf]
    %v170 = vld [vmem:[#allocation5 + $0xc] sm:$0xf]
    %v171 = vld [vmem:[#allocation5 + $0x10] sm:$0xf]
    %v172 = vld [vmem:[#allocation5 + $0x14] sm:$0xf]
    %v173 = vld [vmem:[#allocation5 + $0x18] sm:$0xf]
    %v174 = vld [vmem:[#allocation5 + $0x1c] sm:$0xf]
    %v175 = vld [vmem:[#allocation5 + $0x20] sm:$0xf]
    %v176 = vld [vmem:[#allocation5 + $0x24] sm:$0xf]
    %v177 = vld [vmem:[#allocation5 + $0x28] sm:$0xf]
    %v178 = vld [vmem:[#allocation5 + $0x2c] sm:$0xf]
    %v179 = vld [vmem:[#allocation5 + $0x30] sm:$0xf]
    %v180 = vld [vmem:[#allocation5 + $0x34] sm:$0xf]
    %v181 = vld [vmem:[#allocation5 + $0x38] sm:$0xf]
    %v182 = vld [vmem:[#allocation5 + $0x3c] sm:$0xf]
    %vm183 = vcmask 261120
    %v184 = vsel %vm183, %v164, 0.0
    %185 = vadd.xlane.f32.xlu0 %v184
    %v186 = vpop.xlane.xlu0 %185
    %v187 = vsel %vm183, %v165, 0.0
    %188 = vadd.xlane.f32.xlu0 %v187
    %v189 = vpop.xlane.xlu0 %188
    %v190 = vrcp.pop 32.0
    %v191 = vmul.f32 %v186, %v190
    %v192 = vmul.f32 %v189, %v190
    %v193 = vsub.f32 %v164, %v191
    %v194 = vsub.f32 %v165, %v192
    %v195 = vmul.f32 %v193, %v193
    %v196 = vmul.f32 %v194, %v194
    %v197 = vsel %vm183, %v195, 0.0
    %198 = vadd.xlane.f32.xlu0 %v197
    %v199 = vpop.xlane.xlu0 %198
    %v200 = vsel %vm183, %v196, 0.0
    %201 = vadd.xlane.f32.xlu0 %v200
    %v202 = vpop.xlane.xlu0 %201
    %v203 = vmul.f32 %v199, %v190
    %v204 = vmul.f32 %v202, %v190
    %v205 = vadd.f32 %v203, 1e-12
    %v206 = vadd.f32 %v204, 1e-12
    %v207 = vrsqrt.pop %v205
    %v208 = vrsqrt.pop %v206
    %v209 = vmul.f32 %v193, %v207
    %v210 = vmul.f32 %v194, %v208
    %v211 = vlaneseq
    %v212 = vshrl.u32 %v211, 7
    %v213 = vsub.s32 0, %v212
    %v214 = vrot.slane %v166, %v213
    %v215 = vmul.f32 %v209, %v214
    %v216 = vmul.f32 %v210, %v214
    %v217 = vlaneseq
    %v218 = vshrl.u32 %v217, 7
    %v219 = vsub.s32 1, %v218
    %v220 = vrot.slane %v166, %v219
    %v221 = vadd.f32 %v215, %v220
    %v222 = vadd.f32 %v216, %v220
    %v223 = vpack.c.bf16 %v222, %v221
    %v224 = vlaneseq
    %v225 = vshrl.u32 %v224, 7
    %v226 = vsub.s32 4, %v225
    %v227 = vrot.slane %v166, %v226
    %v232 = vunpack.c.l.b16 %v167
    %v233 = vunpack.c.l.b16 %v168
    %v234 = vunpack.c.l.b16 %v169
    %v235 = vunpack.c.l.b16 %v170
    %v236 = vpack.c.b16 %v233, %v232
    %v237 = vpack.c.b16 %v235, %v234
    %v241 = vsel %vm183, %v223, 0
    %243 = vmatprep.subr.bf16.mxu0 0
    %244 = vmatpush1.bf16.msra.mxu0 0
    %245 = vmatprep.subr.bf16.mxu0 0
    %246 = vmatpush1.bf16.msra.mxu0 0
    %247 = vmatprep.subr.bf16.mxu0 0
    %248 = vmatpush1.bf16.msra.mxu0 0
    %249 = vmatprep.subr.bf16.mxu0 0
    %250 = vmatpush1.bf16.msra.mxu0 0
    %251 = vmatprep.subr.bf16.mxu0 0
    %252 = vmatpush1.bf16.msra.mxu0 0
    %253 = vmatprep.subr.bf16.mxu0 0
    %254 = vmatpush1.bf16.msra.mxu0 0
    %255 = vmatprep.subr.bf16.mxu0 0
    %256 = vmatpush1.bf16.msra.mxu0 %v237
    %257 = vmatprep.subr.bf16.mxu0 0
    %258 = vmatpush1.bf16.msra.mxu0 %v236
    %259 = vmatprep.subr.bf16.mxu0 0
    %260 = vmatpush2.bf16.msra.mxu0 0
    %261 = vmatprep.subr.bf16.mxu0 0
    %262 = vmatpush2.bf16.msra.mxu0 0
    %263 = vmatprep.subr.bf16.mxu0 0
    %264 = vmatpush2.bf16.msra.mxu0 0
    %265 = vmatprep.subr.bf16.mxu0 0
    %266 = vmatpush2.bf16.msra.mxu0 0
    %267 = vmatprep.subr.bf16.mxu0 0
    %268 = vmatpush2.bf16.msra.mxu0 0
    %269 = vmatprep.subr.bf16.mxu0 0
    %270 = vmatpush2.bf16.msra.mxu0 0
    %271 = vmatprep.subr.bf16.mxu0 0
    %272 = vmatpush2.bf16.msra.mxu0 0
    %273 = vmatprep.subr.bf16.mxu0 0
    %274 = vmatpush2.bf16.msra.mxu0 0
    %275 = vmatprep.mubr.bf16.mxu0 0
    %276 = vmatmul.mubr.bf16.gmra.mxu0 %v241
    %v277 = vpop.f32.mrf.mxu0
    %v278 = vadd.f32 %v227, %v277
    %v279 = vpop.f32.mrf.mxu0
    %v280 = vpop.f32.mrf.mxu0
    %v281 = vadd.f32 %v227, %v280
    %v282 = vpop.f32.mrf.mxu0
    %283 = vdwg.mxu0
    %285 = vrot.lane.b32.xlu0 %v278, 96
    %v286 = vpop.permute.xlu0 %285
    %vm287 = vcmask 64512
    %v288 = vsel %vm287, %v278, 0
    %v290 = vsel %vm287, %v286, 0
    %292 = vmatprep.subr.mxu0 0.0
    %293 = vmatpush1.xpose.msra.mxu0 0.0
    %294 = vmatprep.subr.mxu0 0.0
    %295 = vmatpush1.xpose.msra.mxu0 0.0
    %296 = vmatprep.subr.mxu0 0.0
    %297 = vmatpush1.xpose.msra.mxu0 0.0
    %298 = vmatprep.subr.mxu0 0.0
    %299 = vmatpush1.xpose.msra.mxu0 0.0
    %300 = vmatprep.subr.mxu0 0.0
    %301 = vmatpush1.xpose.msra.mxu0 0.0
    %302 = vmatprep.subr.mxu0 0.0
    %303 = vmatpush1.xpose.msra.mxu0 0.0
    %304 = vmatprep.subr.mxu0 0.0
    %305 = vmatpush1.xpose.msra.mxu0 0.0
    %306 = vmatprep.subr.mxu0 0.0
    %307 = vmatpush1.xpose.msra.mxu0 0.0
    %308 = vmatprep.subr.mxu0 0.0
    %309 = vmatpush1.xpose.msra.mxu0 0.0
    %310 = vmatprep.subr.mxu0 0.0
    %311 = vmatpush1.xpose.msra.mxu0 0.0
    %312 = vmatprep.subr.mxu0 0.0
    %313 = vmatpush1.xpose.msra.mxu0 0.0
    %314 = vmatprep.subr.mxu0 0.0
    %315 = vmatpush1.xpose.msra.mxu0 0.0
    %316 = vmatprep.subr.mxu0 0.0
    %317 = vmatpush1.xpose.msra.mxu0 0.0
    %318 = vmatprep.subr.mxu0 0.0
    %319 = vmatpush1.xpose.msra.mxu0 0.0
    %320 = vmatprep.subr.mxu0 0.0
    %321 = vmatpush1.xpose.msra.mxu0 0.0
    %322 = vmatprep.subr.mxu0 0.0
    %323 = vmatpush1.xpose.msra.mxu0 %v290
    %324 = vmatprep.subr.mxu0 0.0
    %325 = vmatpush2.xpose.msra.mxu0 0.0
    %326 = vmatprep.subr.mxu0 0.0
    %327 = vmatpush2.xpose.msra.mxu0 0.0
    %328 = vmatprep.subr.mxu0 0.0
    %329 = vmatpush2.xpose.msra.mxu0 0.0
    %330 = vmatprep.subr.mxu0 0.0
    %331 = vmatpush2.xpose.msra.mxu0 0.0
    %332 = vmatprep.subr.mxu0 0.0
    %333 = vmatpush2.xpose.msra.mxu0 0.0
    %334 = vmatprep.subr.mxu0 0.0
    %335 = vmatpush2.xpose.msra.mxu0 0.0
    %336 = vmatprep.subr.mxu0 0.0
    %337 = vmatpush2.xpose.msra.mxu0 0.0
    %338 = vmatprep.subr.mxu0 0.0
    %339 = vmatpush2.xpose.msra.mxu0 0.0
    %340 = vmatprep.subr.mxu0 0.0
    %341 = vmatpush2.xpose.msra.mxu0 0.0
    %342 = vmatprep.subr.mxu0 0.0
    %343 = vmatpush2.xpose.msra.mxu0 0.0
    %344 = vmatprep.subr.mxu0 0.0
    %345 = vmatpush2.xpose.msra.mxu0 0.0
    %346 = vmatprep.subr.mxu0 0.0
    %347 = vmatpush2.xpose.msra.mxu0 0.0
    %348 = vmatprep.subr.mxu0 0.0
    %349 = vmatpush2.xpose.msra.mxu0 0.0
    %350 = vmatprep.subr.mxu0 0.0
    %351 = vmatpush2.xpose.msra.mxu0 0.0
    %352 = vmatprep.subr.mxu0 0.0
    %353 = vmatpush2.xpose.msra.mxu0 0.0
    %354 = vmatprep.subr.mxu0 0.0
    %355 = vmatpush2.xpose.msra.mxu0 0.0
    %356 = vmatprep.mubr.f32.mxu0 0.0
    %357 = vmatmul.mubr.f32.gmra.mxu0 %v288
    %v358 = vpop.f32.mrf.mxu0
    %v359 = vadd.f32 0.0, %v358
    %v360 = vpop.f32.mrf.mxu0
    %361 = vdwg.mxu0
    %363 = vrot.lane.b32.xlu0 %v281, 96
    %v364 = vpop.permute.xlu0 %363
    %v365 = vsel %vm287, %v281, 0
    %v367 = vsel %vm287, %v364, 0
    %369 = vmatprep.subr.mxu0 0.0
    %370 = vmatpush1.xpose.msra.mxu0 0.0
    %371 = vmatprep.subr.mxu0 0.0
    %372 = vmatpush1.xpose.msra.mxu0 0.0
    %373 = vmatprep.subr.mxu0 0.0
    %374 = vmatpush1.xpose.msra.mxu0 0.0
    %375 = vmatprep.subr.mxu0 0.0
    %376 = vmatpush1.xpose.msra.mxu0 0.0
    %377 = vmatprep.subr.mxu0 0.0
    %378 = vmatpush1.xpose.msra.mxu0 0.0
    %379 = vmatprep.subr.mxu0 0.0
    %380 = vmatpush1.xpose.msra.mxu0 0.0
    %381 = vmatprep.subr.mxu0 0.0
    %382 = vmatpush1.xpose.msra.mxu0 0.0
    %383 = vmatprep.subr.mxu0 0.0
    %384 = vmatpush1.xpose.msra.mxu0 0.0
    %385 = vmatprep.subr.mxu0 0.0
    %386 = vmatpush1.xpose.msra.mxu0 0.0
    %387 = vmatprep.subr.mxu0 0.0
    %388 = vmatpush1.xpose.msra.mxu0 0.0
    %389 = vmatprep.subr.mxu0 0.0
    %390 = vmatpush1.xpose.msra.mxu0 0.0
    %391 = vmatprep.subr.mxu0 0.0
    %392 = vmatpush1.xpose.msra.mxu0 0.0
    %393 = vmatprep.subr.mxu0 0.0
    %394 = vmatpush1.xpose.msra.mxu0 0.0
    %395 = vmatprep.subr.mxu0 0.0
    %396 = vmatpush1.xpose.msra.mxu0 0.0
    %397 = vmatprep.subr.mxu0 0.0
    %398 = vmatpush1.xpose.msra.mxu0 0.0
    %399 = vmatprep.subr.mxu0 0.0
    %400 = vmatpush1.xpose.msra.mxu0 %v367
    %401 = vmatprep.subr.mxu0 0.0
    %402 = vmatpush2.xpose.msra.mxu0 0.0
    %403 = vmatprep.subr.mxu0 0.0
    %404 = vmatpush2.xpose.msra.mxu0 0.0
    %405 = vmatprep.subr.mxu0 0.0
    %406 = vmatpush2.xpose.msra.mxu0 0.0
    %407 = vmatprep.subr.mxu0 0.0
    %408 = vmatpush2.xpose.msra.mxu0 0.0
    %409 = vmatprep.subr.mxu0 0.0
    %410 = vmatpush2.xpose.msra.mxu0 0.0
    %411 = vmatprep.subr.mxu0 0.0
    %412 = vmatpush2.xpose.msra.mxu0 0.0
    %413 = vmatprep.subr.mxu0 0.0
    %414 = vmatpush2.xpose.msra.mxu0 0.0
    %415 = vmatprep.subr.mxu0 0.0
    %416 = vmatpush2.xpose.msra.mxu0 0.0
    %417 = vmatprep.subr.mxu0 0.0
    %418 = vmatpush2.xpose.msra.mxu0 0.0
    %419 = vmatprep.subr.mxu0 0.0
    %420 = vmatpush2.xpose.msra.mxu0 0.0
    %421 = vmatprep.subr.mxu0 0.0
    %422 = vmatpush2.xpose.msra.mxu0 0.0
    %423 = vmatprep.subr.mxu0 0.0
    %424 = vmatpush2.xpose.msra.mxu0 0.0
    %425 = vmatprep.subr.mxu0 0.0
    %426 = vmatpush2.xpose.msra.mxu0 0.0
    %427 = vmatprep.subr.mxu0 0.0
    %428 = vmatpush2.xpose.msra.mxu0 0.0
    %429 = vmatprep.subr.mxu0 0.0
    %430 = vmatpush2.xpose.msra.mxu0 0.0
    %431 = vmatprep.subr.mxu0 0.0
    %432 = vmatpush2.xpose.msra.mxu0 0.0
    %433 = vmatprep.mubr.f32.mxu0 0.0
    %434 = vmatmul.mubr.f32.gmra.mxu0 %v365
    %v435 = vpop.f32.mrf.mxu0
    %v436 = vadd.f32 0.0, %v435
    %v437 = vpop.f32.mrf.mxu0
    %438 = vdwg.mxu0
    %v439 = vmul.f32 %v359, 0.35355338
    %v440 = vmul.f32 %v436, 0.35355338
    %v441 = vsel %vm287, %v439, -inf
    %442 = vmax.xlane.f32.xlu0 %v441
    %v443 = vpop.xlane.xlu0 %442
    %v444 = vsel %vm287, %v440, -inf
    %445 = vmax.xlane.f32.xlu0 %v444
    %v446 = vpop.xlane.xlu0 %445
    %v447 = vsub.f32 %v439, %v443
    %v448 = vsub.f32 %v440, %v446
    %v449 = vmul.f32 %v447, 1.442695
    %v450 = vpow.pop %v449
    %v451 = vmul.f32 %v448, 1.442695
    %v452 = vpow.pop %v451
    %v453 = vsel %vm287, %v450, 0.0
    %454 = vadd.xlane.f32.xlu0 %v453
    %v455 = vpop.xlane.xlu0 %454
    %v456 = vsel %vm287, %v452, 0.0
    %457 = vadd.xlane.f32.xlu0 %v456
    %v458 = vpop.xlane.xlu0 %457
    %v459 = vrcp.pop %v455
    %v460 = vrcp.pop %v458
    %v461 = vmul.f32 %v450, %v459
    %v462 = vmul.f32 %v452, %v460
    %463 = vrot.lane.b32.xlu0 %v278, 64
    %v464 = vpop.permute.xlu0 %463
    %v467 = vsel %vm287, %v461, 0
    %469 = vmatprep.subr.mxu0 0.0
    %470 = vmatpush1.msra.mxu0 0.0
    %471 = vmatprep.subr.mxu0 0.0
    %472 = vmatpush1.msra.mxu0 0.0
    %473 = vmatprep.subr.mxu0 0.0
    %474 = vmatpush1.msra.mxu0 0.0
    %475 = vmatprep.subr.mxu0 0.0
    %476 = vmatpush1.msra.mxu0 0.0
    %477 = vmatprep.subr.mxu0 0.0
    %478 = vmatpush1.msra.mxu0 0.0
    %479 = vmatprep.subr.mxu0 0.0
    %480 = vmatpush1.msra.mxu0 0.0
    %481 = vmatprep.subr.mxu0 0.0
    %482 = vmatpush1.msra.mxu0 0.0
    %483 = vmatprep.subr.mxu0 0.0
    %484 = vmatpush1.msra.mxu0 0.0
    %485 = vmatprep.subr.mxu0 0.0
    %486 = vmatpush1.msra.mxu0 0.0
    %487 = vmatprep.subr.mxu0 0.0
    %488 = vmatpush1.msra.mxu0 0.0
    %489 = vmatprep.subr.mxu0 0.0
    %490 = vmatpush1.msra.mxu0 0.0
    %491 = vmatprep.subr.mxu0 0.0
    %492 = vmatpush1.msra.mxu0 0.0
    %493 = vmatprep.subr.mxu0 0.0
    %494 = vmatpush1.msra.mxu0 0.0
    %495 = vmatprep.subr.mxu0 0.0
    %496 = vmatpush1.msra.mxu0 0.0
    %497 = vmatprep.subr.mxu0 0.0
    %498 = vmatpush1.msra.mxu0 0.0
    %499 = vmatprep.subr.mxu0 0.0
    %500 = vmatpush1.msra.mxu0 %v464
    %501 = vmatprep.subr.mxu0 0.0
    %502 = vmatpush2.msra.mxu0 0.0
    %503 = vmatprep.subr.mxu0 0.0
    %504 = vmatpush2.msra.mxu0 0.0
    %505 = vmatprep.subr.mxu0 0.0
    %506 = vmatpush2.msra.mxu0 0.0
    %507 = vmatprep.subr.mxu0 0.0
    %508 = vmatpush2.msra.mxu0 0.0
    %509 = vmatprep.subr.mxu0 0.0
    %510 = vmatpush2.msra.mxu0 0.0
    %511 = vmatprep.subr.mxu0 0.0
    %512 = vmatpush2.msra.mxu0 0.0
    %513 = vmatprep.subr.mxu0 0.0
    %514 = vmatpush2.msra.mxu0 0.0
    %515 = vmatprep.subr.mxu0 0.0
    %516 = vmatpush2.msra.mxu0 0.0
    %517 = vmatprep.subr.mxu0 0.0
    %518 = vmatpush2.msra.mxu0 0.0
    %519 = vmatprep.subr.mxu0 0.0
    %520 = vmatpush2.msra.mxu0 0.0
    %521 = vmatprep.subr.mxu0 0.0
    %522 = vmatpush2.msra.mxu0 0.0
    %523 = vmatprep.subr.mxu0 0.0
    %524 = vmatpush2.msra.mxu0 0.0
    %525 = vmatprep.subr.mxu0 0.0
    %526 = vmatpush2.msra.mxu0 0.0
    %527 = vmatprep.subr.mxu0 0.0
    %528 = vmatpush2.msra.mxu0 0.0
    %529 = vmatprep.subr.mxu0 0.0
    %530 = vmatpush2.msra.mxu0 0.0
    %531 = vmatprep.subr.mxu0 0.0
    %532 = vmatpush2.msra.mxu0 0.0
    %533 = vmatprep.mubr.f32.mxu0 0.0
    %534 = vmatmul.mubr.f32.gmra.mxu0 %v467
    %v535 = vpop.f32.mrf.mxu0
    %v536 = vadd.f32 0.0, %v535
    %v537 = vpop.f32.mrf.mxu0
    %538 = vdwg.mxu0
    %539 = vrot.lane.b32.xlu0 %v281, 64
    %v540 = vpop.permute.xlu0 %539
    %v543 = vsel %vm287, %v462, 0
    %545 = vmatprep.subr.mxu0 0.0
    %546 = vmatpush1.msra.mxu0 0.0
    %547 = vmatprep.subr.mxu0 0.0
    %548 = vmatpush1.msra.mxu0 0.0
    %549 = vmatprep.subr.mxu0 0.0
    %550 = vmatpush1.msra.mxu0 0.0
    %551 = vmatprep.subr.mxu0 0.0
    %552 = vmatpush1.msra.mxu0 0.0
    %553 = vmatprep.subr.mxu0 0.0
    %554 = vmatpush1.msra.mxu0 0.0
    %555 = vmatprep.subr.mxu0 0.0
    %556 = vmatpush1.msra.mxu0 0.0
    %557 = vmatprep.subr.mxu0 0.0
    %558 = vmatpush1.msra.mxu0 0.0
    %559 = vmatprep.subr.mxu0 0.0
    %560 = vmatpush1.msra.mxu0 0.0
    %561 = vmatprep.subr.mxu0 0.0
    %562 = vmatpush1.msra.mxu0 0.0
    %563 = vmatprep.subr.mxu0 0.0
    %564 = vmatpush1.msra.mxu0 0.0
    %565 = vmatprep.subr.mxu0 0.0
    %566 = vmatpush1.msra.mxu0 0.0
    %567 = vmatprep.subr.mxu0 0.0
    %568 = vmatpush1.msra.mxu0 0.0
    %569 = vmatprep.subr.mxu0 0.0
    %570 = vmatpush1.msra.mxu0 0.0
    %571 = vmatprep.subr.mxu0 0.0
    %572 = vmatpush1.msra.mxu0 0.0
    %573 = vmatprep.subr.mxu0 0.0
    %574 = vmatpush1.msra.mxu0 0.0
    %575 = vmatprep.subr.mxu0 0.0
    %576 = vmatpush1.msra.mxu0 %v540
    %577 = vmatprep.subr.mxu0 0.0
    %578 = vmatpush2.msra.mxu0 0.0
    %579 = vmatprep.subr.mxu0 0.0
    %580 = vmatpush2.msra.mxu0 0.0
    %581 = vmatprep.subr.mxu0 0.0
    %582 = vmatpush2.msra.mxu0 0.0
    %583 = vmatprep.subr.mxu0 0.0
    %584 = vmatpush2.msra.mxu0 0.0
    %585 = vmatprep.subr.mxu0 0.0
    %586 = vmatpush2.msra.mxu0 0.0
    %587 = vmatprep.subr.mxu0 0.0
    %588 = vmatpush2.msra.mxu0 0.0
    %589 = vmatprep.subr.mxu0 0.0
    %590 = vmatpush2.msra.mxu0 0.0
    %591 = vmatprep.subr.mxu0 0.0
    %592 = vmatpush2.msra.mxu0 0.0
    %593 = vmatprep.subr.mxu0 0.0
    %594 = vmatpush2.msra.mxu0 0.0
    %595 = vmatprep.subr.mxu0 0.0
    %596 = vmatpush2.msra.mxu0 0.0
    %597 = vmatprep.subr.mxu0 0.0
    %598 = vmatpush2.msra.mxu0 0.0
    %599 = vmatprep.subr.mxu0 0.0
    %600 = vmatpush2.msra.mxu0 0.0
    %601 = vmatprep.subr.mxu0 0.0
    %602 = vmatpush2.msra.mxu0 0.0
    %603 = vmatprep.subr.mxu0 0.0
    %604 = vmatpush2.msra.mxu0 0.0
    %605 = vmatprep.subr.mxu0 0.0
    %606 = vmatpush2.msra.mxu0 0.0
    %607 = vmatprep.subr.mxu0 0.0
    %608 = vmatpush2.msra.mxu0 0.0
    %609 = vmatprep.mubr.f32.mxu0 0.0
    %610 = vmatmul.mubr.f32.gmra.mxu0 %v543
    %v611 = vpop.f32.mrf.mxu0
    %v612 = vadd.f32 0.0, %v611
    %v613 = vpop.f32.mrf.mxu0
    %614 = vdwg.mxu0
    %v615 = vpack.c.bf16 %v612, %v536
    %616 = vrot.lane.b32.xlu0 %v278, 120
    %v617 = vpop.permute.xlu0 %616
    %618 = vrot.lane.b32.xlu0 %v278, 88
    %v619 = vpop.permute.xlu0 %618
    %v620 = vsel %vm287, %v617, 0
    %v622 = vsel %vm287, %v619, 0
    %624 = vmatprep.subr.mxu0 0.0
    %625 = vmatpush1.xpose.msra.mxu0 0.0
    %626 = vmatprep.subr.mxu0 0.0
    %627 = vmatpush1.xpose.msra.mxu0 0.0
    %628 = vmatprep.subr.mxu0 0.0
    %629 = vmatpush1.xpose.msra.mxu0 0.0
    %630 = vmatprep.subr.mxu0 0.0
    %631 = vmatpush1.xpose.msra.mxu0 0.0
    %632 = vmatprep.subr.mxu0 0.0
    %633 = vmatpush1.xpose.msra.mxu0 0.0
    %634 = vmatprep.subr.mxu0 0.0
    %635 = vmatpush1.xpose.msra.mxu0 0.0
    %636 = vmatprep.subr.mxu0 0.0
    %637 = vmatpush1.xpose.msra.mxu0 0.0
    %638 = vmatprep.subr.mxu0 0.0
    %639 = vmatpush1.xpose.msra.mxu0 0.0
    %640 = vmatprep.subr.mxu0 0.0
    %641 = vmatpush1.xpose.msra.mxu0 0.0
    %642 = vmatprep.subr.mxu0 0.0
    %643 = vmatpush1.xpose.msra.mxu0 0.0
    %644 = vmatprep.subr.mxu0 0.0
    %645 = vmatpush1.xpose.msra.mxu0 0.0
    %646 = vmatprep.subr.mxu0 0.0
    %647 = vmatpush1.xpose.msra.mxu0 0.0
    %648 = vmatprep.subr.mxu0 0.0
    %649 = vmatpush1.xpose.msra.mxu0 0.0
    %650 = vmatprep.subr.mxu0 0.0
    %651 = vmatpush1.xpose.msra.mxu0 0.0
    %652 = vmatprep.subr.mxu0 0.0
    %653 = vmatpush1.xpose.msra.mxu0 0.0
    %654 = vmatprep.subr.mxu0 0.0
    %655 = vmatpush1.xpose.msra.mxu0 %v622
    %656 = vmatprep.subr.mxu0 0.0
    %657 = vmatpush2.xpose.msra.mxu0 0.0
    %658 = vmatprep.subr.mxu0 0.0
    %659 = vmatpush2.xpose.msra.mxu0 0.0
    %660 = vmatprep.subr.mxu0 0.0
    %661 = vmatpush2.xpose.msra.mxu0 0.0
    %662 = vmatprep.subr.mxu0 0.0
    %663 = vmatpush2.xpose.msra.mxu0 0.0
    %664 = vmatprep.subr.mxu0 0.0
    %665 = vmatpush2.xpose.msra.mxu0 0.0
    %666 = vmatprep.subr.mxu0 0.0
    %667 = vmatpush2.xpose.msra.mxu0 0.0
    %668 = vmatprep.subr.mxu0 0.0
    %669 = vmatpush2.xpose.msra.mxu0 0.0
    %670 = vmatprep.subr.mxu0 0.0
    %671 = vmatpush2.xpose.msra.mxu0 0.0
    %672 = vmatprep.subr.mxu0 0.0
    %673 = vmatpush2.xpose.msra.mxu0 0.0
    %674 = vmatprep.subr.mxu0 0.0
    %675 = vmatpush2.xpose.msra.mxu0 0.0
    %676 = vmatprep.subr.mxu0 0.0
    %677 = vmatpush2.xpose.msra.mxu0 0.0
    %678 = vmatprep.subr.mxu0 0.0
    %679 = vmatpush2.xpose.msra.mxu0 0.0
    %680 = vmatprep.subr.mxu0 0.0
    %681 = vmatpush2.xpose.msra.mxu0 0.0
    %682 = vmatprep.subr.mxu0 0.0
    %683 = vmatpush2.xpose.msra.mxu0 0.0
    %684 = vmatprep.subr.mxu0 0.0
    %685 = vmatpush2.xpose.msra.mxu0 0.0
    %686 = vmatprep.subr.mxu0 0.0
    %687 = vmatpush2.xpose.msra.mxu0 0.0
    %688 = vmatprep.mubr.f32.mxu0 0.0
    %689 = vmatmul.mubr.f32.gmra.mxu0 %v620
    %v690 = vpop.f32.mrf.mxu0
    %v691 = vadd.f32 0.0, %v690
    %v692 = vpop.f32.mrf.mxu0
    %693 = vdwg.mxu0
    %694 = vrot.lane.b32.xlu0 %v281, 120
    %v695 = vpop.permute.xlu0 %694
    %696 = vrot.lane.b32.xlu0 %v281, 88
    %v697 = vpop.permute.xlu0 %696
    %v698 = vsel %vm287, %v695, 0
    %v700 = vsel %vm287, %v697, 0
    %702 = vmatprep.subr.mxu0 0.0
    %703 = vmatpush1.xpose.msra.mxu0 0.0
    %704 = vmatprep.subr.mxu0 0.0
    %705 = vmatpush1.xpose.msra.mxu0 0.0
    %706 = vmatprep.subr.mxu0 0.0
    %707 = vmatpush1.xpose.msra.mxu0 0.0
    %708 = vmatprep.subr.mxu0 0.0
    %709 = vmatpush1.xpose.msra.mxu0 0.0
    %710 = vmatprep.subr.mxu0 0.0
    %711 = vmatpush1.xpose.msra.mxu0 0.0
    %712 = vmatprep.subr.mxu0 0.0
    %713 = vmatpush1.xpose.msra.mxu0 0.0
    %714 = vmatprep.subr.mxu0 0.0
    %715 = vmatpush1.xpose.msra.mxu0 0.0
    %716 = vmatprep.subr.mxu0 0.0
    %717 = vmatpush1.xpose.msra.mxu0 0.0
    %718 = vmatprep.subr.mxu0 0.0
    %719 = vmatpush1.xpose.msra.mxu0 0.0
    %720 = vmatprep.subr.mxu0 0.0
    %721 = vmatpush1.xpose.msra.mxu0 0.0
    %722 = vmatprep.subr.mxu0 0.0
    %723 = vmatpush1.xpose.msra.mxu0 0.0
    %724 = vmatprep.subr.mxu0 0.0
    %725 = vmatpush1.xpose.msra.mxu0 0.0
    %726 = vmatprep.subr.mxu0 0.0
    %727 = vmatpush1.xpose.msra.mxu0 0.0
    %728 = vmatprep.subr.mxu0 0.0
    %729 = vmatpush1.xpose.msra.mxu0 0.0
    %730 = vmatprep.subr.mxu0 0.0
    %731 = vmatpush1.xpose.msra.mxu0 0.0
    %732 = vmatprep.subr.mxu0 0.0
    %733 = vmatpush1.xpose.msra.mxu0 %v700
    %734 = vmatprep.subr.mxu0 0.0
    %735 = vmatpush2.xpose.msra.mxu0 0.0
    %736 = vmatprep.subr.mxu0 0.0
    %737 = vmatpush2.xpose.msra.mxu0 0.0
    %738 = vmatprep.subr.mxu0 0.0
    %739 = vmatpush2.xpose.msra.mxu0 0.0
    %740 = vmatprep.subr.mxu0 0.0
    %741 = vmatpush2.xpose.msra.mxu0 0.0
    %742 = vmatprep.subr.mxu0 0.0
    %743 = vmatpush2.xpose.msra.mxu0 0.0
    %744 = vmatprep.subr.mxu0 0.0
    %745 = vmatpush2.xpose.msra.mxu0 0.0
    %746 = vmatprep.subr.mxu0 0.0
    %747 = vmatpush2.xpose.msra.mxu0 0.0
    %748 = vmatprep.subr.mxu0 0.0
    %749 = vmatpush2.xpose.msra.mxu0 0.0
    %750 = vmatprep.subr.mxu0 0.0
    %751 = vmatpush2.xpose.msra.mxu0 0.0
    %752 = vmatprep.subr.mxu0 0.0
    %753 = vmatpush2.xpose.msra.mxu0 0.0
    %754 = vmatprep.subr.mxu0 0.0
    %755 = vmatpush2.xpose.msra.mxu0 0.0
    %756 = vmatprep.subr.mxu0 0.0
    %757 = vmatpush2.xpose.msra.mxu0 0.0
    %758 = vmatprep.subr.mxu0 0.0
    %759 = vmatpush2.xpose.msra.mxu0 0.0
    %760 = vmatprep.subr.mxu0 0.0
    %761 = vmatpush2.xpose.msra.mxu0 0.0
    %762 = vmatprep.subr.mxu0 0.0
    %763 = vmatpush2.xpose.msra.mxu0 0.0
    %764 = vmatprep.subr.mxu0 0.0
    %765 = vmatpush2.xpose.msra.mxu0 0.0
    %766 = vmatprep.mubr.f32.mxu0 0.0
    %767 = vmatmul.mubr.f32.gmra.mxu0 %v698
    %v768 = vpop.f32.mrf.mxu0
    %v769 = vadd.f32 0.0, %v768
    %v770 = vpop.f32.mrf.mxu0
    %771 = vdwg.mxu0
    %v772 = vmul.f32 %v691, 0.35355338
    %v773 = vmul.f32 %v769, 0.35355338
    %v774 = vsel %vm287, %v772, -inf
    %775 = vmax.xlane.f32.xlu0 %v774
    %v776 = vpop.xlane.xlu0 %775
    %v777 = vsel %vm287, %v773, -inf
    %778 = vmax.xlane.f32.xlu0 %v777
    %v779 = vpop.xlane.xlu0 %778
    %v780 = vsub.f32 %v772, %v776
    %v781 = vsub.f32 %v773, %v779
    %v782 = vmul.f32 %v780, 1.442695
    %v783 = vpow.pop %v782
    %v784 = vmul.f32 %v781, 1.442695
    %v785 = vpow.pop %v784
    %v786 = vsel %vm287, %v783, 0.0
    %787 = vadd.xlane.f32.xlu0 %v786
    %v788 = vpop.xlane.xlu0 %787
    %v789 = vsel %vm287, %v785, 0.0
    %790 = vadd.xlane.f32.xlu0 %v789
    %v791 = vpop.xlane.xlu0 %790
    %v792 = vrcp.pop %v788
    %v793 = vrcp.pop %v791
    %v794 = vmul.f32 %v783, %v792
    %v795 = vmul.f32 %v785, %v793
    %796 = vrot.lane.b32.xlu0 %v278, 56
    %v797 = vpop.permute.xlu0 %796
    %v800 = vsel %vm287, %v794, 0
    %802 = vmatprep.subr.mxu0 0.0
    %803 = vmatpush1.msra.mxu0 0.0
    %804 = vmatprep.subr.mxu0 0.0
    %805 = vmatpush1.msra.mxu0 0.0
    %806 = vmatprep.subr.mxu0 0.0
    %807 = vmatpush1.msra.mxu0 0.0
    %808 = vmatprep.subr.mxu0 0.0
    %809 = vmatpush1.msra.mxu0 0.0
    %810 = vmatprep.subr.mxu0 0.0
    %811 = vmatpush1.msra.mxu0 0.0
    %812 = vmatprep.subr.mxu0 0.0
    %813 = vmatpush1.msra.mxu0 0.0
    %814 = vmatprep.subr.mxu0 0.0
    %815 = vmatpush1.msra.mxu0 0.0
    %816 = vmatprep.subr.mxu0 0.0
    %817 = vmatpush1.msra.mxu0 0.0
    %818 = vmatprep.subr.mxu0 0.0
    %819 = vmatpush1.msra.mxu0 0.0
    %820 = vmatprep.subr.mxu0 0.0
    %821 = vmatpush1.msra.mxu0 0.0
    %822 = vmatprep.subr.mxu0 0.0
    %823 = vmatpush1.msra.mxu0 0.0
    %824 = vmatprep.subr.mxu0 0.0
    %825 = vmatpush1.msra.mxu0 0.0
    %826 = vmatprep.subr.mxu0 0.0
    %827 = vmatpush1.msra.mxu0 0.0
    %828 = vmatprep.subr.mxu0 0.0
    %829 = vmatpush1.msra.mxu0 0.0
    %830 = vmatprep.subr.mxu0 0.0
    %831 = vmatpush1.msra.mxu0 0.0
    %832 = vmatprep.subr.mxu0 0.0
    %833 = vmatpush1.msra.mxu0 %v797
    %834 = vmatprep.subr.mxu0 0.0
    %835 = vmatpush2.msra.mxu0 0.0
    %836 = vmatprep.subr.mxu0 0.0
    %837 = vmatpush2.msra.mxu0 0.0
    %838 = vmatprep.subr.mxu0 0.0
    %839 = vmatpush2.msra.mxu0 0.0
    %840 = vmatprep.subr.mxu0 0.0
    %841 = vmatpush2.msra.mxu0 0.0
    %842 = vmatprep.subr.mxu0 0.0
    %843 = vmatpush2.msra.mxu0 0.0
    %844 = vmatprep.subr.mxu0 0.0
    %845 = vmatpush2.msra.mxu0 0.0
    %846 = vmatprep.subr.mxu0 0.0
    %847 = vmatpush2.msra.mxu0 0.0
    %848 = vmatprep.subr.mxu0 0.0
    %849 = vmatpush2.msra.mxu0 0.0
    %850 = vmatprep.subr.mxu0 0.0
    %851 = vmatpush2.msra.mxu0 0.0
    %852 = vmatprep.subr.mxu0 0.0
    %853 = vmatpush2.msra.mxu0 0.0
    %854 = vmatprep.subr.mxu0 0.0
    %855 = vmatpush2.msra.mxu0 0.0
    %856 = vmatprep.subr.mxu0 0.0
    %857 = vmatpush2.msra.mxu0 0.0
    %858 = vmatprep.subr.mxu0 0.0
    %859 = vmatpush2.msra.mxu0 0.0
    %860 = vmatprep.subr.mxu0 0.0
    %861 = vmatpush2.msra.mxu0 0.0
    %862 = vmatprep.subr.mxu0 0.0
    %863 = vmatpush2.msra.mxu0 0.0
    %864 = vmatprep.subr.mxu0 0.0
    %865 = vmatpush2.msra.mxu0 0.0
    %866 = vmatprep.mubr.f32.mxu0 0.0
    %867 = vmatmul.mubr.f32.gmra.mxu0 %v800
    %v868 = vpop.f32.mrf.mxu0
    %v869 = vadd.f32 0.0, %v868
    %v870 = vpop.f32.mrf.mxu0
    %871 = vdwg.mxu0
    %872 = vrot.lane.b32.xlu0 %v281, 56
    %v873 = vpop.permute.xlu0 %872
    %v876 = vsel %vm287, %v795, 0
    %878 = vmatprep.subr.mxu0 0.0
    %879 = vmatpush1.msra.mxu0 0.0
    %880 = vmatprep.subr.mxu0 0.0
    %881 = vmatpush1.msra.mxu0 0.0
    %882 = vmatprep.subr.mxu0 0.0
    %883 = vmatpush1.msra.mxu0 0.0
    %884 = vmatprep.subr.mxu0 0.0
    %885 = vmatpush1.msra.mxu0 0.0
    %886 = vmatprep.subr.mxu0 0.0
    %887 = vmatpush1.msra.mxu0 0.0
    %888 = vmatprep.subr.mxu0 0.0
    %889 = vmatpush1.msra.mxu0 0.0
    %890 = vmatprep.subr.mxu0 0.0
    %891 = vmatpush1.msra.mxu0 0.0
    %892 = vmatprep.subr.mxu0 0.0
    %893 = vmatpush1.msra.mxu0 0.0
    %894 = vmatprep.subr.mxu0 0.0
    %895 = vmatpush1.msra.mxu0 0.0
    %896 = vmatprep.subr.mxu0 0.0
    %897 = vmatpush1.msra.mxu0 0.0
    %898 = vmatprep.subr.mxu0 0.0
    %899 = vmatpush1.msra.mxu0 0.0
    %900 = vmatprep.subr.mxu0 0.0
    %901 = vmatpush1.msra.mxu0 0.0
    %902 = vmatprep.subr.mxu0 0.0
    %903 = vmatpush1.msra.mxu0 0.0
    %904 = vmatprep.subr.mxu0 0.0
    %905 = vmatpush1.msra.mxu0 0.0
    %906 = vmatprep.subr.mxu0 0.0
    %907 = vmatpush1.msra.mxu0 0.0
    %908 = vmatprep.subr.mxu0 0.0
    %909 = vmatpush1.msra.mxu0 %v873
    %910 = vmatprep.subr.mxu0 0.0
    %911 = vmatpush2.msra.mxu0 0.0
    %912 = vmatprep.subr.mxu0 0.0
    %913 = vmatpush2.msra.mxu0 0.0
    %914 = vmatprep.subr.mxu0 0.0
    %915 = vmatpush2.msra.mxu0 0.0
    %916 = vmatprep.subr.mxu0 0.0
    %917 = vmatpush2.msra.mxu0 0.0
    %918 = vmatprep.subr.mxu0 0.0
    %919 = vmatpush2.msra.mxu0 0.0
    %920 = vmatprep.subr.mxu0 0.0
    %921 = vmatpush2.msra.mxu0 0.0
    %922 = vmatprep.subr.mxu0 0.0
    %923 = vmatpush2.msra.mxu0 0.0
    %924 = vmatprep.subr.mxu0 0.0
    %925 = vmatpush2.msra.mxu0 0.0
    %926 = vmatprep.subr.mxu0 0.0
    %927 = vmatpush2.msra.mxu0 0.0
    %928 = vmatprep.subr.mxu0 0.0
    %929 = vmatpush2.msra.mxu0 0.0
    %930 = vmatprep.subr.mxu0 0.0
    %931 = vmatpush2.msra.mxu0 0.0
    %932 = vmatprep.subr.mxu0 0.0
    %933 = vmatpush2.msra.mxu0 0.0
    %934 = vmatprep.subr.mxu0 0.0
    %935 = vmatpush2.msra.mxu0 0.0
    %936 = vmatprep.subr.mxu0 0.0
    %937 = vmatpush2.msra.mxu0 0.0
    %938 = vmatprep.subr.mxu0 0.0
    %939 = vmatpush2.msra.mxu0 0.0
    %940 = vmatprep.subr.mxu0 0.0
    %941 = vmatpush2.msra.mxu0 0.0
    %942 = vmatprep.mubr.f32.mxu0 0.0
    %943 = vmatmul.mubr.f32.gmra.mxu0 %v876
    %v944 = vpop.f32.mrf.mxu0
    %v945 = vadd.f32 0.0, %v944
    %v946 = vpop.f32.mrf.mxu0
    %947 = vdwg.mxu0
    %v948 = vpack.c.bf16 %v945, %v869
    %v949 = vpack.c.b16 %v233, %v233
    %950 = vrot.lane.b32.xlu0 %v949, 32
    %v951 = vpop.permute.xlu0 %950
    %v953 = vsel %vm287, %v948, 0
    %vm955 = vcmask 1043456
    %v957 = vsel %vm955, %v951, 0
    %959 = vmatprep.subr.bf16.mxu0 0
    %960 = vmatpush1.bf16.msra.mxu0 0
    %961 = vmatprep.subr.bf16.mxu0 0
    %962 = vmatpush1.bf16.msra.mxu0 0
    %963 = vmatprep.subr.bf16.mxu0 0
    %964 = vmatpush1.bf16.msra.mxu0 0
    %965 = vmatprep.subr.bf16.mxu0 0
    %966 = vmatpush1.bf16.msra.mxu0 0
    %967 = vmatprep.subr.bf16.mxu0 0
    %968 = vmatpush1.bf16.msra.mxu0 0
    %969 = vmatprep.subr.bf16.mxu0 0
    %970 = vmatpush1.bf16.msra.mxu0 0
    %971 = vmatprep.subr.bf16.mxu0 0
    %972 = vmatpush1.bf16.msra.mxu0 0
    %973 = vmatprep.subr.bf16.mxu0 0
    %974 = vmatpush1.bf16.msra.mxu0 %v957
    %975 = vmatprep.subr.bf16.mxu0 0
    %976 = vmatpush2.bf16.msra.mxu0 0
    %977 = vmatprep.subr.bf16.mxu0 0
    %978 = vmatpush2.bf16.msra.mxu0 0
    %979 = vmatprep.subr.bf16.mxu0 0
    %980 = vmatpush2.bf16.msra.mxu0 0
    %981 = vmatprep.subr.bf16.mxu0 0
    %982 = vmatpush2.bf16.msra.mxu0 0
    %983 = vmatprep.subr.bf16.mxu0 0
    %984 = vmatpush2.bf16.msra.mxu0 0
    %985 = vmatprep.subr.bf16.mxu0 0
    %986 = vmatpush2.bf16.msra.mxu0 0
    %987 = vmatprep.subr.bf16.mxu0 0
    %988 = vmatpush2.bf16.msra.mxu0 0
    %989 = vmatprep.subr.bf16.mxu0 0
    %990 = vmatpush2.bf16.msra.mxu0 0
    %991 = vmatprep.mubr.bf16.mxu0 0
    %992 = vmatmul.mubr.bf16.gmra.mxu0 %v953
    %v993 = vpop.f32.mrf.mxu0
    %v994 = vadd.f32 0.0, %v993
    %v995 = vpop.f32.mrf.mxu0
    %v996 = vpop.f32.mrf.mxu0
    %v997 = vadd.f32 0.0, %v996
    %v998 = vpop.f32.mrf.mxu0
    %999 = vdwg.mxu0
    %v1000 = vpack.c.b16 %v232, %v232
    %1001 = vrot.lane.b32.xlu0 %v1000, 32
    %v1002 = vpop.permute.xlu0 %1001
    %v1004 = vsel %vm287, %v615, 0
    %v1007 = vsel %vm955, %v1002, 0
    %1009 = vmatprep.subr.bf16.mxu0 0
    %1010 = vmatpush1.bf16.msra.mxu0 0
    %1011 = vmatprep.subr.bf16.mxu0 0
    %1012 = vmatpush1.bf16.msra.mxu0 0
    %1013 = vmatprep.subr.bf16.mxu0 0
    %1014 = vmatpush1.bf16.msra.mxu0 0
    %1015 = vmatprep.subr.bf16.mxu0 0
    %1016 = vmatpush1.bf16.msra.mxu0 0
    %1017 = vmatprep.subr.bf16.mxu0 0
    %1018 = vmatpush1.bf16.msra.mxu0 0
    %1019 = vmatprep.subr.bf16.mxu0 0
    %1020 = vmatpush1.bf16.msra.mxu0 0
    %1021 = vmatprep.subr.bf16.mxu0 0
    %1022 = vmatpush1.bf16.msra.mxu0 0
    %1023 = vmatprep.subr.bf16.mxu0 0
    %1024 = vmatpush1.bf16.msra.mxu0 %v1007
    %1025 = vmatprep.subr.bf16.mxu0 0
    %1026 = vmatpush2.bf16.msra.mxu0 0
    %1027 = vmatprep.subr.bf16.mxu0 0
    %1028 = vmatpush2.bf16.msra.mxu0 0
    %1029 = vmatprep.subr.bf16.mxu0 0
    %1030 = vmatpush2.bf16.msra.mxu0 0
    %1031 = vmatprep.subr.bf16.mxu0 0
    %1032 = vmatpush2.bf16.msra.mxu0 0
    %1033 = vmatprep.subr.bf16.mxu0 0
    %1034 = vmatpush2.bf16.msra.mxu0 0
    %1035 = vmatprep.subr.bf16.mxu0 0
    %1036 = vmatpush2.bf16.msra.mxu0 0
    %1037 = vmatprep.subr.bf16.mxu0 0
    %1038 = vmatpush2.bf16.msra.mxu0 0
    %1039 = vmatprep.subr.bf16.mxu0 0
    %1040 = vmatpush2.bf16.msra.mxu0 0
    %1041 = vmatprep.mubr.bf16.mxu0 0
    %1042 = vmatmul.mubr.bf16.gmra.mxu0 %v1004
    %v1043 = vpop.f32.mrf.mxu0
    %v1044 = vadd.f32 %v994, %v1043
    %v1045 = vpop.f32.mrf.mxu0
    %v1046 = vpop.f32.mrf.mxu0
    %v1047 = vadd.f32 %v997, %v1046
    %v1048 = vpop.f32.mrf.mxu0
    %1049 = vdwg.mxu0
    %1050 = vrot.lane.b32.xlu0 %v278, 112
    %v1051 = vpop.permute.xlu0 %1050
    %1052 = vrot.lane.b32.xlu0 %v278, 80
    %v1053 = vpop.permute.xlu0 %1052
    %v1054 = vsel %vm287, %v1051, 0
    %v1056 = vsel %vm287, %v1053, 0
    %1058 = vmatprep.subr.mxu0 0.0
    %1059 = vmatpush1.xpose.msra.mxu0 0.0
    %1060 = vmatprep.subr.mxu0 0.0
    %1061 = vmatpush1.xpose.msra.mxu0 0.0
    %1062 = vmatprep.subr.mxu0 0.0
    %1063 = vmatpush1.xpose.msra.mxu0 0.0
    %1064 = vmatprep.subr.mxu0 0.0
    %1065 = vmatpush1.xpose.msra.mxu0 0.0
    %1066 = vmatprep.subr.mxu0 0.0
    %1067 = vmatpush1.xpose.msra.mxu0 0.0
    %1068 = vmatprep.subr.mxu0 0.0
    %1069 = vmatpush1.xpose.msra.mxu0 0.0
    %1070 = vmatprep.subr.mxu0 0.0
    %1071 = vmatpush1.xpose.msra.mxu0 0.0
    %1072 = vmatprep.subr.mxu0 0.0
    %1073 = vmatpush1.xpose.msra.mxu0 0.0
    %1074 = vmatprep.subr.mxu0 0.0
    %1075 = vmatpush1.xpose.msra.mxu0 0.0
    %1076 = vmatprep.subr.mxu0 0.0
    %1077 = vmatpush1.xpose.msra.mxu0 0.0
    %1078 = vmatprep.subr.mxu0 0.0
    %1079 = vmatpush1.xpose.msra.mxu0 0.0
    %1080 = vmatprep.subr.mxu0 0.0
    %1081 = vmatpush1.xpose.msra.mxu0 0.0
    %1082 = vmatprep.subr.mxu0 0.0
    %1083 = vmatpush1.xpose.msra.mxu0 0.0
    %1084 = vmatprep.subr.mxu0 0.0
    %1085 = vmatpush1.xpose.msra.mxu0 0.0
    %1086 = vmatprep.subr.mxu0 0.0
    %1087 = vmatpush1.xpose.msra.mxu0 0.0
    %1088 = vmatprep.subr.mxu0 0.0
    %1089 = vmatpush1.xpose.msra.mxu0 %v1056
    %1090 = vmatprep.subr.mxu0 0.0
    %1091 = vmatpush2.xpose.msra.mxu0 0.0
    %1092 = vmatprep.subr.mxu0 0.0
    %1093 = vmatpush2.xpose.msra.mxu0 0.0
    %1094 = vmatprep.subr.mxu0 0.0
    %1095 = vmatpush2.xpose.msra.mxu0 0.0
    %1096 = vmatprep.subr.mxu0 0.0
    %1097 = vmatpush2.xpose.msra.mxu0 0.0
    %1098 = vmatprep.subr.mxu0 0.0
    %1099 = vmatpush2.xpose.msra.mxu0 0.0
    %1100 = vmatprep.subr.mxu0 0.0
    %1101 = vmatpush2.xpose.msra.mxu0 0.0
    %1102 = vmatprep.subr.mxu0 0.0
    %1103 = vmatpush2.xpose.msra.mxu0 0.0
    %1104 = vmatprep.subr.mxu0 0.0
    %1105 = vmatpush2.xpose.msra.mxu0 0.0
    %1106 = vmatprep.subr.mxu0 0.0
    %1107 = vmatpush2.xpose.msra.mxu0 0.0
    %1108 = vmatprep.subr.mxu0 0.0
    %1109 = vmatpush2.xpose.msra.mxu0 0.0
    %1110 = vmatprep.subr.mxu0 0.0
    %1111 = vmatpush2.xpose.msra.mxu0 0.0
    %1112 = vmatprep.subr.mxu0 0.0
    %1113 = vmatpush2.xpose.msra.mxu0 0.0
    %1114 = vmatprep.subr.mxu0 0.0
    %1115 = vmatpush2.xpose.msra.mxu0 0.0
    %1116 = vmatprep.subr.mxu0 0.0
    %1117 = vmatpush2.xpose.msra.mxu0 0.0
    %1118 = vmatprep.subr.mxu0 0.0
    %1119 = vmatpush2.xpose.msra.mxu0 0.0
    %1120 = vmatprep.subr.mxu0 0.0
    %1121 = vmatpush2.xpose.msra.mxu0 0.0
    %1122 = vmatprep.mubr.f32.mxu0 0.0
    %1123 = vmatmul.mubr.f32.gmra.mxu0 %v1054
    %v1124 = vpop.f32.mrf.mxu0
    %v1125 = vadd.f32 0.0, %v1124
    %v1126 = vpop.f32.mrf.mxu0
    %1127 = vdwg.mxu0
    %1128 = vrot.lane.b32.xlu0 %v281, 112
    %v1129 = vpop.permute.xlu0 %1128
    %1130 = vrot.lane.b32.xlu0 %v281, 80
    %v1131 = vpop.permute.xlu0 %1130
    %v1132 = vsel %vm287, %v1129, 0
    %v1134 = vsel %vm287, %v1131, 0
    %1136 = vmatprep.subr.mxu0 0.0
    %1137 = vmatpush1.xpose.msra.mxu0 0.0
    %1138 = vmatprep.subr.mxu0 0.0
    %1139 = vmatpush1.xpose.msra.mxu0 0.0
    %1140 = vmatprep.subr.mxu0 0.0
    %1141 = vmatpush1.xpose.msra.mxu0 0.0
    %1142 = vmatprep.subr.mxu0 0.0
    %1143 = vmatpush1.xpose.msra.mxu0 0.0
    %1144 = vmatprep.subr.mxu0 0.0
    %1145 = vmatpush1.xpose.msra.mxu0 0.0
    %1146 = vmatprep.subr.mxu0 0.0
    %1147 = vmatpush1.xpose.msra.mxu0 0.0
    %1148 = vmatprep.subr.mxu0 0.0
    %1149 = vmatpush1.xpose.msra.mxu0 0.0
    %1150 = vmatprep.subr.mxu0 0.0
    %1151 = vmatpush1.xpose.msra.mxu0 0.0
    %1152 = vmatprep.subr.mxu0 0.0
    %1153 = vmatpush1.xpose.msra.mxu0 0.0
    %1154 = vmatprep.subr.mxu0 0.0
    %1155 = vmatpush1.xpose.msra.mxu0 0.0
    %1156 = vmatprep.subr.mxu0 0.0
    %1157 = vmatpush1.xpose.msra.mxu0 0.0
    %1158 = vmatprep.subr.mxu0 0.0
    %1159 = vmatpush1.xpose.msra.mxu0 0.0
    %1160 = vmatprep.subr.mxu0 0.0
    %1161 = vmatpush1.xpose.msra.mxu0 0.0
    %1162 = vmatprep.subr.mxu0 0.0
    %1163 = vmatpush1.xpose.msra.mxu0 0.0
    %1164 = vmatprep.subr.mxu0 0.0
    %1165 = vmatpush1.xpose.msra.mxu0 0.0
    %1166 = vmatprep.subr.mxu0 0.0
    %1167 = vmatpush1.xpose.msra.mxu0 %v1134
    %1168 = vmatprep.subr.mxu0 0.0
    %1169 = vmatpush2.xpose.msra.mxu0 0.0
    %1170 = vmatprep.subr.mxu0 0.0
    %1171 = vmatpush2.xpose.msra.mxu0 0.0
    %1172 = vmatprep.subr.mxu0 0.0
    %1173 = vmatpush2.xpose.msra.mxu0 0.0
    %1174 = vmatprep.subr.mxu0 0.0
    %1175 = vmatpush2.xpose.msra.mxu0 0.0
    %1176 = vmatprep.subr.mxu0 0.0
    %1177 = vmatpush2.xpose.msra.mxu0 0.0
    %1178 = vmatprep.subr.mxu0 0.0
    %1179 = vmatpush2.xpose.msra.mxu0 0.0
    %1180 = vmatprep.subr.mxu0 0.0
    %1181 = vmatpush2.xpose.msra.mxu0 0.0
    %1182 = vmatprep.subr.mxu0 0.0
    %1183 = vmatpush2.xpose.msra.mxu0 0.0
    %1184 = vmatprep.subr.mxu0 0.0
    %1185 = vmatpush2.xpose.msra.mxu0 0.0
    %1186 = vmatprep.subr.mxu0 0.0
    %1187 = vmatpush2.xpose.msra.mxu0 0.0
    %1188 = vmatprep.subr.mxu0 0.0
    %1189 = vmatpush2.xpose.msra.mxu0 0.0
    %1190 = vmatprep.subr.mxu0 0.0
    %1191 = vmatpush2.xpose.msra.mxu0 0.0
    %1192 = vmatprep.subr.mxu0 0.0
    %1193 = vmatpush2.xpose.msra.mxu0 0.0
    %1194 = vmatprep.subr.mxu0 0.0
    %1195 = vmatpush2.xpose.msra.mxu0 0.0
    %1196 = vmatprep.subr.mxu0 0.0
    %1197 = vmatpush2.xpose.msra.mxu0 0.0
    %1198 = vmatprep.subr.mxu0 0.0
    %1199 = vmatpush2.xpose.msra.mxu0 0.0
    %1200 = vmatprep.mubr.f32.mxu0 0.0
    %1201 = vmatmul.mubr.f32.gmra.mxu0 %v1132
    %v1202 = vpop.f32.mrf.mxu0
    %v1203 = vadd.f32 0.0, %v1202
    %v1204 = vpop.f32.mrf.mxu0
    %1205 = vdwg.mxu0
    %v1206 = vmul.f32 %v1125, 0.35355338
    %v1207 = vmul.f32 %v1203, 0.35355338
    %v1208 = vsel %vm287, %v1206, -inf
    %1209 = vmax.xlane.f32.xlu0 %v1208
    %v1210 = vpop.xlane.xlu0 %1209
    %v1211 = vsel %vm287, %v1207, -inf
    %1212 = vmax.xlane.f32.xlu0 %v1211
    %v1213 = vpop.xlane.xlu0 %1212
    %v1214 = vsub.f32 %v1206, %v1210
    %v1215 = vsub.f32 %v1207, %v1213
    %v1216 = vmul.f32 %v1214, 1.442695
    %v1217 = vpow.pop %v1216
    %v1218 = vmul.f32 %v1215, 1.442695
    %v1219 = vpow.pop %v1218
    %v1220 = vsel %vm287, %v1217, 0.0
    %1221 = vadd.xlane.f32.xlu0 %v1220
    %v1222 = vpop.xlane.xlu0 %1221
    %v1223 = vsel %vm287, %v1219, 0.0
    %1224 = vadd.xlane.f32.xlu0 %v1223
    %v1225 = vpop.xlane.xlu0 %1224
    %v1226 = vrcp.pop %v1222
    %v1227 = vrcp.pop %v1225
    %v1228 = vmul.f32 %v1217, %v1226
    %v1229 = vmul.f32 %v1219, %v1227
    %1230 = vrot.lane.b32.xlu0 %v278, 48
    %v1231 = vpop.permute.xlu0 %1230
    %v1234 = vsel %vm287, %v1228, 0
    %1236 = vmatprep.subr.mxu0 0.0
    %1237 = vmatpush1.msra.mxu0 0.0
    %1238 = vmatprep.subr.mxu0 0.0
    %1239 = vmatpush1.msra.mxu0 0.0
    %1240 = vmatprep.subr.mxu0 0.0
    %1241 = vmatpush1.msra.mxu0 0.0
    %1242 = vmatprep.subr.mxu0 0.0
    %1243 = vmatpush1.msra.mxu0 0.0
    %1244 = vmatprep.subr.mxu0 0.0
    %1245 = vmatpush1.msra.mxu0 0.0
    %1246 = vmatprep.subr.mxu0 0.0
    %1247 = vmatpush1.msra.mxu0 0.0
    %1248 = vmatprep.subr.mxu0 0.0
    %1249 = vmatpush1.msra.mxu0 0.0
    %1250 = vmatprep.subr.mxu0 0.0
    %1251 = vmatpush1.msra.mxu0 0.0
    %1252 = vmatprep.subr.mxu0 0.0
    %1253 = vmatpush1.msra.mxu0 0.0
    %1254 = vmatprep.subr.mxu0 0.0
    %1255 = vmatpush1.msra.mxu0 0.0
    %1256 = vmatprep.subr.mxu0 0.0
    %1257 = vmatpush1.msra.mxu0 0.0
    %1258 = vmatprep.subr.mxu0 0.0
    %1259 = vmatpush1.msra.mxu0 0.0
    %1260 = vmatprep.subr.mxu0 0.0
    %1261 = vmatpush1.msra.mxu0 0.0
    %1262 = vmatprep.subr.mxu0 0.0
    %1263 = vmatpush1.msra.mxu0 0.0
    %1264 = vmatprep.subr.mxu0 0.0
    %1265 = vmatpush1.msra.mxu0 0.0
    %1266 = vmatprep.subr.mxu0 0.0
    %1267 = vmatpush1.msra.mxu0 %v1231
    %1268 = vmatprep.subr.mxu0 0.0
    %1269 = vmatpush2.msra.mxu0 0.0
    %1270 = vmatprep.subr.mxu0 0.0
    %1271 = vmatpush2.msra.mxu0 0.0
    %1272 = vmatprep.subr.mxu0 0.0
    %1273 = vmatpush2.msra.mxu0 0.0
    %1274 = vmatprep.subr.mxu0 0.0
    %1275 = vmatpush2.msra.mxu0 0.0
    %1276 = vmatprep.subr.mxu0 0.0
    %1277 = vmatpush2.msra.mxu0 0.0
    %1278 = vmatprep.subr.mxu0 0.0
    %1279 = vmatpush2.msra.mxu0 0.0
    %1280 = vmatprep.subr.mxu0 0.0
    %1281 = vmatpush2.msra.mxu0 0.0
    %1282 = vmatprep.subr.mxu0 0.0
    %1283 = vmatpush2.msra.mxu0 0.0
    %1284 = vmatprep.subr.mxu0 0.0
    %1285 = vmatpush2.msra.mxu0 0.0
    %1286 = vmatprep.subr.mxu0 0.0
    %1287 = vmatpush2.msra.mxu0 0.0
    %1288 = vmatprep.subr.mxu0 0.0
    %1289 = vmatpush2.msra.mxu0 0.0
    %1290 = vmatprep.subr.mxu0 0.0
    %1291 = vmatpush2.msra.mxu0 0.0
    %1292 = vmatprep.subr.mxu0 0.0
    %1293 = vmatpush2.msra.mxu0 0.0
    %1294 = vmatprep.subr.mxu0 0.0
    %1295 = vmatpush2.msra.mxu0 0.0
    %1296 = vmatprep.subr.mxu0 0.0
    %1297 = vmatpush2.msra.mxu0 0.0
    %1298 = vmatprep.subr.mxu0 0.0
    %1299 = vmatpush2.msra.mxu0 0.0
    %1300 = vmatprep.mubr.f32.mxu0 0.0
    %1301 = vmatmul.mubr.f32.gmra.mxu0 %v1234
    %v1302 = vpop.f32.mrf.mxu0
    %v1303 = vadd.f32 0.0, %v1302
    %v1304 = vpop.f32.mrf.mxu0
    %1305 = vdwg.mxu0
    %1306 = vrot.lane.b32.xlu0 %v281, 48
    %v1307 = vpop.permute.xlu0 %1306
    %v1310 = vsel %vm287, %v1229, 0
    %1312 = vmatprep.subr.mxu0 0.0
    %1313 = vmatpush1.msra.mxu0 0.0
    %1314 = vmatprep.subr.mxu0 0.0
    %1315 = vmatpush1.msra.mxu0 0.0
    %1316 = vmatprep.subr.mxu0 0.0
    %1317 = vmatpush1.msra.mxu0 0.0
    %1318 = vmatprep.subr.mxu0 0.0
    %1319 = vmatpush1.msra.mxu0 0.0
    %1320 = vmatprep.subr.mxu0 0.0
    %1321 = vmatpush1.msra.mxu0 0.0
    %1322 = vmatprep.subr.mxu0 0.0
    %1323 = vmatpush1.msra.mxu0 0.0
    %1324 = vmatprep.subr.mxu0 0.0
    %1325 = vmatpush1.msra.mxu0 0.0
    %1326 = vmatprep.subr.mxu0 0.0
    %1327 = vmatpush1.msra.mxu0 0.0
    %1328 = vmatprep.subr.mxu0 0.0
    %1329 = vmatpush1.msra.mxu0 0.0
    %1330 = vmatprep.subr.mxu0 0.0
    %1331 = vmatpush1.msra.mxu0 0.0
    %1332 = vmatprep.subr.mxu0 0.0
    %1333 = vmatpush1.msra.mxu0 0.0
    %1334 = vmatprep.subr.mxu0 0.0
    %1335 = vmatpush1.msra.mxu0 0.0
    %1336 = vmatprep.subr.mxu0 0.0
    %1337 = vmatpush1.msra.mxu0 0.0
    %1338 = vmatprep.subr.mxu0 0.0
    %1339 = vmatpush1.msra.mxu0 0.0
    %1340 = vmatprep.subr.mxu0 0.0
    %1341 = vmatpush1.msra.mxu0 0.0
    %1342 = vmatprep.subr.mxu0 0.0
    %1343 = vmatpush1.msra.mxu0 %v1307
    %1344 = vmatprep.subr.mxu0 0.0
    %1345 = vmatpush2.msra.mxu0 0.0
    %1346 = vmatprep.subr.mxu0 0.0
    %1347 = vmatpush2.msra.mxu0 0.0
    %1348 = vmatprep.subr.mxu0 0.0
    %1349 = vmatpush2.msra.mxu0 0.0
    %1350 = vmatprep.subr.mxu0 0.0
    %1351 = vmatpush2.msra.mxu0 0.0
    %1352 = vmatprep.subr.mxu0 0.0
    %1353 = vmatpush2.msra.mxu0 0.0
    %1354 = vmatprep.subr.mxu0 0.0
    %1355 = vmatpush2.msra.mxu0 0.0
    %1356 = vmatprep.subr.mxu0 0.0
    %1357 = vmatpush2.msra.mxu0 0.0
    %1358 = vmatprep.subr.mxu0 0.0
    %1359 = vmatpush2.msra.mxu0 0.0
    %1360 = vmatprep.subr.mxu0 0.0
    %1361 = vmatpush2.msra.mxu0 0.0
    %1362 = vmatprep.subr.mxu0 0.0
    %1363 = vmatpush2.msra.mxu0 0.0
    %1364 = vmatprep.subr.mxu0 0.0
    %1365 = vmatpush2.msra.mxu0 0.0
    %1366 = vmatprep.subr.mxu0 0.0
    %1367 = vmatpush2.msra.mxu0 0.0
    %1368 = vmatprep.subr.mxu0 0.0
    %1369 = vmatpush2.msra.mxu0 0.0
    %1370 = vmatprep.subr.mxu0 0.0
    %1371 = vmatpush2.msra.mxu0 0.0
    %1372 = vmatprep.subr.mxu0 0.0
    %1373 = vmatpush2.msra.mxu0 0.0
    %1374 = vmatprep.subr.mxu0 0.0
    %1375 = vmatpush2.msra.mxu0 0.0
    %1376 = vmatprep.mubr.f32.mxu0 0.0
    %1377 = vmatmul.mubr.f32.gmra.mxu0 %v1310
    %v1378 = vpop.f32.mrf.mxu0
    %v1379 = vadd.f32 0.0, %v1378
    %v1380 = vpop.f32.mrf.mxu0
    %1381 = vdwg.mxu0
    %v1382 = vpack.c.bf16 %v1379, %v1303
    %v1383 = vpack.c.b16 %v234, %v234
    %1384 = vrot.lane.b32.xlu0 %v1383, 32
    %v1385 = vpop.permute.xlu0 %1384
    %v1387 = vsel %vm287, %v1382, 0
    %v1390 = vsel %vm955, %v1385, 0
    %1392 = vmatprep.subr.bf16.mxu0 0
    %1393 = vmatpush1.bf16.msra.mxu0 0
    %1394 = vmatprep.subr.bf16.mxu0 0
    %1395 = vmatpush1.bf16.msra.mxu0 0
    %1396 = vmatprep.subr.bf16.mxu0 0
    %1397 = vmatpush1.bf16.msra.mxu0 0
    %1398 = vmatprep.subr.bf16.mxu0 0
    %1399 = vmatpush1.bf16.msra.mxu0 0
    %1400 = vmatprep.subr.bf16.mxu0 0
    %1401 = vmatpush1.bf16.msra.mxu0 0
    %1402 = vmatprep.subr.bf16.mxu0 0
    %1403 = vmatpush1.bf16.msra.mxu0 0
    %1404 = vmatprep.subr.bf16.mxu0 0
    %1405 = vmatpush1.bf16.msra.mxu0 0
    %1406 = vmatprep.subr.bf16.mxu0 0
    %1407 = vmatpush1.bf16.msra.mxu0 %v1390
    %1408 = vmatprep.subr.bf16.mxu0 0
    %1409 = vmatpush2.bf16.msra.mxu0 0
    %1410 = vmatprep.subr.bf16.mxu0 0
    %1411 = vmatpush2.bf16.msra.mxu0 0
    %1412 = vmatprep.subr.bf16.mxu0 0
    %1413 = vmatpush2.bf16.msra.mxu0 0
    %1414 = vmatprep.subr.bf16.mxu0 0
    %1415 = vmatpush2.bf16.msra.mxu0 0
    %1416 = vmatprep.subr.bf16.mxu0 0
    %1417 = vmatpush2.bf16.msra.mxu0 0
    %1418 = vmatprep.subr.bf16.mxu0 0
    %1419 = vmatpush2.bf16.msra.mxu0 0
    %1420 = vmatprep.subr.bf16.mxu0 0
    %1421 = vmatpush2.bf16.msra.mxu0 0
    %1422 = vmatprep.subr.bf16.mxu0 0
    %1423 = vmatpush2.bf16.msra.mxu0 0
    %1424 = vmatprep.mubr.bf16.mxu0 0
    %1425 = vmatmul.mubr.bf16.gmra.mxu0 %v1387
    %v1426 = vpop.f32.mrf.mxu0
    %v1427 = vadd.f32 0.0, %v1426
    %v1428 = vpop.f32.mrf.mxu0
    %v1429 = vpop.f32.mrf.mxu0
    %v1430 = vadd.f32 0.0, %v1429
    %v1431 = vpop.f32.mrf.mxu0
    %1432 = vdwg.mxu0
    %v1433 = vadd.f32 %v1044, %v1427
    %v1434 = vadd.f32 %v1047, %v1430
    %1435 = vrot.lane.b32.xlu0 %v278, 104
    %v1436 = vpop.permute.xlu0 %1435
    %1437 = vrot.lane.b32.xlu0 %v278, 72
    %v1438 = vpop.permute.xlu0 %1437
    %v1439 = vsel %vm287, %v1436, 0
    %v1441 = vsel %vm287, %v1438, 0
    %1443 = vmatprep.subr.mxu0 0.0
    %1444 = vmatpush1.xpose.msra.mxu0 0.0
    %1445 = vmatprep.subr.mxu0 0.0
    %1446 = vmatpush1.xpose.msra.mxu0 0.0
    %1447 = vmatprep.subr.mxu0 0.0
    %1448 = vmatpush1.xpose.msra.mxu0 0.0
    %1449 = vmatprep.subr.mxu0 0.0
    %1450 = vmatpush1.xpose.msra.mxu0 0.0
    %1451 = vmatprep.subr.mxu0 0.0
    %1452 = vmatpush1.xpose.msra.mxu0 0.0
    %1453 = vmatprep.subr.mxu0 0.0
    %1454 = vmatpush1.xpose.msra.mxu0 0.0
    %1455 = vmatprep.subr.mxu0 0.0
    %1456 = vmatpush1.xpose.msra.mxu0 0.0
    %1457 = vmatprep.subr.mxu0 0.0
    %1458 = vmatpush1.xpose.msra.mxu0 0.0
    %1459 = vmatprep.subr.mxu0 0.0
    %1460 = vmatpush1.xpose.msra.mxu0 0.0
    %1461 = vmatprep.subr.mxu0 0.0
    %1462 = vmatpush1.xpose.msra.mxu0 0.0
    %1463 = vmatprep.subr.mxu0 0.0
    %1464 = vmatpush1.xpose.msra.mxu0 0.0
    %1465 = vmatprep.subr.mxu0 0.0
    %1466 = vmatpush1.xpose.msra.mxu0 0.0
    %1467 = vmatprep.subr.mxu0 0.0
    %1468 = vmatpush1.xpose.msra.mxu0 0.0
    %1469 = vmatprep.subr.mxu0 0.0
    %1470 = vmatpush1.xpose.msra.mxu0 0.0
    %1471 = vmatprep.subr.mxu0 0.0
    %1472 = vmatpush1.xpose.msra.mxu0 0.0
    %1473 = vmatprep.subr.mxu0 0.0
    %1474 = vmatpush1.xpose.msra.mxu0 %v1441
    %1475 = vmatprep.subr.mxu0 0.0
    %1476 = vmatpush2.xpose.msra.mxu0 0.0
    %1477 = vmatprep.subr.mxu0 0.0
    %1478 = vmatpush2.xpose.msra.mxu0 0.0
    %1479 = vmatprep.subr.mxu0 0.0
    %1480 = vmatpush2.xpose.msra.mxu0 0.0
    %1481 = vmatprep.subr.mxu0 0.0
    %1482 = vmatpush2.xpose.msra.mxu0 0.0
    %1483 = vmatprep.subr.mxu0 0.0
    %1484 = vmatpush2.xpose.msra.mxu0 0.0
    %1485 = vmatprep.subr.mxu0 0.0
    %1486 = vmatpush2.xpose.msra.mxu0 0.0
    %1487 = vmatprep.subr.mxu0 0.0
    %1488 = vmatpush2.xpose.msra.mxu0 0.0
    %1489 = vmatprep.subr.mxu0 0.0
    %1490 = vmatpush2.xpose.msra.mxu0 0.0
    %1491 = vmatprep.subr.mxu0 0.0
    %1492 = vmatpush2.xpose.msra.mxu0 0.0
    %1493 = vmatprep.subr.mxu0 0.0
    %1494 = vmatpush2.xpose.msra.mxu0 0.0
    %1495 = vmatprep.subr.mxu0 0.0
    %1496 = vmatpush2.xpose.msra.mxu0 0.0
    %1497 = vmatprep.subr.mxu0 0.0
    %1498 = vmatpush2.xpose.msra.mxu0 0.0
    %1499 = vmatprep.subr.mxu0 0.0
    %1500 = vmatpush2.xpose.msra.mxu0 0.0
    %1501 = vmatprep.subr.mxu0 0.0
    %1502 = vmatpush2.xpose.msra.mxu0 0.0
    %1503 = vmatprep.subr.mxu0 0.0
    %1504 = vmatpush2.xpose.msra.mxu0 0.0
    %1505 = vmatprep.subr.mxu0 0.0
    %1506 = vmatpush2.xpose.msra.mxu0 0.0
    %1507 = vmatprep.mubr.f32.mxu0 0.0
    %1508 = vmatmul.mubr.f32.gmra.mxu0 %v1439
    %v1509 = vpop.f32.mrf.mxu0
    %v1510 = vadd.f32 0.0, %v1509
    %v1511 = vpop.f32.mrf.mxu0
    %1512 = vdwg.mxu0
    %1513 = vrot.lane.b32.xlu0 %v281, 104
    %v1514 = vpop.permute.xlu0 %1513
    %1515 = vrot.lane.b32.xlu0 %v281, 72
    %v1516 = vpop.permute.xlu0 %1515
    %v1517 = vsel %vm287, %v1514, 0
    %v1519 = vsel %vm287, %v1516, 0
    %1521 = vmatprep.subr.mxu0 0.0
    %1522 = vmatpush1.xpose.msra.mxu0 0.0
    %1523 = vmatprep.subr.mxu0 0.0
    %1524 = vmatpush1.xpose.msra.mxu0 0.0
    %1525 = vmatprep.subr.mxu0 0.0
    %1526 = vmatpush1.xpose.msra.mxu0 0.0
    %1527 = vmatprep.subr.mxu0 0.0
    %1528 = vmatpush1.xpose.msra.mxu0 0.0
    %1529 = vmatprep.subr.mxu0 0.0
    %1530 = vmatpush1.xpose.msra.mxu0 0.0
    %1531 = vmatprep.subr.mxu0 0.0
    %1532 = vmatpush1.xpose.msra.mxu0 0.0
    %1533 = vmatprep.subr.mxu0 0.0
    %1534 = vmatpush1.xpose.msra.mxu0 0.0
    %1535 = vmatprep.subr.mxu0 0.0
    %1536 = vmatpush1.xpose.msra.mxu0 0.0
    %1537 = vmatprep.subr.mxu0 0.0
    %1538 = vmatpush1.xpose.msra.mxu0 0.0
    %1539 = vmatprep.subr.mxu0 0.0
    %1540 = vmatpush1.xpose.msra.mxu0 0.0
    %1541 = vmatprep.subr.mxu0 0.0
    %1542 = vmatpush1.xpose.msra.mxu0 0.0
    %1543 = vmatprep.subr.mxu0 0.0
    %1544 = vmatpush1.xpose.msra.mxu0 0.0
    %1545 = vmatprep.subr.mxu0 0.0
    %1546 = vmatpush1.xpose.msra.mxu0 0.0
    %1547 = vmatprep.subr.mxu0 0.0
    %1548 = vmatpush1.xpose.msra.mxu0 0.0
    %1549 = vmatprep.subr.mxu0 0.0
    %1550 = vmatpush1.xpose.msra.mxu0 0.0
    %1551 = vmatprep.subr.mxu0 0.0
    %1552 = vmatpush1.xpose.msra.mxu0 %v1519
    %1553 = vmatprep.subr.mxu0 0.0
    %1554 = vmatpush2.xpose.msra.mxu0 0.0
    %1555 = vmatprep.subr.mxu0 0.0
    %1556 = vmatpush2.xpose.msra.mxu0 0.0
    %1557 = vmatprep.subr.mxu0 0.0
    %1558 = vmatpush2.xpose.msra.mxu0 0.0
    %1559 = vmatprep.subr.mxu0 0.0
    %1560 = vmatpush2.xpose.msra.mxu0 0.0
    %1561 = vmatprep.subr.mxu0 0.0
    %1562 = vmatpush2.xpose.msra.mxu0 0.0
    %1563 = vmatprep.subr.mxu0 0.0
    %1564 = vmatpush2.xpose.msra.mxu0 0.0
    %1565 = vmatprep.subr.mxu0 0.0
    %1566 = vmatpush2.xpose.msra.mxu0 0.0
    %1567 = vmatprep.subr.mxu0 0.0
    %1568 = vmatpush2.xpose.msra.mxu0 0.0
    %1569 = vmatprep.subr.mxu0 0.0
    %1570 = vmatpush2.xpose.msra.mxu0 0.0
    %1571 = vmatprep.subr.mxu0 0.0
    %1572 = vmatpush2.xpose.msra.mxu0 0.0
    %1573 = vmatprep.subr.mxu0 0.0
    %1574 = vmatpush2.xpose.msra.mxu0 0.0
    %1575 = vmatprep.subr.mxu0 0.0
    %1576 = vmatpush2.xpose.msra.mxu0 0.0
    %1577 = vmatprep.subr.mxu0 0.0
    %1578 = vmatpush2.xpose.msra.mxu0 0.0
    %1579 = vmatprep.subr.mxu0 0.0
    %1580 = vmatpush2.xpose.msra.mxu0 0.0
    %1581 = vmatprep.subr.mxu0 0.0
    %1582 = vmatpush2.xpose.msra.mxu0 0.0
    %1583 = vmatprep.subr.mxu0 0.0
    %1584 = vmatpush2.xpose.msra.mxu0 0.0
    %1585 = vmatprep.mubr.f32.mxu0 0.0
    %1586 = vmatmul.mubr.f32.gmra.mxu0 %v1517
    %v1587 = vpop.f32.mrf.mxu0
    %v1588 = vadd.f32 0.0, %v1587
    %v1589 = vpop.f32.mrf.mxu0
    %1590 = vdwg.mxu0
    %v1591 = vmul.f32 %v1510, 0.35355338
    %v1592 = vmul.f32 %v1588, 0.35355338
    %v1593 = vsel %vm287, %v1591, -inf
    %1594 = vmax.xlane.f32.xlu0 %v1593
    %v1595 = vpop.xlane.xlu0 %1594
    %v1596 = vsel %vm287, %v1592, -inf
    %1597 = vmax.xlane.f32.xlu0 %v1596
    %v1598 = vpop.xlane.xlu0 %1597
    %v1599 = vsub.f32 %v1591, %v1595
    %v1600 = vsub.f32 %v1592, %v1598
    %v1601 = vmul.f32 %v1599, 1.442695
    %v1602 = vpow.pop %v1601
    %v1603 = vmul.f32 %v1600, 1.442695
    %v1604 = vpow.pop %v1603
    %v1605 = vsel %vm287, %v1602, 0.0
    %1606 = vadd.xlane.f32.xlu0 %v1605
    %v1607 = vpop.xlane.xlu0 %1606
    %v1608 = vsel %vm287, %v1604, 0.0
    %1609 = vadd.xlane.f32.xlu0 %v1608
    %v1610 = vpop.xlane.xlu0 %1609
    %v1611 = vrcp.pop %v1607
    %v1612 = vrcp.pop %v1610
    %v1613 = vmul.f32 %v1602, %v1611
    %v1614 = vmul.f32 %v1604, %v1612
    %1615 = vrot.lane.b32.xlu0 %v278, 40
    %v1616 = vpop.permute.xlu0 %1615
    %v1619 = vsel %vm287, %v1613, 0
    %1621 = vmatprep.subr.mxu0 0.0
    %1622 = vmatpush1.msra.mxu0 0.0
    %1623 = vmatprep.subr.mxu0 0.0
    %1624 = vmatpush1.msra.mxu0 0.0
    %1625 = vmatprep.subr.mxu0 0.0
    %1626 = vmatpush1.msra.mxu0 0.0
    %1627 = vmatprep.subr.mxu0 0.0
    %1628 = vmatpush1.msra.mxu0 0.0
    %1629 = vmatprep.subr.mxu0 0.0
    %1630 = vmatpush1.msra.mxu0 0.0
    %1631 = vmatprep.subr.mxu0 0.0
    %1632 = vmatpush1.msra.mxu0 0.0
    %1633 = vmatprep.subr.mxu0 0.0
    %1634 = vmatpush1.msra.mxu0 0.0
    %1635 = vmatprep.subr.mxu0 0.0
    %1636 = vmatpush1.msra.mxu0 0.0
    %1637 = vmatprep.subr.mxu0 0.0
    %1638 = vmatpush1.msra.mxu0 0.0
    %1639 = vmatprep.subr.mxu0 0.0
    %1640 = vmatpush1.msra.mxu0 0.0
    %1641 = vmatprep.subr.mxu0 0.0
    %1642 = vmatpush1.msra.mxu0 0.0
    %1643 = vmatprep.subr.mxu0 0.0
    %1644 = vmatpush1.msra.mxu0 0.0
    %1645 = vmatprep.subr.mxu0 0.0
    %1646 = vmatpush1.msra.mxu0 0.0
    %1647 = vmatprep.subr.mxu0 0.0
    %1648 = vmatpush1.msra.mxu0 0.0
    %1649 = vmatprep.subr.mxu0 0.0
    %1650 = vmatpush1.msra.mxu0 0.0
    %1651 = vmatprep.subr.mxu0 0.0
    %1652 = vmatpush1.msra.mxu0 %v1616
    %1653 = vmatprep.subr.mxu0 0.0
    %1654 = vmatpush2.msra.mxu0 0.0
    %1655 = vmatprep.subr.mxu0 0.0
    %1656 = vmatpush2.msra.mxu0 0.0
    %1657 = vmatprep.subr.mxu0 0.0
    %1658 = vmatpush2.msra.mxu0 0.0
    %1659 = vmatprep.subr.mxu0 0.0
    %1660 = vmatpush2.msra.mxu0 0.0
    %1661 = vmatprep.subr.mxu0 0.0
    %1662 = vmatpush2.msra.mxu0 0.0
    %1663 = vmatprep.subr.mxu0 0.0
    %1664 = vmatpush2.msra.mxu0 0.0
    %1665 = vmatprep.subr.mxu0 0.0
    %1666 = vmatpush2.msra.mxu0 0.0
    %1667 = vmatprep.subr.mxu0 0.0
    %1668 = vmatpush2.msra.mxu0 0.0
    %1669 = vmatprep.subr.mxu0 0.0
    %1670 = vmatpush2.msra.mxu0 0.0
    %1671 = vmatprep.subr.mxu0 0.0
    %1672 = vmatpush2.msra.mxu0 0.0
    %1673 = vmatprep.subr.mxu0 0.0
    %1674 = vmatpush2.msra.mxu0 0.0
    %1675 = vmatprep.subr.mxu0 0.0
    %1676 = vmatpush2.msra.mxu0 0.0
    %1677 = vmatprep.subr.mxu0 0.0
    %1678 = vmatpush2.msra.mxu0 0.0
    %1679 = vmatprep.subr.mxu0 0.0
    %1680 = vmatpush2.msra.mxu0 0.0
    %1681 = vmatprep.subr.mxu0 0.0
    %1682 = vmatpush2.msra.mxu0 0.0
    %1683 = vmatprep.subr.mxu0 0.0
    %1684 = vmatpush2.msra.mxu0 0.0
    %1685 = vmatprep.mubr.f32.mxu0 0.0
    %1686 = vmatmul.mubr.f32.gmra.mxu0 %v1619
    %v1687 = vpop.f32.mrf.mxu0
    %v1688 = vadd.f32 0.0, %v1687
    %v1689 = vpop.f32.mrf.mxu0
    %1690 = vdwg.mxu0
    %1691 = vrot.lane.b32.xlu0 %v281, 40
    %v1692 = vpop.permute.xlu0 %1691
    %v1695 = vsel %vm287, %v1614, 0
    %1697 = vmatprep.subr.mxu0 0.0
    %1698 = vmatpush1.msra.mxu0 0.0
    %1699 = vmatprep.subr.mxu0 0.0
    %1700 = vmatpush1.msra.mxu0 0.0
    %1701 = vmatprep.subr.mxu0 0.0
    %1702 = vmatpush1.msra.mxu0 0.0
    %1703 = vmatprep.subr.mxu0 0.0
    %1704 = vmatpush1.msra.mxu0 0.0
    %1705 = vmatprep.subr.mxu0 0.0
    %1706 = vmatpush1.msra.mxu0 0.0
    %1707 = vmatprep.subr.mxu0 0.0
    %1708 = vmatpush1.msra.mxu0 0.0
    %1709 = vmatprep.subr.mxu0 0.0
    %1710 = vmatpush1.msra.mxu0 0.0
    %1711 = vmatprep.subr.mxu0 0.0
    %1712 = vmatpush1.msra.mxu0 0.0
    %1713 = vmatprep.subr.mxu0 0.0
    %1714 = vmatpush1.msra.mxu0 0.0
    %1715 = vmatprep.subr.mxu0 0.0
    %1716 = vmatpush1.msra.mxu0 0.0
    %1717 = vmatprep.subr.mxu0 0.0
    %1718 = vmatpush1.msra.mxu0 0.0
    %1719 = vmatprep.subr.mxu0 0.0
    %1720 = vmatpush1.msra.mxu0 0.0
    %1721 = vmatprep.subr.mxu0 0.0
    %1722 = vmatpush1.msra.mxu0 0.0
    %1723 = vmatprep.subr.mxu0 0.0
    %1724 = vmatpush1.msra.mxu0 0.0
    %1725 = vmatprep.subr.mxu0 0.0
    %1726 = vmatpush1.msra.mxu0 0.0
    %1727 = vmatprep.subr.mxu0 0.0
    %1728 = vmatpush1.msra.mxu0 %v1692
    %1729 = vmatprep.subr.mxu0 0.0
    %1730 = vmatpush2.msra.mxu0 0.0
    %1731 = vmatprep.subr.mxu0 0.0
    %1732 = vmatpush2.msra.mxu0 0.0
    %1733 = vmatprep.subr.mxu0 0.0
    %1734 = vmatpush2.msra.mxu0 0.0
    %1735 = vmatprep.subr.mxu0 0.0
    %1736 = vmatpush2.msra.mxu0 0.0
    %1737 = vmatprep.subr.mxu0 0.0
    %1738 = vmatpush2.msra.mxu0 0.0
    %1739 = vmatprep.subr.mxu0 0.0
    %1740 = vmatpush2.msra.mxu0 0.0
    %1741 = vmatprep.subr.mxu0 0.0
    %1742 = vmatpush2.msra.mxu0 0.0
    %1743 = vmatprep.subr.mxu0 0.0
    %1744 = vmatpush2.msra.mxu0 0.0
    %1745 = vmatprep.subr.mxu0 0.0
    %1746 = vmatpush2.msra.mxu0 0.0
    %1747 = vmatprep.subr.mxu0 0.0
    %1748 = vmatpush2.msra.mxu0 0.0
    %1749 = vmatprep.subr.mxu0 0.0
    %1750 = vmatpush2.msra.mxu0 0.0
    %1751 = vmatprep.subr.mxu0 0.0
    %1752 = vmatpush2.msra.mxu0 0.0
    %1753 = vmatprep.subr.mxu0 0.0
    %1754 = vmatpush2.msra.mxu0 0.0
    %1755 = vmatprep.subr.mxu0 0.0
    %1756 = vmatpush2.msra.mxu0 0.0
    %1757 = vmatprep.subr.mxu0 0.0
    %1758 = vmatpush2.msra.mxu0 0.0
    %1759 = vmatprep.subr.mxu0 0.0
    %1760 = vmatpush2.msra.mxu0 0.0
    %1761 = vmatprep.mubr.f32.mxu0 0.0
    %1762 = vmatmul.mubr.f32.gmra.mxu0 %v1695
    %v1763 = vpop.f32.mrf.mxu0
    %v1764 = vadd.f32 0.0, %v1763
    %v1765 = vpop.f32.mrf.mxu0
    %1766 = vdwg.mxu0
    %v1767 = vpack.c.bf16 %v1764, %v1688
    %v1768 = vpack.c.b16 %v235, %v235
    %1769 = vrot.lane.b32.xlu0 %v1768, 32
    %v1770 = vpop.permute.xlu0 %1769
    %v1772 = vsel %vm287, %v1767, 0
    %v1775 = vsel %vm955, %v1770, 0
    %1777 = vmatprep.subr.bf16.mxu0 0
    %1778 = vmatpush1.bf16.msra.mxu0 0
    %1779 = vmatprep.subr.bf16.mxu0 0
    %1780 = vmatpush1.bf16.msra.mxu0 0
    %1781 = vmatprep.subr.bf16.mxu0 0
    %1782 = vmatpush1.bf16.msra.mxu0 0
    %1783 = vmatprep.subr.bf16.mxu0 0
    %1784 = vmatpush1.bf16.msra.mxu0 0
    %1785 = vmatprep.subr.bf16.mxu0 0
    %1786 = vmatpush1.bf16.msra.mxu0 0
    %1787 = vmatprep.subr.bf16.mxu0 0
    %1788 = vmatpush1.bf16.msra.mxu0 0
    %1789 = vmatprep.subr.bf16.mxu0 0
    %1790 = vmatpush1.bf16.msra.mxu0 0
    %1791 = vmatprep.subr.bf16.mxu0 0
    %1792 = vmatpush1.bf16.msra.mxu0 %v1775
    %1793 = vmatprep.subr.bf16.mxu0 0
    %1794 = vmatpush2.bf16.msra.mxu0 0
    %1795 = vmatprep.subr.bf16.mxu0 0
    %1796 = vmatpush2.bf16.msra.mxu0 0
    %1797 = vmatprep.subr.bf16.mxu0 0
    %1798 = vmatpush2.bf16.msra.mxu0 0
    %1799 = vmatprep.subr.bf16.mxu0 0
    %1800 = vmatpush2.bf16.msra.mxu0 0
    %1801 = vmatprep.subr.bf16.mxu0 0
    %1802 = vmatpush2.bf16.msra.mxu0 0
    %1803 = vmatprep.subr.bf16.mxu0 0
    %1804 = vmatpush2.bf16.msra.mxu0 0
    %1805 = vmatprep.subr.bf16.mxu0 0
    %1806 = vmatpush2.bf16.msra.mxu0 0
    %1807 = vmatprep.subr.bf16.mxu0 0
    %1808 = vmatpush2.bf16.msra.mxu0 0
    %1809 = vmatprep.mubr.bf16.mxu0 0
    %1810 = vmatmul.mubr.bf16.gmra.mxu0 %v1772
    %v1811 = vpop.f32.mrf.mxu0
    %v1812 = vadd.f32 0.0, %v1811
    %v1813 = vpop.f32.mrf.mxu0
    %v1814 = vpop.f32.mrf.mxu0
    %v1815 = vadd.f32 0.0, %v1814
    %v1816 = vpop.f32.mrf.mxu0
    %1817 = vdwg.mxu0
    %v1818 = vadd.f32 %v1433, %v1812
    %v1819 = vadd.f32 %v1434, %v1815
    %v1820 = vlaneseq
    %v1821 = vshrl.u32 %v1820, 7
    %v1822 = vsub.s32 5, %v1821
    %v1823 = vrot.slane %v166, %v1822
    %v1824 = vadd.f32 %v1818, %v1823
    %v1825 = vadd.f32 %v1819, %v1823
    %v1826 = vadd.f32 %v1824, %v164
    %v1827 = vadd.f32 %v1825, %v165
    %v1828 = vsel %vm183, %v1826, 0.0
    %1829 = vadd.xlane.f32.xlu0 %v1828
    %v1830 = vpop.xlane.xlu0 %1829
    %v1831 = vsel %vm183, %v1827, 0.0
    %1832 = vadd.xlane.f32.xlu0 %v1831
    %v1833 = vpop.xlane.xlu0 %1832
    %v1834 = vmul.f32 %v1830, %v190
    %v1835 = vmul.f32 %v1833, %v190
    %v1836 = vsub.f32 %v1826, %v1834
    %v1837 = vsub.f32 %v1827, %v1835
    %v1838 = vmul.f32 %v1836, %v1836
    %v1839 = vmul.f32 %v1837, %v1837
    %v1840 = vsel %vm183, %v1838, 0.0
    %1841 = vadd.xlane.f32.xlu0 %v1840
    %v1842 = vpop.xlane.xlu0 %1841
    %v1843 = vsel %vm183, %v1839, 0.0
    %1844 = vadd.xlane.f32.xlu0 %v1843
    %v1845 = vpop.xlane.xlu0 %1844
    %v1846 = vmul.f32 %v1842, %v190
    %v1847 = vmul.f32 %v1845, %v190
    %v1848 = vadd.f32 %v1846, 1e-12
    %v1849 = vadd.f32 %v1847, 1e-12
    %v1850 = vrsqrt.pop %v1848
    %v1851 = vrsqrt.pop %v1849
    %v1852 = vmul.f32 %v1836, %v1850
    %v1853 = vmul.f32 %v1837, %v1851
    %v1854 = vlaneseq
    %v1855 = vshrl.u32 %v1854, 7
    %v1856 = vsub.s32 2, %v1855
    %v1857 = vrot.slane %v166, %v1856
    %v1858 = vmul.f32 %v1852, %v1857
    %v1859 = vmul.f32 %v1853, %v1857
    %v1860 = vlaneseq
    %v1861 = vshrl.u32 %v1860, 7
    %v1862 = vsub.s32 3, %v1861
    %v1863 = vrot.slane %v166, %v1862
    %v1864 = vadd.f32 %v1858, %v1863
    %v1865 = vadd.f32 %v1859, %v1863
    %v1866 = vpack.c.bf16 %v1865, %v1864
    %v1867 = vlaneseq
    %v1868 = vshrl.u32 %v1867, 7
    %v1869 = vsub.s32 6, %v1868
    %v1870 = vrot.slane %v166, %v1869
    %v1875 = vunpack.c.l.b16 %v171
    %v1876 = vunpack.c.l.b16 %v172
    %v1877 = vunpack.c.l.b16 %v173
    %v1878 = vunpack.c.l.b16 %v174
    %v1879 = vpack.c.b16 %v1876, %v1875
    %v1880 = vpack.c.b16 %v1878, %v1877
    %v1884 = vsel %vm183, %v1866, 0
    %1886 = vmatprep.subr.bf16.mxu0 0
    %1887 = vmatpush1.bf16.msra.mxu0 0
    %1888 = vmatprep.subr.bf16.mxu0 0
    %1889 = vmatpush1.bf16.msra.mxu0 0
    %1890 = vmatprep.subr.bf16.mxu0 0
    %1891 = vmatpush1.bf16.msra.mxu0 0
    %1892 = vmatprep.subr.bf16.mxu0 0
    %1893 = vmatpush1.bf16.msra.mxu0 0
    %1894 = vmatprep.subr.bf16.mxu0 0
    %1895 = vmatpush1.bf16.msra.mxu0 0
    %1896 = vmatprep.subr.bf16.mxu0 0
    %1897 = vmatpush1.bf16.msra.mxu0 0
    %1898 = vmatprep.subr.bf16.mxu0 0
    %1899 = vmatpush1.bf16.msra.mxu0 %v1880
    %1900 = vmatprep.subr.bf16.mxu0 0
    %1901 = vmatpush1.bf16.msra.mxu0 %v1879
    %1902 = vmatprep.subr.bf16.mxu0 0
    %1903 = vmatpush2.bf16.msra.mxu0 0
    %1904 = vmatprep.subr.bf16.mxu0 0
    %1905 = vmatpush2.bf16.msra.mxu0 0
    %1906 = vmatprep.subr.bf16.mxu0 0
    %1907 = vmatpush2.bf16.msra.mxu0 0
    %1908 = vmatprep.subr.bf16.mxu0 0
    %1909 = vmatpush2.bf16.msra.mxu0 0
    %1910 = vmatprep.subr.bf16.mxu0 0
    %1911 = vmatpush2.bf16.msra.mxu0 0
    %1912 = vmatprep.subr.bf16.mxu0 0
    %1913 = vmatpush2.bf16.msra.mxu0 0
    %1914 = vmatprep.subr.bf16.mxu0 0
    %1915 = vmatpush2.bf16.msra.mxu0 0
    %1916 = vmatprep.subr.bf16.mxu0 0
    %1917 = vmatpush2.bf16.msra.mxu0 0
    %1918 = vmatprep.mubr.bf16.mxu0 0
    %1919 = vmatmul.mubr.bf16.gmra.mxu0 %v1884
    %v1920 = vpop.f32.mrf.mxu0
    %v1921 = vadd.f32 %v1870, %v1920
    %v1922 = vpop.f32.mrf.mxu0
    %v1923 = vpop.f32.mrf.mxu0
    %v1924 = vadd.f32 %v1870, %v1923
    %v1925 = vpop.f32.mrf.mxu0
    %1926 = vdwg.mxu0
    %v1927 = vmul.f32 %v1921, 0.5
    %v1928 = vmul.f32 %v1924, 0.5
    %v1929 = vmul.f32 %v1921, 0.70710677
    %v1930 = vmul.f32 %v1924, 0.70710677
    %vm1931 = vcmp.ge.f32.partialorder %v1929, 0.0
    %vm1932 = vcmp.ge.f32.partialorder %v1930, 0.0
    %v1933 = vsub.f32 0.0, %v1929
    %v1934 = vsub.f32 0.0, %v1930
    %v1935 = vsel %vm1931, %v1929, %v1933
    %v1936 = vsel %vm1932, %v1930, %v1934
    %v1937 = vmul.f32 %v1935, 0.3275911
    %v1938 = vmul.f32 %v1936, 0.3275911
    %v1939 = vadd.f32 %v1937, 1.0
    %v1940 = vadd.f32 %v1938, 1.0
    %v1941 = vrcp.pop %v1939
    %v1942 = vmul.f32 1.0, %v1941
    %v1943 = vrcp.pop %v1940
    %v1944 = vmul.f32 1.0, %v1943
    %v1945 = vmul.f32 %v1942, 1.0614054
    %v1946 = vmul.f32 %v1944, 1.0614054
    %v1947 = vadd.f32 %v1945, -1.4531521
    %v1948 = vadd.f32 %v1946, -1.4531521
    %v1949 = vmul.f32 %v1947, %v1942
    %v1950 = vmul.f32 %v1948, %v1944
    %v1951 = vadd.f32 %v1949, 1.4214138
    %v1952 = vadd.f32 %v1950, 1.4214138
    %v1953 = vmul.f32 %v1951, %v1942
    %v1954 = vmul.f32 %v1952, %v1944
    %v1955 = vadd.f32 %v1953, -0.28449672
    %v1956 = vadd.f32 %v1954, -0.28449672
    %v1957 = vmul.f32 %v1955, %v1942
    %v1958 = vmul.f32 %v1956, %v1944
    %v1959 = vadd.f32 %v1957, 0.2548296
    %v1960 = vadd.f32 %v1958, 0.2548296
    %v1961 = vmul.f32 %v1959, %v1942
    %v1962 = vmul.f32 %v1960, %v1944
    %v1963 = vsub.f32 0.0, %v1935
    %v1964 = vsub.f32 0.0, %v1936
    %v1965 = vmul.f32 %v1963, %v1935
    %v1966 = vmul.f32 %v1964, %v1936
    %v1967 = vmul.f32 %v1965, 1.442695
    %v1968 = vpow.pop %v1967
    %v1969 = vmul.f32 %v1966, 1.442695
    %v1970 = vpow.pop %v1969
    %v1971 = vmul.f32 %v1961, %v1968
    %v1972 = vmul.f32 %v1962, %v1970
    %v1973 = vsub.f32 1.0, %v1971
    %v1974 = vsub.f32 1.0, %v1972
    %v1975 = vsub.f32 0.0, %v1973
    %v1976 = vsub.f32 0.0, %v1974
    %v1977 = vsel %vm1931, %v1973, %v1975
    %v1978 = vsel %vm1932, %v1974, %v1976
    %v1979 = vadd.f32 %v1977, 1.0
    %v1980 = vadd.f32 %v1978, 1.0
    %v1981 = vmul.f32 %v1927, %v1979
    %v1982 = vmul.f32 %v1928, %v1980
    %v1983 = vpack.c.bf16 %v1982, %v1981
    %v1984 = vlaneseq
    %v1985 = vshrl.u32 %v1984, 7
    %v1986 = vsub.s32 7, %v1985
    %v1987 = vrot.slane %v166, %v1986
    %v1996 = vunpack.c.l.b16 %v175
    %v1997 = vunpack.c.l.b16 %v176
    %v1998 = vunpack.c.l.b16 %v177
    %v1999 = vunpack.c.l.b16 %v178
    %v2000 = vunpack.c.l.b16 %v179
    %v2001 = vunpack.c.l.b16 %v180
    %v2002 = vunpack.c.l.b16 %v181
    %v2003 = vunpack.c.l.b16 %v182
    %v2004 = vpack.c.b16 %v1997, %v1996
    %v2005 = vpack.c.b16 %v1999, %v1998
    %v2006 = vpack.c.b16 %v2001, %v2000
    %v2007 = vpack.c.b16 %v2003, %v2002
    %v2013 = vsel %vm71, %v1983, 0
    %2015 = vmatprep.subr.bf16.mxu0 0
    %2016 = vmatpush1.bf16.msra.mxu0 0
    %2017 = vmatprep.subr.bf16.mxu0 0
    %2018 = vmatpush1.bf16.msra.mxu0 0
    %2019 = vmatprep.subr.bf16.mxu0 0
    %2020 = vmatpush1.bf16.msra.mxu0 0
    %2021 = vmatprep.subr.bf16.mxu0 0
    %2022 = vmatpush1.bf16.msra.mxu0 0
    %2023 = vmatprep.subr.bf16.mxu0 0
    %2024 = vmatpush1.bf16.msra.mxu0 %v2007
    %2025 = vmatprep.subr.bf16.mxu0 0
    %2026 = vmatpush1.bf16.msra.mxu0 %v2006
    %2027 = vmatprep.subr.bf16.mxu0 0
    %2028 = vmatpush1.bf16.msra.mxu0 %v2005
    %2029 = vmatprep.subr.bf16.mxu0 0
    %2030 = vmatpush1.bf16.msra.mxu0 %v2004
    %2031 = vmatprep.subr.bf16.mxu0 0
    %2032 = vmatpush2.bf16.msra.mxu0 0
    %2033 = vmatprep.subr.bf16.mxu0 0
    %2034 = vmatpush2.bf16.msra.mxu0 0
    %2035 = vmatprep.subr.bf16.mxu0 0
    %2036 = vmatpush2.bf16.msra.mxu0 0
    %2037 = vmatprep.subr.bf16.mxu0 0
    %2038 = vmatpush2.bf16.msra.mxu0 0
    %2039 = vmatprep.subr.bf16.mxu0 0
    %2040 = vmatpush2.bf16.msra.mxu0 0
    %2041 = vmatprep.subr.bf16.mxu0 0
    %2042 = vmatpush2.bf16.msra.mxu0 0
    %2043 = vmatprep.subr.bf16.mxu0 0
    %2044 = vmatpush2.bf16.msra.mxu0 0
    %2045 = vmatprep.subr.bf16.mxu0 0
    %2046 = vmatpush2.bf16.msra.mxu0 0
    %2047 = vmatprep.mubr.bf16.mxu0 0
    %2048 = vmatmul.mubr.bf16.gmra.mxu0 %v2013
    %v2049 = vpop.f32.mrf.mxu0
    %v2050 = vadd.f32 %v1987, %v2049
    %v2051 = vpop.f32.mrf.mxu0
    %v2052 = vpop.f32.mrf.mxu0
    %v2053 = vadd.f32 %v1987, %v2052
    %v2054 = vpop.f32.mrf.mxu0
    %2055 = vdwg.mxu0
    %v2056 = vadd.f32 %v2050, %v1826
    %v2057 = vadd.f32 %v2053, %v1827
    %v2058 = vld [vmem:[#allocation2 + $0x48] sm:$0xff]
    %v2059 = vld [vmem:[#allocation5 + $0x40] sm:$0xf]
    %v2060 = vld [vmem:[#allocation5 + $0x44] sm:$0xf]
    %v2061 = vld [vmem:[#allocation5 + $0x48] sm:$0xf]
    %v2062 = vld [vmem:[#allocation5 + $0x4c] sm:$0xf]
    %v2063 = vld [vmem:[#allocation5 + $0x50] sm:$0xf]
    %v2064 = vld [vmem:[#allocation5 + $0x54] sm:$0xf]
    %v2065 = vld [vmem:[#allocation5 + $0x58] sm:$0xf]
    %v2066 = vld [vmem:[#allocation5 + $0x5c] sm:$0xf]
    %v2067 = vld [vmem:[#allocation5 + $0x60] sm:$0xf]
    %v2068 = vld [vmem:[#allocation5 + $0x64] sm:$0xf]
    %v2069 = vld [vmem:[#allocation5 + $0x68] sm:$0xf]
    %v2070 = vld [vmem:[#allocation5 + $0x6c] sm:$0xf]
    %v2071 = vld [vmem:[#allocation5 + $0x70] sm:$0xf]
    %v2072 = vld [vmem:[#allocation5 + $0x74] sm:$0xf]
    %v2073 = vld [vmem:[#allocation5 + $0x78] sm:$0xf]
    %v2074 = vld [vmem:[#allocation5 + $0x7c] sm:$0xf]
    %v2075 = vsel %vm183, %v2056, 0.0
    %2076 = vadd.xlane.f32.xlu0 %v2075
    %v2077 = vpop.xlane.xlu0 %2076
    %v2078 = vsel %vm183, %v2057, 0.0
    %2079 = vadd.xlane.f32.xlu0 %v2078
    %v2080 = vpop.xlane.xlu0 %2079
    %v2081 = vmul.f32 %v2077, %v190
    %v2082 = vmul.f32 %v2080, %v190
    %v2083 = vsub.f32 %v2056, %v2081
    %v2084 = vsub.f32 %v2057, %v2082
    %v2085 = vmul.f32 %v2083, %v2083
    %v2086 = vmul.f32 %v2084, %v2084
    %v2087 = vsel %vm183, %v2085, 0.0
    %2088 = vadd.xlane.f32.xlu0 %v2087
    %v2089 = vpop.xlane.xlu0 %2088
    %v2090 = vsel %vm183, %v2086, 0.0
    %2091 = vadd.xlane.f32.xlu0 %v2090
    %v2092 = vpop.xlane.xlu0 %2091
    %v2093 = vmul.f32 %v2089, %v190
    %v2094 = vmul.f32 %v2092, %v190
    %v2095 = vadd.f32 %v2093, 1e-12
    %v2096 = vadd.f32 %v2094, 1e-12
    %v2097 = vrsqrt.pop %v2095
    %v2098 = vrsqrt.pop %v2096
    %v2099 = vmul.f32 %v2083, %v2097
    %v2100 = vmul.f32 %v2084, %v2098
    %v2101 = vlaneseq
    %v2102 = vshrl.u32 %v2101, 7
    %v2103 = vsub.s32 0, %v2102
    %v2104 = vrot.slane %v2058, %v2103
    %v2105 = vmul.f32 %v2099, %v2104
    %v2106 = vmul.f32 %v2100, %v2104
    %v2107 = vlaneseq
    %v2108 = vshrl.u32 %v2107, 7
    %v2109 = vsub.s32 1, %v2108
    %v2110 = vrot.slane %v2058, %v2109
    %v2111 = vadd.f32 %v2105, %v2110
    %v2112 = vadd.f32 %v2106, %v2110
    %v2113 = vpack.c.bf16 %v2112, %v2111
    %v2114 = vlaneseq
    %v2115 = vshrl.u32 %v2114, 7
    %v2116 = vsub.s32 4, %v2115
    %v2117 = vrot.slane %v2058, %v2116
    %v2122 = vunpack.c.l.b16 %v2059
    %v2123 = vunpack.c.l.b16 %v2060
    %v2124 = vunpack.c.l.b16 %v2061
    %v2125 = vunpack.c.l.b16 %v2062
    %v2126 = vpack.c.b16 %v2123, %v2122
    %v2127 = vpack.c.b16 %v2125, %v2124
    %v2131 = vsel %vm183, %v2113, 0
    %2133 = vmatprep.subr.bf16.mxu0 0
    %2134 = vmatpush1.bf16.msra.mxu0 0
    %2135 = vmatprep.subr.bf16.mxu0 0
    %2136 = vmatpush1.bf16.msra.mxu0 0
    %2137 = vmatprep.subr.bf16.mxu0 0
    %2138 = vmatpush1.bf16.msra.mxu0 0
    %2139 = vmatprep.subr.bf16.mxu0 0
    %2140 = vmatpush1.bf16.msra.mxu0 0
    %2141 = vmatprep.subr.bf16.mxu0 0
    %2142 = vmatpush1.bf16.msra.mxu0 0
    %2143 = vmatprep.subr.bf16.mxu0 0
    %2144 = vmatpush1.bf16.msra.mxu0 0
    %2145 = vmatprep.subr.bf16.mxu0 0
    %2146 = vmatpush1.bf16.msra.mxu0 %v2127
    %2147 = vmatprep.subr.bf16.mxu0 0
    %2148 = vmatpush1.bf16.msra.mxu0 %v2126
    %2149 = vmatprep.subr.bf16.mxu0 0
    %2150 = vmatpush2.bf16.msra.mxu0 0
    %2151 = vmatprep.subr.bf16.mxu0 0
    %2152 = vmatpush2.bf16.msra.mxu0 0
    %2153 = vmatprep.subr.bf16.mxu0 0
    %2154 = vmatpush2.bf16.msra.mxu0 0
    %2155 = vmatprep.subr.bf16.mxu0 0
    %2156 = vmatpush2.bf16.msra.mxu0 0
    %2157 = vmatprep.subr.bf16.mxu0 0
    %2158 = vmatpush2.bf16.msra.mxu0 0
    %2159 = vmatprep.subr.bf16.mxu0 0
    %2160 = vmatpush2.bf16.msra.mxu0 0
    %2161 = vmatprep.subr.bf16.mxu0 0
    %2162 = vmatpush2.bf16.msra.mxu0 0
    %2163 = vmatprep.subr.bf16.mxu0 0
    %2164 = vmatpush2.bf16.msra.mxu0 0
    %2165 = vmatprep.mubr.bf16.mxu0 0
    %2166 = vmatmul.mubr.bf16.gmra.mxu0 %v2131
    %v2167 = vpop.f32.mrf.mxu0
    %v2168 = vadd.f32 %v2117, %v2167
    %v2169 = vpop.f32.mrf.mxu0
    %v2170 = vpop.f32.mrf.mxu0
    %v2171 = vadd.f32 %v2117, %v2170
    %v2172 = vpop.f32.mrf.mxu0
    %2173 = vdwg.mxu0
    %2175 = vrot.lane.b32.xlu0 %v2168, 96
    %v2176 = vpop.permute.xlu0 %2175
    %v2177 = vsel %vm287, %v2168, 0
    %v2179 = vsel %vm287, %v2176, 0
    %2181 = vmatprep.subr.mxu0 0.0
    %2182 = vmatpush1.xpose.msra.mxu0 0.0
    %2183 = vmatprep.subr.mxu0 0.0
    %2184 = vmatpush1.xpose.msra.mxu0 0.0
    %2185 = vmatprep.subr.mxu0 0.0
    %2186 = vmatpush1.xpose.msra.mxu0 0.0
    %2187 = vmatprep.subr.mxu0 0.0
    %2188 = vmatpush1.xpose.msra.mxu0 0.0
    %2189 = vmatprep.subr.mxu0 0.0
    %2190 = vmatpush1.xpose.msra.mxu0 0.0
    %2191 = vmatprep.subr.mxu0 0.0
    %2192 = vmatpush1.xpose.msra.mxu0 0.0
    %2193 = vmatprep.subr.mxu0 0.0
    %2194 = vmatpush1.xpose.msra.mxu0 0.0
    %2195 = vmatprep.subr.mxu0 0.0
    %2196 = vmatpush1.xpose.msra.mxu0 0.0
    %2197 = vmatprep.subr.mxu0 0.0
    %2198 = vmatpush1.xpose.msra.mxu0 0.0
    %2199 = vmatprep.subr.mxu0 0.0
    %2200 = vmatpush1.xpose.msra.mxu0 0.0
    %2201 = vmatprep.subr.mxu0 0.0
    %2202 = vmatpush1.xpose.msra.mxu0 0.0
    %2203 = vmatprep.subr.mxu0 0.0
    %2204 = vmatpush1.xpose.msra.mxu0 0.0
    %2205 = vmatprep.subr.mxu0 0.0
    %2206 = vmatpush1.xpose.msra.mxu0 0.0
    %2207 = vmatprep.subr.mxu0 0.0
    %2208 = vmatpush1.xpose.msra.mxu0 0.0
    %2209 = vmatprep.subr.mxu0 0.0
    %2210 = vmatpush1.xpose.msra.mxu0 0.0
    %2211 = vmatprep.subr.mxu0 0.0
    %2212 = vmatpush1.xpose.msra.mxu0 %v2179
    %2213 = vmatprep.subr.mxu0 0.0
    %2214 = vmatpush2.xpose.msra.mxu0 0.0
    %2215 = vmatprep.subr.mxu0 0.0
    %2216 = vmatpush2.xpose.msra.mxu0 0.0
    %2217 = vmatprep.subr.mxu0 0.0
    %2218 = vmatpush2.xpose.msra.mxu0 0.0
    %2219 = vmatprep.subr.mxu0 0.0
    %2220 = vmatpush2.xpose.msra.mxu0 0.0
    %2221 = vmatprep.subr.mxu0 0.0
    %2222 = vmatpush2.xpose.msra.mxu0 0.0
    %2223 = vmatprep.subr.mxu0 0.0
    %2224 = vmatpush2.xpose.msra.mxu0 0.0
    %2225 = vmatprep.subr.mxu0 0.0
    %2226 = vmatpush2.xpose.msra.mxu0 0.0
    %2227 = vmatprep.subr.mxu0 0.0
    %2228 = vmatpush2.xpose.msra.mxu0 0.0
    %2229 = vmatprep.subr.mxu0 0.0
    %2230 = vmatpush2.xpose.msra.mxu0 0.0
    %2231 = vmatprep.subr.mxu0 0.0
    %2232 = vmatpush2.xpose.msra.mxu0 0.0
    %2233 = vmatprep.subr.mxu0 0.0
    %2234 = vmatpush2.xpose.msra.mxu0 0.0
    %2235 = vmatprep.subr.mxu0 0.0
    %2236 = vmatpush2.xpose.msra.mxu0 0.0
    %2237 = vmatprep.subr.mxu0 0.0
    %2238 = vmatpush2.xpose.msra.mxu0 0.0
    %2239 = vmatprep.subr.mxu0 0.0
    %2240 = vmatpush2.xpose.msra.mxu0 0.0
    %2241 = vmatprep.subr.mxu0 0.0
    %2242 = vmatpush2.xpose.msra.mxu0 0.0
    %2243 = vmatprep.subr.mxu0 0.0
    %2244 = vmatpush2.xpose.msra.mxu0 0.0
    %2245 = vmatprep.mubr.f32.mxu0 0.0
    %2246 = vmatmul.mubr.f32.gmra.mxu0 %v2177
    %v2247 = vpop.f32.mrf.mxu0
    %v2248 = vadd.f32 0.0, %v2247
    %v2249 = vpop.f32.mrf.mxu0
    %2250 = vdwg.mxu0
    %2252 = vrot.lane.b32.xlu0 %v2171, 96
    %v2253 = vpop.permute.xlu0 %2252
    %v2254 = vsel %vm287, %v2171, 0
    %v2256 = vsel %vm287, %v2253, 0
    %2258 = vmatprep.subr.mxu0 0.0
    %2259 = vmatpush1.xpose.msra.mxu0 0.0
    %2260 = vmatprep.subr.mxu0 0.0
    %2261 = vmatpush1.xpose.msra.mxu0 0.0
    %2262 = vmatprep.subr.mxu0 0.0
    %2263 = vmatpush1.xpose.msra.mxu0 0.0
    %2264 = vmatprep.subr.mxu0 0.0
    %2265 = vmatpush1.xpose.msra.mxu0 0.0
    %2266 = vmatprep.subr.mxu0 0.0
    %2267 = vmatpush1.xpose.msra.mxu0 0.0
    %2268 = vmatprep.subr.mxu0 0.0
    %2269 = vmatpush1.xpose.msra.mxu0 0.0
    %2270 = vmatprep.subr.mxu0 0.0
    %2271 = vmatpush1.xpose.msra.mxu0 0.0
    %2272 = vmatprep.subr.mxu0 0.0
    %2273 = vmatpush1.xpose.msra.mxu0 0.0
    %2274 = vmatprep.subr.mxu0 0.0
    %2275 = vmatpush1.xpose.msra.mxu0 0.0
    %2276 = vmatprep.subr.mxu0 0.0
    %2277 = vmatpush1.xpose.msra.mxu0 0.0
    %2278 = vmatprep.subr.mxu0 0.0
    %2279 = vmatpush1.xpose.msra.mxu0 0.0
    %2280 = vmatprep.subr.mxu0 0.0
    %2281 = vmatpush1.xpose.msra.mxu0 0.0
    %2282 = vmatprep.subr.mxu0 0.0
    %2283 = vmatpush1.xpose.msra.mxu0 0.0
    %2284 = vmatprep.subr.mxu0 0.0
    %2285 = vmatpush1.xpose.msra.mxu0 0.0
    %2286 = vmatprep.subr.mxu0 0.0
    %2287 = vmatpush1.xpose.msra.mxu0 0.0
    %2288 = vmatprep.subr.mxu0 0.0
    %2289 = vmatpush1.xpose.msra.mxu0 %v2256
    %2290 = vmatprep.subr.mxu0 0.0
    %2291 = vmatpush2.xpose.msra.mxu0 0.0
    %2292 = vmatprep.subr.mxu0 0.0
    %2293 = vmatpush2.xpose.msra.mxu0 0.0
    %2294 = vmatprep.subr.mxu0 0.0
    %2295 = vmatpush2.xpose.msra.mxu0 0.0
    %2296 = vmatprep.subr.mxu0 0.0
    %2297 = vmatpush2.xpose.msra.mxu0 0.0
    %2298 = vmatprep.subr.mxu0 0.0
    %2299 = vmatpush2.xpose.msra.mxu0 0.0
    %2300 = vmatprep.subr.mxu0 0.0
    %2301 = vmatpush2.xpose.msra.mxu0 0.0
    %2302 = vmatprep.subr.mxu0 0.0
    %2303 = vmatpush2.xpose.msra.mxu0 0.0
    %2304 = vmatprep.subr.mxu0 0.0
    %2305 = vmatpush2.xpose.msra.mxu0 0.0
    %2306 = vmatprep.subr.mxu0 0.0
    %2307 = vmatpush2.xpose.msra.mxu0 0.0
    %2308 = vmatprep.subr.mxu0 0.0
    %2309 = vmatpush2.xpose.msra.mxu0 0.0
    %2310 = vmatprep.subr.mxu0 0.0
    %2311 = vmatpush2.xpose.msra.mxu0 0.0
    %2312 = vmatprep.subr.mxu0 0.0
    %2313 = vmatpush2.xpose.msra.mxu0 0.0
    %2314 = vmatprep.subr.mxu0 0.0
    %2315 = vmatpush2.xpose.msra.mxu0 0.0
    %2316 = vmatprep.subr.mxu0 0.0
    %2317 = vmatpush2.xpose.msra.mxu0 0.0
    %2318 = vmatprep.subr.mxu0 0.0
    %2319 = vmatpush2.xpose.msra.mxu0 0.0
    %2320 = vmatprep.subr.mxu0 0.0
    %2321 = vmatpush2.xpose.msra.mxu0 0.0
    %2322 = vmatprep.mubr.f32.mxu0 0.0
    %2323 = vmatmul.mubr.f32.gmra.mxu0 %v2254
    %v2324 = vpop.f32.mrf.mxu0
    %v2325 = vadd.f32 0.0, %v2324
    %v2326 = vpop.f32.mrf.mxu0
    %2327 = vdwg.mxu0
    %v2328 = vmul.f32 %v2248, 0.35355338
    %v2329 = vmul.f32 %v2325, 0.35355338
    %v2330 = vsel %vm287, %v2328, -inf
    %2331 = vmax.xlane.f32.xlu0 %v2330
    %v2332 = vpop.xlane.xlu0 %2331
    %v2333 = vsel %vm287, %v2329, -inf
    %2334 = vmax.xlane.f32.xlu0 %v2333
    %v2335 = vpop.xlane.xlu0 %2334
    %v2336 = vsub.f32 %v2328, %v2332
    %v2337 = vsub.f32 %v2329, %v2335
    %v2338 = vmul.f32 %v2336, 1.442695
    %v2339 = vpow.pop %v2338
    %v2340 = vmul.f32 %v2337, 1.442695
    %v2341 = vpow.pop %v2340
    %v2342 = vsel %vm287, %v2339, 0.0
    %2343 = vadd.xlane.f32.xlu0 %v2342
    %v2344 = vpop.xlane.xlu0 %2343
    %v2345 = vsel %vm287, %v2341, 0.0
    %2346 = vadd.xlane.f32.xlu0 %v2345
    %v2347 = vpop.xlane.xlu0 %2346
    %v2348 = vrcp.pop %v2344
    %v2349 = vrcp.pop %v2347
    %v2350 = vmul.f32 %v2339, %v2348
    %v2351 = vmul.f32 %v2341, %v2349
    %2352 = vrot.lane.b32.xlu0 %v2168, 64
    %v2353 = vpop.permute.xlu0 %2352
    %v2356 = vsel %vm287, %v2350, 0
    %2358 = vmatprep.subr.mxu0 0.0
    %2359 = vmatpush1.msra.mxu0 0.0
    %2360 = vmatprep.subr.mxu0 0.0
    %2361 = vmatpush1.msra.mxu0 0.0
    %2362 = vmatprep.subr.mxu0 0.0
    %2363 = vmatpush1.msra.mxu0 0.0
    %2364 = vmatprep.subr.mxu0 0.0
    %2365 = vmatpush1.msra.mxu0 0.0
    %2366 = vmatprep.subr.mxu0 0.0
    %2367 = vmatpush1.msra.mxu0 0.0
    %2368 = vmatprep.subr.mxu0 0.0
    %2369 = vmatpush1.msra.mxu0 0.0
    %2370 = vmatprep.subr.mxu0 0.0
    %2371 = vmatpush1.msra.mxu0 0.0
    %2372 = vmatprep.subr.mxu0 0.0
    %2373 = vmatpush1.msra.mxu0 0.0
    %2374 = vmatprep.subr.mxu0 0.0
    %2375 = vmatpush1.msra.mxu0 0.0
    %2376 = vmatprep.subr.mxu0 0.0
    %2377 = vmatpush1.msra.mxu0 0.0
    %2378 = vmatprep.subr.mxu0 0.0
    %2379 = vmatpush1.msra.mxu0 0.0
    %2380 = vmatprep.subr.mxu0 0.0
    %2381 = vmatpush1.msra.mxu0 0.0
    %2382 = vmatprep.subr.mxu0 0.0
    %2383 = vmatpush1.msra.mxu0 0.0
    %2384 = vmatprep.subr.mxu0 0.0
    %2385 = vmatpush1.msra.mxu0 0.0
    %2386 = vmatprep.subr.mxu0 0.0
    %2387 = vmatpush1.msra.mxu0 0.0
    %2388 = vmatprep.subr.mxu0 0.0
    %2389 = vmatpush1.msra.mxu0 %v2353
    %2390 = vmatprep.subr.mxu0 0.0
    %2391 = vmatpush2.msra.mxu0 0.0
    %2392 = vmatprep.subr.mxu0 0.0
    %2393 = vmatpush2.msra.mxu0 0.0
    %2394 = vmatprep.subr.mxu0 0.0
    %2395 = vmatpush2.msra.mxu0 0.0
    %2396 = vmatprep.subr.mxu0 0.0
    %2397 = vmatpush2.msra.mxu0 0.0
    %2398 = vmatprep.subr.mxu0 0.0
    %2399 = vmatpush2.msra.mxu0 0.0
    %2400 = vmatprep.subr.mxu0 0.0
    %2401 = vmatpush2.msra.mxu0 0.0
    %2402 = vmatprep.subr.mxu0 0.0
    %2403 = vmatpush2.msra.mxu0 0.0
    %2404 = vmatprep.subr.mxu0 0.0
    %2405 = vmatpush2.msra.mxu0 0.0
    %2406 = vmatprep.subr.mxu0 0.0
    %2407 = vmatpush2.msra.mxu0 0.0
    %2408 = vmatprep.subr.mxu0 0.0
    %2409 = vmatpush2.msra.mxu0 0.0
    %2410 = vmatprep.subr.mxu0 0.0
    %2411 = vmatpush2.msra.mxu0 0.0
    %2412 = vmatprep.subr.mxu0 0.0
    %2413 = vmatpush2.msra.mxu0 0.0
    %2414 = vmatprep.subr.mxu0 0.0
    %2415 = vmatpush2.msra.mxu0 0.0
    %2416 = vmatprep.subr.mxu0 0.0
    %2417 = vmatpush2.msra.mxu0 0.0
    %2418 = vmatprep.subr.mxu0 0.0
    %2419 = vmatpush2.msra.mxu0 0.0
    %2420 = vmatprep.subr.mxu0 0.0
    %2421 = vmatpush2.msra.mxu0 0.0
    %2422 = vmatprep.mubr.f32.mxu0 0.0
    %2423 = vmatmul.mubr.f32.gmra.mxu0 %v2356
    %v2424 = vpop.f32.mrf.mxu0
    %v2425 = vadd.f32 0.0, %v2424
    %v2426 = vpop.f32.mrf.mxu0
    %2427 = vdwg.mxu0
    %2428 = vrot.lane.b32.xlu0 %v2171, 64
    %v2429 = vpop.permute.xlu0 %2428
    %v2432 = vsel %vm287, %v2351, 0
    %2434 = vmatprep.subr.mxu0 0.0
    %2435 = vmatpush1.msra.mxu0 0.0
    %2436 = vmatprep.subr.mxu0 0.0
    %2437 = vmatpush1.msra.mxu0 0.0
    %2438 = vmatprep.subr.mxu0 0.0
    %2439 = vmatpush1.msra.mxu0 0.0
    %2440 = vmatprep.subr.mxu0 0.0
    %2441 = vmatpush1.msra.mxu0 0.0
    %2442 = vmatprep.subr.mxu0 0.0
    %2443 = vmatpush1.msra.mxu0 0.0
    %2444 = vmatprep.subr.mxu0 0.0
    %2445 = vmatpush1.msra.mxu0 0.0
    %2446 = vmatprep.subr.mxu0 0.0
    %2447 = vmatpush1.msra.mxu0 0.0
    %2448 = vmatprep.subr.mxu0 0.0
    %2449 = vmatpush1.msra.mxu0 0.0
    %2450 = vmatprep.subr.mxu0 0.0
    %2451 = vmatpush1.msra.mxu0 0.0
    %2452 = vmatprep.subr.mxu0 0.0
    %2453 = vmatpush1.msra.mxu0 0.0
    %2454 = vmatprep.subr.mxu0 0.0
    %2455 = vmatpush1.msra.mxu0 0.0
    %2456 = vmatprep.subr.mxu0 0.0
    %2457 = vmatpush1.msra.mxu0 0.0
    %2458 = vmatprep.subr.mxu0 0.0
    %2459 = vmatpush1.msra.mxu0 0.0
    %2460 = vmatprep.subr.mxu0 0.0
    %2461 = vmatpush1.msra.mxu0 0.0
    %2462 = vmatprep.subr.mxu0 0.0
    %2463 = vmatpush1.msra.mxu0 0.0
    %2464 = vmatprep.subr.mxu0 0.0
    %2465 = vmatpush1.msra.mxu0 %v2429
    %2466 = vmatprep.subr.mxu0 0.0
    %2467 = vmatpush2.msra.mxu0 0.0
    %2468 = vmatprep.subr.mxu0 0.0
    %2469 = vmatpush2.msra.mxu0 0.0
    %2470 = vmatprep.subr.mxu0 0.0
    %2471 = vmatpush2.msra.mxu0 0.0
    %2472 = vmatprep.subr.mxu0 0.0
    %2473 = vmatpush2.msra.mxu0 0.0
    %2474 = vmatprep.subr.mxu0 0.0
    %2475 = vmatpush2.msra.mxu0 0.0
    %2476 = vmatprep.subr.mxu0 0.0
    %2477 = vmatpush2.msra.mxu0 0.0
    %2478 = vmatprep.subr.mxu0 0.0
    %2479 = vmatpush2.msra.mxu0 0.0
    %2480 = vmatprep.subr.mxu0 0.0
    %2481 = vmatpush2.msra.mxu0 0.0
    %2482 = vmatprep.subr.mxu0 0.0
    %2483 = vmatpush2.msra.mxu0 0.0
    %2484 = vmatprep.subr.mxu0 0.0
    %2485 = vmatpush2.msra.mxu0 0.0
    %2486 = vmatprep.subr.mxu0 0.0
    %2487 = vmatpush2.msra.mxu0 0.0
    %2488 = vmatprep.subr.mxu0 0.0
    %2489 = vmatpush2.msra.mxu0 0.0
    %2490 = vmatprep.subr.mxu0 0.0
    %2491 = vmatpush2.msra.mxu0 0.0
    %2492 = vmatprep.subr.mxu0 0.0
    %2493 = vmatpush2.msra.mxu0 0.0
    %2494 = vmatprep.subr.mxu0 0.0
    %2495 = vmatpush2.msra.mxu0 0.0
    %2496 = vmatprep.subr.mxu0 0.0
    %2497 = vmatpush2.msra.mxu0 0.0
    %2498 = vmatprep.mubr.f32.mxu0 0.0
    %2499 = vmatmul.mubr.f32.gmra.mxu0 %v2432
    %v2500 = vpop.f32.mrf.mxu0
    %v2501 = vadd.f32 0.0, %v2500
    %v2502 = vpop.f32.mrf.mxu0
    %2503 = vdwg.mxu0
    %v2504 = vpack.c.bf16 %v2501, %v2425
    %2505 = vrot.lane.b32.xlu0 %v2168, 120
    %v2506 = vpop.permute.xlu0 %2505
    %2507 = vrot.lane.b32.xlu0 %v2168, 88
    %v2508 = vpop.permute.xlu0 %2507
    %v2509 = vsel %vm287, %v2506, 0
    %v2511 = vsel %vm287, %v2508, 0
    %2513 = vmatprep.subr.mxu0 0.0
    %2514 = vmatpush1.xpose.msra.mxu0 0.0
    %2515 = vmatprep.subr.mxu0 0.0
    %2516 = vmatpush1.xpose.msra.mxu0 0.0
    %2517 = vmatprep.subr.mxu0 0.0
    %2518 = vmatpush1.xpose.msra.mxu0 0.0
    %2519 = vmatprep.subr.mxu0 0.0
    %2520 = vmatpush1.xpose.msra.mxu0 0.0
    %2521 = vmatprep.subr.mxu0 0.0
    %2522 = vmatpush1.xpose.msra.mxu0 0.0
    %2523 = vmatprep.subr.mxu0 0.0
    %2524 = vmatpush1.xpose.msra.mxu0 0.0
    %2525 = vmatprep.subr.mxu0 0.0
    %2526 = vmatpush1.xpose.msra.mxu0 0.0
    %2527 = vmatprep.subr.mxu0 0.0
    %2528 = vmatpush1.xpose.msra.mxu0 0.0
    %2529 = vmatprep.subr.mxu0 0.0
    %2530 = vmatpush1.xpose.msra.mxu0 0.0
    %2531 = vmatprep.subr.mxu0 0.0
    %2532 = vmatpush1.xpose.msra.mxu0 0.0
    %2533 = vmatprep.subr.mxu0 0.0
    %2534 = vmatpush1.xpose.msra.mxu0 0.0
    %2535 = vmatprep.subr.mxu0 0.0
    %2536 = vmatpush1.xpose.msra.mxu0 0.0
    %2537 = vmatprep.subr.mxu0 0.0
    %2538 = vmatpush1.xpose.msra.mxu0 0.0
    %2539 = vmatprep.subr.mxu0 0.0
    %2540 = vmatpush1.xpose.msra.mxu0 0.0
    %2541 = vmatprep.subr.mxu0 0.0
    %2542 = vmatpush1.xpose.msra.mxu0 0.0
    %2543 = vmatprep.subr.mxu0 0.0
    %2544 = vmatpush1.xpose.msra.mxu0 %v2511
    %2545 = vmatprep.subr.mxu0 0.0
    %2546 = vmatpush2.xpose.msra.mxu0 0.0
    %2547 = vmatprep.subr.mxu0 0.0
    %2548 = vmatpush2.xpose.msra.mxu0 0.0
    %2549 = vmatprep.subr.mxu0 0.0
    %2550 = vmatpush2.xpose.msra.mxu0 0.0
    %2551 = vmatprep.subr.mxu0 0.0
    %2552 = vmatpush2.xpose.msra.mxu0 0.0
    %2553 = vmatprep.subr.mxu0 0.0
    %2554 = vmatpush2.xpose.msra.mxu0 0.0
    %2555 = vmatprep.subr.mxu0 0.0
    %2556 = vmatpush2.xpose.msra.mxu0 0.0
    %2557 = vmatprep.subr.mxu0 0.0
    %2558 = vmatpush2.xpose.msra.mxu0 0.0
    %2559 = vmatprep.subr.mxu0 0.0
    %2560 = vmatpush2.xpose.msra.mxu0 0.0
    %2561 = vmatprep.subr.mxu0 0.0
    %2562 = vmatpush2.xpose.msra.mxu0 0.0
    %2563 = vmatprep.subr.mxu0 0.0
    %2564 = vmatpush2.xpose.msra.mxu0 0.0
    %2565 = vmatprep.subr.mxu0 0.0
    %2566 = vmatpush2.xpose.msra.mxu0 0.0
    %2567 = vmatprep.subr.mxu0 0.0
    %2568 = vmatpush2.xpose.msra.mxu0 0.0
    %2569 = vmatprep.subr.mxu0 0.0
    %2570 = vmatpush2.xpose.msra.mxu0 0.0
    %2571 = vmatprep.subr.mxu0 0.0
    %2572 = vmatpush2.xpose.msra.mxu0 0.0
    %2573 = vmatprep.subr.mxu0 0.0
    %2574 = vmatpush2.xpose.msra.mxu0 0.0
    %2575 = vmatprep.subr.mxu0 0.0
    %2576 = vmatpush2.xpose.msra.mxu0 0.0
    %2577 = vmatprep.mubr.f32.mxu0 0.0
    %2578 = vmatmul.mubr.f32.gmra.mxu0 %v2509
    %v2579 = vpop.f32.mrf.mxu0
    %v2580 = vadd.f32 0.0, %v2579
    %v2581 = vpop.f32.mrf.mxu0
    %2582 = vdwg.mxu0
    %2583 = vrot.lane.b32.xlu0 %v2171, 120
    %v2584 = vpop.permute.xlu0 %2583
    %2585 = vrot.lane.b32.xlu0 %v2171, 88
    %v2586 = vpop.permute.xlu0 %2585
    %v2587 = vsel %vm287, %v2584, 0
    %v2589 = vsel %vm287, %v2586, 0
    %2591 = vmatprep.subr.mxu0 0.0
    %2592 = vmatpush1.xpose.msra.mxu0 0.0
    %2593 = vmatprep.subr.mxu0 0.0
    %2594 = vmatpush1.xpose.msra.mxu0 0.0
    %2595 = vmatprep.subr.mxu0 0.0
    %2596 = vmatpush1.xpose.msra.mxu0 0.0
    %2597 = vmatprep.subr.mxu0 0.0
    %2598 = vmatpush1.xpose.msra.mxu0 0.0
    %2599 = vmatprep.subr.mxu0 0.0
    %2600 = vmatpush1.xpose.msra.mxu0 0.0
    %2601 = vmatprep.subr.mxu0 0.0
    %2602 = vmatpush1.xpose.msra.mxu0 0.0
    %2603 = vmatprep.subr.mxu0 0.0
    %2604 = vmatpush1.xpose.msra.mxu0 0.0
    %2605 = vmatprep.subr.mxu0 0.0
    %2606 = vmatpush1.xpose.msra.mxu0 0.0
    %2607 = vmatprep.subr.mxu0 0.0
    %2608 = vmatpush1.xpose.msra.mxu0 0.0
    %2609 = vmatprep.subr.mxu0 0.0
    %2610 = vmatpush1.xpose.msra.mxu0 0.0
    %2611 = vmatprep.subr.mxu0 0.0
    %2612 = vmatpush1.xpose.msra.mxu0 0.0
    %2613 = vmatprep.subr.mxu0 0.0
    %2614 = vmatpush1.xpose.msra.mxu0 0.0
    %2615 = vmatprep.subr.mxu0 0.0
    %2616 = vmatpush1.xpose.msra.mxu0 0.0
    %2617 = vmatprep.subr.mxu0 0.0
    %2618 = vmatpush1.xpose.msra.mxu0 0.0
    %2619 = vmatprep.subr.mxu0 0.0
    %2620 = vmatpush1.xpose.msra.mxu0 0.0
    %2621 = vmatprep.subr.mxu0 0.0
    %2622 = vmatpush1.xpose.msra.mxu0 %v2589
    %2623 = vmatprep.subr.mxu0 0.0
    %2624 = vmatpush2.xpose.msra.mxu0 0.0
    %2625 = vmatprep.subr.mxu0 0.0
    %2626 = vmatpush2.xpose.msra.mxu0 0.0
    %2627 = vmatprep.subr.mxu0 0.0
    %2628 = vmatpush2.xpose.msra.mxu0 0.0
    %2629 = vmatprep.subr.mxu0 0.0
    %2630 = vmatpush2.xpose.msra.mxu0 0.0
    %2631 = vmatprep.subr.mxu0 0.0
    %2632 = vmatpush2.xpose.msra.mxu0 0.0
    %2633 = vmatprep.subr.mxu0 0.0
    %2634 = vmatpush2.xpose.msra.mxu0 0.0
    %2635 = vmatprep.subr.mxu0 0.0
    %2636 = vmatpush2.xpose.msra.mxu0 0.0
    %2637 = vmatprep.subr.mxu0 0.0
    %2638 = vmatpush2.xpose.msra.mxu0 0.0
    %2639 = vmatprep.subr.mxu0 0.0
    %2640 = vmatpush2.xpose.msra.mxu0 0.0
    %2641 = vmatprep.subr.mxu0 0.0
    %2642 = vmatpush2.xpose.msra.mxu0 0.0
    %2643 = vmatprep.subr.mxu0 0.0
    %2644 = vmatpush2.xpose.msra.mxu0 0.0
    %2645 = vmatprep.subr.mxu0 0.0
    %2646 = vmatpush2.xpose.msra.mxu0 0.0
    %2647 = vmatprep.subr.mxu0 0.0
    %2648 = vmatpush2.xpose.msra.mxu0 0.0
    %2649 = vmatprep.subr.mxu0 0.0
    %2650 = vmatpush2.xpose.msra.mxu0 0.0
    %2651 = vmatprep.subr.mxu0 0.0
    %2652 = vmatpush2.xpose.msra.mxu0 0.0
    %2653 = vmatprep.subr.mxu0 0.0
    %2654 = vmatpush2.xpose.msra.mxu0 0.0
    %2655 = vmatprep.mubr.f32.mxu0 0.0
    %2656 = vmatmul.mubr.f32.gmra.mxu0 %v2587
    %v2657 = vpop.f32.mrf.mxu0
    %v2658 = vadd.f32 0.0, %v2657
    %v2659 = vpop.f32.mrf.mxu0
    %2660 = vdwg.mxu0
    %v2661 = vmul.f32 %v2580, 0.35355338
    %v2662 = vmul.f32 %v2658, 0.35355338
    %v2663 = vsel %vm287, %v2661, -inf
    %2664 = vmax.xlane.f32.xlu0 %v2663
    %v2665 = vpop.xlane.xlu0 %2664
    %v2666 = vsel %vm287, %v2662, -inf
    %2667 = vmax.xlane.f32.xlu0 %v2666
    %v2668 = vpop.xlane.xlu0 %2667
    %v2669 = vsub.f32 %v2661, %v2665
    %v2670 = vsub.f32 %v2662, %v2668
    %v2671 = vmul.f32 %v2669, 1.442695
    %v2672 = vpow.pop %v2671
    %v2673 = vmul.f32 %v2670, 1.442695
    %v2674 = vpow.pop %v2673
    %v2675 = vsel %vm287, %v2672, 0.0
    %2676 = vadd.xlane.f32.xlu0 %v2675
    %v2677 = vpop.xlane.xlu0 %2676
    %v2678 = vsel %vm287, %v2674, 0.0
    %2679 = vadd.xlane.f32.xlu0 %v2678
    %v2680 = vpop.xlane.xlu0 %2679
    %v2681 = vrcp.pop %v2677
    %v2682 = vrcp.pop %v2680
    %v2683 = vmul.f32 %v2672, %v2681
    %v2684 = vmul.f32 %v2674, %v2682
    %2685 = vrot.lane.b32.xlu0 %v2168, 56
    %v2686 = vpop.permute.xlu0 %2685
    %v2689 = vsel %vm287, %v2683, 0
    %2691 = vmatprep.subr.mxu0 0.0
    %2692 = vmatpush1.msra.mxu0 0.0
    %2693 = vmatprep.subr.mxu0 0.0
    %2694 = vmatpush1.msra.mxu0 0.0
    %2695 = vmatprep.subr.mxu0 0.0
    %2696 = vmatpush1.msra.mxu0 0.0
    %2697 = vmatprep.subr.mxu0 0.0
    %2698 = vmatpush1.msra.mxu0 0.0
    %2699 = vmatprep.subr.mxu0 0.0
    %2700 = vmatpush1.msra.mxu0 0.0
    %2701 = vmatprep.subr.mxu0 0.0
    %2702 = vmatpush1.msra.mxu0 0.0
    %2703 = vmatprep.subr.mxu0 0.0
    %2704 = vmatpush1.msra.mxu0 0.0
    %2705 = vmatprep.subr.mxu0 0.0
    %2706 = vmatpush1.msra.mxu0 0.0
    %2707 = vmatprep.subr.mxu0 0.0
    %2708 = vmatpush1.msra.mxu0 0.0
    %2709 = vmatprep.subr.mxu0 0.0
    %2710 = vmatpush1.msra.mxu0 0.0
    %2711 = vmatprep.subr.mxu0 0.0
    %2712 = vmatpush1.msra.mxu0 0.0
    %2713 = vmatprep.subr.mxu0 0.0
    %2714 = vmatpush1.msra.mxu0 0.0
    %2715 = vmatprep.subr.mxu0 0.0
    %2716 = vmatpush1.msra.mxu0 0.0
    %2717 = vmatprep.subr.mxu0 0.0
    %2718 = vmatpush1.msra.mxu0 0.0
    %2719 = vmatprep.subr.mxu0 0.0
    %2720 = vmatpush1.msra.mxu0 0.0
    %2721 = vmatprep.subr.mxu0 0.0
    %2722 = vmatpush1.msra.mxu0 %v2686
    %2723 = vmatprep.subr.mxu0 0.0
    %2724 = vmatpush2.msra.mxu0 0.0
    %2725 = vmatprep.subr.mxu0 0.0
    %2726 = vmatpush2.msra.mxu0 0.0
    %2727 = vmatprep.subr.mxu0 0.0
    %2728 = vmatpush2.msra.mxu0 0.0
    %2729 = vmatprep.subr.mxu0 0.0
    %2730 = vmatpush2.msra.mxu0 0.0
    %2731 = vmatprep.subr.mxu0 0.0
    %2732 = vmatpush2.msra.mxu0 0.0
    %2733 = vmatprep.subr.mxu0 0.0
    %2734 = vmatpush2.msra.mxu0 0.0
    %2735 = vmatprep.subr.mxu0 0.0
    %2736 = vmatpush2.msra.mxu0 0.0
    %2737 = vmatprep.subr.mxu0 0.0
    %2738 = vmatpush2.msra.mxu0 0.0
    %2739 = vmatprep.subr.mxu0 0.0
    %2740 = vmatpush2.msra.mxu0 0.0
    %2741 = vmatprep.subr.mxu0 0.0
    %2742 = vmatpush2.msra.mxu0 0.0
    %2743 = vmatprep.subr.mxu0 0.0
    %2744 = vmatpush2.msra.mxu0 0.0
    %2745 = vmatprep.subr.mxu0 0.0
    %2746 = vmatpush2.msra.mxu0 0.0
    %2747 = vmatprep.subr.mxu0 0.0
    %2748 = vmatpush2.msra.mxu0 0.0
    %2749 = vmatprep.subr.mxu0 0.0
    %2750 = vmatpush2.msra.mxu0 0.0
    %2751 = vmatprep.subr.mxu0 0.0
    %2752 = vmatpush2.msra.mxu0 0.0
    %2753 = vmatprep.subr.mxu0 0.0
    %2754 = vmatpush2.msra.mxu0 0.0
    %2755 = vmatprep.mubr.f32.mxu0 0.0
    %2756 = vmatmul.mubr.f32.gmra.mxu0 %v2689
    %v2757 = vpop.f32.mrf.mxu0
    %v2758 = vadd.f32 0.0, %v2757
    %v2759 = vpop.f32.mrf.mxu0
    %2760 = vdwg.mxu0
    %2761 = vrot.lane.b32.xlu0 %v2171, 56
    %v2762 = vpop.permute.xlu0 %2761
    %v2765 = vsel %vm287, %v2684, 0
    %2767 = vmatprep.subr.mxu0 0.0
    %2768 = vmatpush1.msra.mxu0 0.0
    %2769 = vmatprep.subr.mxu0 0.0
    %2770 = vmatpush1.msra.mxu0 0.0
    %2771 = vmatprep.subr.mxu0 0.0
    %2772 = vmatpush1.msra.mxu0 0.0
    %2773 = vmatprep.subr.mxu0 0.0
    %2774 = vmatpush1.msra.mxu0 0.0
    %2775 = vmatprep.subr.mxu0 0.0
    %2776 = vmatpush1.msra.mxu0 0.0
    %2777 = vmatprep.subr.mxu0 0.0
    %2778 = vmatpush1.msra.mxu0 0.0
    %2779 = vmatprep.subr.mxu0 0.0
    %2780 = vmatpush1.msra.mxu0 0.0
    %2781 = vmatprep.subr.mxu0 0.0
    %2782 = vmatpush1.msra.mxu0 0.0
    %2783 = vmatprep.subr.mxu0 0.0
    %2784 = vmatpush1.msra.mxu0 0.0
    %2785 = vmatprep.subr.mxu0 0.0
    %2786 = vmatpush1.msra.mxu0 0.0
    %2787 = vmatprep.subr.mxu0 0.0
    %2788 = vmatpush1.msra.mxu0 0.0
    %2789 = vmatprep.subr.mxu0 0.0
    %2790 = vmatpush1.msra.mxu0 0.0
    %2791 = vmatprep.subr.mxu0 0.0
    %2792 = vmatpush1.msra.mxu0 0.0
    %2793 = vmatprep.subr.mxu0 0.0
    %2794 = vmatpush1.msra.mxu0 0.0
    %2795 = vmatprep.subr.mxu0 0.0
    %2796 = vmatpush1.msra.mxu0 0.0
    %2797 = vmatprep.subr.mxu0 0.0
    %2798 = vmatpush1.msra.mxu0 %v2762
    %2799 = vmatprep.subr.mxu0 0.0
    %2800 = vmatpush2.msra.mxu0 0.0
    %2801 = vmatprep.subr.mxu0 0.0
    %2802 = vmatpush2.msra.mxu0 0.0
    %2803 = vmatprep.subr.mxu0 0.0
    %2804 = vmatpush2.msra.mxu0 0.0
    %2805 = vmatprep.subr.mxu0 0.0
    %2806 = vmatpush2.msra.mxu0 0.0
    %2807 = vmatprep.subr.mxu0 0.0
    %2808 = vmatpush2.msra.mxu0 0.0
    %2809 = vmatprep.subr.mxu0 0.0
    %2810 = vmatpush2.msra.mxu0 0.0
    %2811 = vmatprep.subr.mxu0 0.0
    %2812 = vmatpush2.msra.mxu0 0.0
    %2813 = vmatprep.subr.mxu0 0.0
    %2814 = vmatpush2.msra.mxu0 0.0
    %2815 = vmatprep.subr.mxu0 0.0
    %2816 = vmatpush2.msra.mxu0 0.0
    %2817 = vmatprep.subr.mxu0 0.0
    %2818 = vmatpush2.msra.mxu0 0.0
    %2819 = vmatprep.subr.mxu0 0.0
    %2820 = vmatpush2.msra.mxu0 0.0
    %2821 = vmatprep.subr.mxu0 0.0
    %2822 = vmatpush2.msra.mxu0 0.0
    %2823 = vmatprep.subr.mxu0 0.0
    %2824 = vmatpush2.msra.mxu0 0.0
    %2825 = vmatprep.subr.mxu0 0.0
    %2826 = vmatpush2.msra.mxu0 0.0
    %2827 = vmatprep.subr.mxu0 0.0
    %2828 = vmatpush2.msra.mxu0 0.0
    %2829 = vmatprep.subr.mxu0 0.0
    %2830 = vmatpush2.msra.mxu0 0.0
    %2831 = vmatprep.mubr.f32.mxu0 0.0
    %2832 = vmatmul.mubr.f32.gmra.mxu0 %v2765
    %v2833 = vpop.f32.mrf.mxu0
    %v2834 = vadd.f32 0.0, %v2833
    %v2835 = vpop.f32.mrf.mxu0
    %2836 = vdwg.mxu0
    %v2837 = vpack.c.bf16 %v2834, %v2758
    %v2838 = vpack.c.b16 %v2123, %v2123
    %2839 = vrot.lane.b32.xlu0 %v2838, 32
    %v2840 = vpop.permute.xlu0 %2839
    %v2842 = vsel %vm287, %v2837, 0
    %v2845 = vsel %vm955, %v2840, 0
    %2847 = vmatprep.subr.bf16.mxu0 0
    %2848 = vmatpush1.bf16.msra.mxu0 0
    %2849 = vmatprep.subr.bf16.mxu0 0
    %2850 = vmatpush1.bf16.msra.mxu0 0
    %2851 = vmatprep.subr.bf16.mxu0 0
    %2852 = vmatpush1.bf16.msra.mxu0 0
    %2853 = vmatprep.subr.bf16.mxu0 0
    %2854 = vmatpush1.bf16.msra.mxu0 0
    %2855 = vmatprep.subr.bf16.mxu0 0
    %2856 = vmatpush1.bf16.msra.mxu0 0
    %2857 = vmatprep.subr.bf16.mxu0 0
    %2858 = vmatpush1.bf16.msra.mxu0 0
    %2859 = vmatprep.subr.bf16.mxu0 0
    %2860 = vmatpush1.bf16.msra.mxu0 0
    %2861 = vmatprep.subr.bf16.mxu0 0
    %2862 = vmatpush1.bf16.msra.mxu0 %v2845
    %2863 = vmatprep.subr.bf16.mxu0 0
    %2864 = vmatpush2.bf16.msra.mxu0 0
    %2865 = vmatprep.subr.bf16.mxu0 0
    %2866 = vmatpush2.bf16.msra.mxu0 0
    %2867 = vmatprep.subr.bf16.mxu0 0
    %2868 = vmatpush2.bf16.msra.mxu0 0
    %2869 = vmatprep.subr.bf16.mxu0 0
    %2870 = vmatpush2.bf16.msra.mxu0 0
    %2871 = vmatprep.subr.bf16.mxu0 0
    %2872 = vmatpush2.bf16.msra.mxu0 0
    %2873 = vmatprep.subr.bf16.mxu0 0
    %2874 = vmatpush2.bf16.msra.mxu0 0
    %2875 = vmatprep.subr.bf16.mxu0 0
    %2876 = vmatpush2.bf16.msra.mxu0 0
    %2877 = vmatprep.subr.bf16.mxu0 0
    %2878 = vmatpush2.bf16.msra.mxu0 0
    %2879 = vmatprep.mubr.bf16.mxu0 0
    %2880 = vmatmul.mubr.bf16.gmra.mxu0 %v2842
    %v2881 = vpop.f32.mrf.mxu0
    %v2882 = vadd.f32 0.0, %v2881
    %v2883 = vpop.f32.mrf.mxu0
    %v2884 = vpop.f32.mrf.mxu0
    %v2885 = vadd.f32 0.0, %v2884
    %v2886 = vpop.f32.mrf.mxu0
    %2887 = vdwg.mxu0
    %v2888 = vpack.c.b16 %v2122, %v2122
    %2889 = vrot.lane.b32.xlu0 %v2888, 32
    %v2890 = vpop.permute.xlu0 %2889
    %v2892 = vsel %vm287, %v2504, 0
    %v2895 = vsel %vm955, %v2890, 0
    %2897 = vmatprep.subr.bf16.mxu0 0
    %2898 = vmatpush1.bf16.msra.mxu0 0
    %2899 = vmatprep.subr.bf16.mxu0 0
    %2900 = vmatpush1.bf16.msra.mxu0 0
    %2901 = vmatprep.subr.bf16.mxu0 0
    %2902 = vmatpush1.bf16.msra.mxu0 0
    %2903 = vmatprep.subr.bf16.mxu0 0
    %2904 = vmatpush1.bf16.msra.mxu0 0
    %2905 = vmatprep.subr.bf16.mxu0 0
    %2906 = vmatpush1.bf16.msra.mxu0 0
    %2907 = vmatprep.subr.bf16.mxu0 0
    %2908 = vmatpush1.bf16.msra.mxu0 0
    %2909 = vmatprep.subr.bf16.mxu0 0
    %2910 = vmatpush1.bf16.msra.mxu0 0
    %2911 = vmatprep.subr.bf16.mxu0 0
    %2912 = vmatpush1.bf16.msra.mxu0 %v2895
    %2913 = vmatprep.subr.bf16.mxu0 0
    %2914 = vmatpush2.bf16.msra.mxu0 0
    %2915 = vmatprep.subr.bf16.mxu0 0
    %2916 = vmatpush2.bf16.msra.mxu0 0
    %2917 = vmatprep.subr.bf16.mxu0 0
    %2918 = vmatpush2.bf16.msra.mxu0 0
    %2919 = vmatprep.subr.bf16.mxu0 0
    %2920 = vmatpush2.bf16.msra.mxu0 0
    %2921 = vmatprep.subr.bf16.mxu0 0
    %2922 = vmatpush2.bf16.msra.mxu0 0
    %2923 = vmatprep.subr.bf16.mxu0 0
    %2924 = vmatpush2.bf16.msra.mxu0 0
    %2925 = vmatprep.subr.bf16.mxu0 0
    %2926 = vmatpush2.bf16.msra.mxu0 0
    %2927 = vmatprep.subr.bf16.mxu0 0
    %2928 = vmatpush2.bf16.msra.mxu0 0
    %2929 = vmatprep.mubr.bf16.mxu0 0
    %2930 = vmatmul.mubr.bf16.gmra.mxu0 %v2892
    %v2931 = vpop.f32.mrf.mxu0
    %v2932 = vadd.f32 %v2882, %v2931
    %v2933 = vpop.f32.mrf.mxu0
    %v2934 = vpop.f32.mrf.mxu0
    %v2935 = vadd.f32 %v2885, %v2934
    %v2936 = vpop.f32.mrf.mxu0
    %2937 = vdwg.mxu0
    %2938 = vrot.lane.b32.xlu0 %v2168, 112
    %v2939 = vpop.permute.xlu0 %2938
    %2940 = vrot.lane.b32.xlu0 %v2168, 80
    %v2941 = vpop.permute.xlu0 %2940
    %v2942 = vsel %vm287, %v2939, 0
    %v2944 = vsel %vm287, %v2941, 0
    %2946 = vmatprep.subr.mxu0 0.0
    %2947 = vmatpush1.xpose.msra.mxu0 0.0
    %2948 = vmatprep.subr.mxu0 0.0
    %2949 = vmatpush1.xpose.msra.mxu0 0.0
    %2950 = vmatprep.subr.mxu0 0.0
    %2951 = vmatpush1.xpose.msra.mxu0 0.0
    %2952 = vmatprep.subr.mxu0 0.0
    %2953 = vmatpush1.xpose.msra.mxu0 0.0
    %2954 = vmatprep.subr.mxu0 0.0
    %2955 = vmatpush1.xpose.msra.mxu0 0.0
    %2956 = vmatprep.subr.mxu0 0.0
    %2957 = vmatpush1.xpose.msra.mxu0 0.0
    %2958 = vmatprep.subr.mxu0 0.0
    %2959 = vmatpush1.xpose.msra.mxu0 0.0
    %2960 = vmatprep.subr.mxu0 0.0
    %2961 = vmatpush1.xpose.msra.mxu0 0.0
    %2962 = vmatprep.subr.mxu0 0.0
    %2963 = vmatpush1.xpose.msra.mxu0 0.0
    %2964 = vmatprep.subr.mxu0 0.0
    %2965 = vmatpush1.xpose.msra.mxu0 0.0
    %2966 = vmatprep.subr.mxu0 0.0
    %2967 = vmatpush1.xpose.msra.mxu0 0.0
    %2968 = vmatprep.subr.mxu0 0.0
    %2969 = vmatpush1.xpose.msra.mxu0 0.0
    %2970 = vmatprep.subr.mxu0 0.0
    %2971 = vmatpush1.xpose.msra.mxu0 0.0
    %2972 = vmatprep.subr.mxu0 0.0
    %2973 = vmatpush1.xpose.msra.mxu0 0.0
    %2974 = vmatprep.subr.mxu0 0.0
    %2975 = vmatpush1.xpose.msra.mxu0 0.0
    %2976 = vmatprep.subr.mxu0 0.0
    %2977 = vmatpush1.xpose.msra.mxu0 %v2944
    %2978 = vmatprep.subr.mxu0 0.0
    %2979 = vmatpush2.xpose.msra.mxu0 0.0
    %2980 = vmatprep.subr.mxu0 0.0
    %2981 = vmatpush2.xpose.msra.mxu0 0.0
    %2982 = vmatprep.subr.mxu0 0.0
    %2983 = vmatpush2.xpose.msra.mxu0 0.0
    %2984 = vmatprep.subr.mxu0 0.0
    %2985 = vmatpush2.xpose.msra.mxu0 0.0
    %2986 = vmatprep.subr.mxu0 0.0
    %2987 = vmatpush2.xpose.msra.mxu0 0.0
    %2988 = vmatprep.subr.mxu0 0.0
    %2989 = vmatpush2.xpose.msra.mxu0 0.0
    %2990 = vmatprep.subr.mxu0 0.0
    %2991 = vmatpush2.xpose.msra.mxu0 0.0
    %2992 = vmatprep.subr.mxu0 0.0
    %2993 = vmatpush2.xpose.msra.mxu0 0.0
    %2994 = vmatprep.subr.mxu0 0.0
    %2995 = vmatpush2.xpose.msra.mxu0 0.0
    %2996 = vmatprep.subr.mxu0 0.0
    %2997 = vmatpush2.xpose.msra.mxu0 0.0
    %2998 = vmatprep.subr.mxu0 0.0
    %2999 = vmatpush2.xpose.msra.mxu0 0.0
    %3000 = vmatprep.subr.mxu0 0.0
    %3001 = vmatpush2.xpose.msra.mxu0 0.0
    %3002 = vmatprep.subr.mxu0 0.0
    %3003 = vmatpush2.xpose.msra.mxu0 0.0
    %3004 = vmatprep.subr.mxu0 0.0
    %3005 = vmatpush2.xpose.msra.mxu0 0.0
    %3006 = vmatprep.subr.mxu0 0.0
    %3007 = vmatpush2.xpose.msra.mxu0 0.0
    %3008 = vmatprep.subr.mxu0 0.0
    %3009 = vmatpush2.xpose.msra.mxu0 0.0
    %3010 = vmatprep.mubr.f32.mxu0 0.0
    %3011 = vmatmul.mubr.f32.gmra.mxu0 %v2942
    %v3012 = vpop.f32.mrf.mxu0
    %v3013 = vadd.f32 0.0, %v3012
    %v3014 = vpop.f32.mrf.mxu0
    %3015 = vdwg.mxu0
    %3016 = vrot.lane.b32.xlu0 %v2171, 112
    %v3017 = vpop.permute.xlu0 %3016
    %3018 = vrot.lane.b32.xlu0 %v2171, 80
    %v3019 = vpop.permute.xlu0 %3018
    %v3020 = vsel %vm287, %v3017, 0
    %v3022 = vsel %vm287, %v3019, 0
    %3024 = vmatprep.subr.mxu0 0.0
    %3025 = vmatpush1.xpose.msra.mxu0 0.0
    %3026 = vmatprep.subr.mxu0 0.0
    %3027 = vmatpush1.xpose.msra.mxu0 0.0
    %3028 = vmatprep.subr.mxu0 0.0
    %3029 = vmatpush1.xpose.msra.mxu0 0.0
    %3030 = vmatprep.subr.mxu0 0.0
    %3031 = vmatpush1.xpose.msra.mxu0 0.0
    %3032 = vmatprep.subr.mxu0 0.0
    %3033 = vmatpush1.xpose.msra.mxu0 0.0
    %3034 = vmatprep.subr.mxu0 0.0
    %3035 = vmatpush1.xpose.msra.mxu0 0.0
    %3036 = vmatprep.subr.mxu0 0.0
    %3037 = vmatpush1.xpose.msra.mxu0 0.0
    %3038 = vmatprep.subr.mxu0 0.0
    %3039 = vmatpush1.xpose.msra.mxu0 0.0
    %3040 = vmatprep.subr.mxu0 0.0
    %3041 = vmatpush1.xpose.msra.mxu0 0.0
    %3042 = vmatprep.subr.mxu0 0.0
    %3043 = vmatpush1.xpose.msra.mxu0 0.0
    %3044 = vmatprep.subr.mxu0 0.0
    %3045 = vmatpush1.xpose.msra.mxu0 0.0
    %3046 = vmatprep.subr.mxu0 0.0
    %3047 = vmatpush1.xpose.msra.mxu0 0.0
    %3048 = vmatprep.subr.mxu0 0.0
    %3049 = vmatpush1.xpose.msra.mxu0 0.0
    %3050 = vmatprep.subr.mxu0 0.0
    %3051 = vmatpush1.xpose.msra.mxu0 0.0
    %3052 = vmatprep.subr.mxu0 0.0
    %3053 = vmatpush1.xpose.msra.mxu0 0.0
    %3054 = vmatprep.subr.mxu0 0.0
    %3055 = vmatpush1.xpose.msra.mxu0 %v3022
    %3056 = vmatprep.subr.mxu0 0.0
    %3057 = vmatpush2.xpose.msra.mxu0 0.0
    %3058 = vmatprep.subr.mxu0 0.0
    %3059 = vmatpush2.xpose.msra.mxu0 0.0
    %3060 = vmatprep.subr.mxu0 0.0
    %3061 = vmatpush2.xpose.msra.mxu0 0.0
    %3062 = vmatprep.subr.mxu0 0.0
    %3063 = vmatpush2.xpose.msra.mxu0 0.0
    %3064 = vmatprep.subr.mxu0 0.0
    %3065 = vmatpush2.xpose.msra.mxu0 0.0
    %3066 = vmatprep.subr.mxu0 0.0
    %3067 = vmatpush2.xpose.msra.mxu0 0.0
    %3068 = vmatprep.subr.mxu0 0.0
    %3069 = vmatpush2.xpose.msra.mxu0 0.0
    %3070 = vmatprep.subr.mxu0 0.0
    %3071 = vmatpush2.xpose.msra.mxu0 0.0
    %3072 = vmatprep.subr.mxu0 0.0
    %3073 = vmatpush2.xpose.msra.mxu0 0.0
    %3074 = vmatprep.subr.mxu0 0.0
    %3075 = vmatpush2.xpose.msra.mxu0 0.0
    %3076 = vmatprep.subr.mxu0 0.0
    %3077 = vmatpush2.xpose.msra.mxu0 0.0
    %3078 = vmatprep.subr.mxu0 0.0
    %3079 = vmatpush2.xpose.msra.mxu0 0.0
    %3080 = vmatprep.subr.mxu0 0.0
    %3081 = vmatpush2.xpose.msra.mxu0 0.0
    %3082 = vmatprep.subr.mxu0 0.0
    %3083 = vmatpush2.xpose.msra.mxu0 0.0
    %3084 = vmatprep.subr.mxu0 0.0
    %3085 = vmatpush2.xpose.msra.mxu0 0.0
    %3086 = vmatprep.subr.mxu0 0.0
    %3087 = vmatpush2.xpose.msra.mxu0 0.0
    %3088 = vmatprep.mubr.f32.mxu0 0.0
    %3089 = vmatmul.mubr.f32.gmra.mxu0 %v3020
    %v3090 = vpop.f32.mrf.mxu0
    %v3091 = vadd.f32 0.0, %v3090
    %v3092 = vpop.f32.mrf.mxu0
    %3093 = vdwg.mxu0
    %v3094 = vmul.f32 %v3013, 0.35355338
    %v3095 = vmul.f32 %v3091, 0.35355338
    %v3096 = vsel %vm287, %v3094, -inf
    %3097 = vmax.xlane.f32.xlu0 %v3096
    %v3098 = vpop.xlane.xlu0 %3097
    %v3099 = vsel %vm287, %v3095, -inf
    %3100 = vmax.xlane.f32.xlu0 %v3099
    %v3101 = vpop.xlane.xlu0 %3100
    %v3102 = vsub.f32 %v3094, %v3098
    %v3103 = vsub.f32 %v3095, %v3101
    %v3104 = vmul.f32 %v3102, 1.442695
    %v3105 = vpow.pop %v3104
    %v3106 = vmul.f32 %v3103, 1.442695
    %v3107 = vpow.pop %v3106
    %v3108 = vsel %vm287, %v3105, 0.0
    %3109 = vadd.xlane.f32.xlu0 %v3108
    %v3110 = vpop.xlane.xlu0 %3109
    %v3111 = vsel %vm287, %v3107, 0.0
    %3112 = vadd.xlane.f32.xlu0 %v3111
    %v3113 = vpop.xlane.xlu0 %3112
    %v3114 = vrcp.pop %v3110
    %v3115 = vrcp.pop %v3113
    %v3116 = vmul.f32 %v3105, %v3114
    %v3117 = vmul.f32 %v3107, %v3115
    %3118 = vrot.lane.b32.xlu0 %v2168, 48
    %v3119 = vpop.permute.xlu0 %3118
    %v3122 = vsel %vm287, %v3116, 0
    %3124 = vmatprep.subr.mxu0 0.0
    %3125 = vmatpush1.msra.mxu0 0.0
    %3126 = vmatprep.subr.mxu0 0.0
    %3127 = vmatpush1.msra.mxu0 0.0
    %3128 = vmatprep.subr.mxu0 0.0
    %3129 = vmatpush1.msra.mxu0 0.0
    %3130 = vmatprep.subr.mxu0 0.0
    %3131 = vmatpush1.msra.mxu0 0.0
    %3132 = vmatprep.subr.mxu0 0.0
    %3133 = vmatpush1.msra.mxu0 0.0
    %3134 = vmatprep.subr.mxu0 0.0
    %3135 = vmatpush1.msra.mxu0 0.0
    %3136 = vmatprep.subr.mxu0 0.0
    %3137 = vmatpush1.msra.mxu0 0.0
    %3138 = vmatprep.subr.mxu0 0.0
    %3139 = vmatpush1.msra.mxu0 0.0
    %3140 = vmatprep.subr.mxu0 0.0
    %3141 = vmatpush1.msra.mxu0 0.0
    %3142 = vmatprep.subr.mxu0 0.0
    %3143 = vmatpush1.msra.mxu0 0.0
    %3144 = vmatprep.subr.mxu0 0.0
    %3145 = vmatpush1.msra.mxu0 0.0
    %3146 = vmatprep.subr.mxu0 0.0
    %3147 = vmatpush1.msra.mxu0 0.0
    %3148 = vmatprep.subr.mxu0 0.0
    %3149 = vmatpush1.msra.mxu0 0.0
    %3150 = vmatprep.subr.mxu0 0.0
    %3151 = vmatpush1.msra.mxu0 0.0
    %3152 = vmatprep.subr.mxu0 0.0
    %3153 = vmatpush1.msra.mxu0 0.0
    %3154 = vmatprep.subr.mxu0 0.0
    %3155 = vmatpush1.msra.mxu0 %v3119
    %3156 = vmatprep.subr.mxu0 0.0
    %3157 = vmatpush2.msra.mxu0 0.0
    %3158 = vmatprep.subr.mxu0 0.0
    %3159 = vmatpush2.msra.mxu0 0.0
    %3160 = vmatprep.subr.mxu0 0.0
    %3161 = vmatpush2.msra.mxu0 0.0
    %3162 = vmatprep.subr.mxu0 0.0
    %3163 = vmatpush2.msra.mxu0 0.0
    %3164 = vmatprep.subr.mxu0 0.0
    %3165 = vmatpush2.msra.mxu0 0.0
    %3166 = vmatprep.subr.mxu0 0.0
    %3167 = vmatpush2.msra.mxu0 0.0
    %3168 = vmatprep.subr.mxu0 0.0
    %3169 = vmatpush2.msra.mxu0 0.0
    %3170 = vmatprep.subr.mxu0 0.0
    %3171 = vmatpush2.msra.mxu0 0.0
    %3172 = vmatprep.subr.mxu0 0.0
    %3173 = vmatpush2.msra.mxu0 0.0
    %3174 = vmatprep.subr.mxu0 0.0
    %3175 = vmatpush2.msra.mxu0 0.0
    %3176 = vmatprep.subr.mxu0 0.0
    %3177 = vmatpush2.msra.mxu0 0.0
    %3178 = vmatprep.subr.mxu0 0.0
    %3179 = vmatpush2.msra.mxu0 0.0
    %3180 = vmatprep.subr.mxu0 0.0
    %3181 = vmatpush2.msra.mxu0 0.0
    %3182 = vmatprep.subr.mxu0 0.0
    %3183 = vmatpush2.msra.mxu0 0.0
    %3184 = vmatprep.subr.mxu0 0.0
    %3185 = vmatpush2.msra.mxu0 0.0
    %3186 = vmatprep.subr.mxu0 0.0
    %3187 = vmatpush2.msra.mxu0 0.0
    %3188 = vmatprep.mubr.f32.mxu0 0.0
    %3189 = vmatmul.mubr.f32.gmra.mxu0 %v3122
    %v3190 = vpop.f32.mrf.mxu0
    %v3191 = vadd.f32 0.0, %v3190
    %v3192 = vpop.f32.mrf.mxu0
    %3193 = vdwg.mxu0
    %3194 = vrot.lane.b32.xlu0 %v2171, 48
    %v3195 = vpop.permute.xlu0 %3194
    %v3198 = vsel %vm287, %v3117, 0
    %3200 = vmatprep.subr.mxu0 0.0
    %3201 = vmatpush1.msra.mxu0 0.0
    %3202 = vmatprep.subr.mxu0 0.0
    %3203 = vmatpush1.msra.mxu0 0.0
    %3204 = vmatprep.subr.mxu0 0.0
    %3205 = vmatpush1.msra.mxu0 0.0
    %3206 = vmatprep.subr.mxu0 0.0
    %3207 = vmatpush1.msra.mxu0 0.0
    %3208 = vmatprep.subr.mxu0 0.0
    %3209 = vmatpush1.msra.mxu0 0.0
    %3210 = vmatprep.subr.mxu0 0.0
    %3211 = vmatpush1.msra.mxu0 0.0
    %3212 = vmatprep.subr.mxu0 0.0
    %3213 = vmatpush1.msra.mxu0 0.0
    %3214 = vmatprep.subr.mxu0 0.0
    %3215 = vmatpush1.msra.mxu0 0.0
    %3216 = vmatprep.subr.mxu0 0.0
    %3217 = vmatpush1.msra.mxu0 0.0
    %3218 = vmatprep.subr.mxu0 0.0
    %3219 = vmatpush1.msra.mxu0 0.0
    %3220 = vmatprep.subr.mxu0 0.0
    %3221 = vmatpush1.msra.mxu0 0.0
    %3222 = vmatprep.subr.mxu0 0.0
    %3223 = vmatpush1.msra.mxu0 0.0
    %3224 = vmatprep.subr.mxu0 0.0
    %3225 = vmatpush1.msra.mxu0 0.0
    %3226 = vmatprep.subr.mxu0 0.0
    %3227 = vmatpush1.msra.mxu0 0.0
    %3228 = vmatprep.subr.mxu0 0.0
    %3229 = vmatpush1.msra.mxu0 0.0
    %3230 = vmatprep.subr.mxu0 0.0
    %3231 = vmatpush1.msra.mxu0 %v3195
    %3232 = vmatprep.subr.mxu0 0.0
    %3233 = vmatpush2.msra.mxu0 0.0
    %3234 = vmatprep.subr.mxu0 0.0
    %3235 = vmatpush2.msra.mxu0 0.0
    %3236 = vmatprep.subr.mxu0 0.0
    %3237 = vmatpush2.msra.mxu0 0.0
    %3238 = vmatprep.subr.mxu0 0.0
    %3239 = vmatpush2.msra.mxu0 0.0
    %3240 = vmatprep.subr.mxu0 0.0
    %3241 = vmatpush2.msra.mxu0 0.0
    %3242 = vmatprep.subr.mxu0 0.0
    %3243 = vmatpush2.msra.mxu0 0.0
    %3244 = vmatprep.subr.mxu0 0.0
    %3245 = vmatpush2.msra.mxu0 0.0
    %3246 = vmatprep.subr.mxu0 0.0
    %3247 = vmatpush2.msra.mxu0 0.0
    %3248 = vmatprep.subr.mxu0 0.0
    %3249 = vmatpush2.msra.mxu0 0.0
    %3250 = vmatprep.subr.mxu0 0.0
    %3251 = vmatpush2.msra.mxu0 0.0
    %3252 = vmatprep.subr.mxu0 0.0
    %3253 = vmatpush2.msra.mxu0 0.0
    %3254 = vmatprep.subr.mxu0 0.0
    %3255 = vmatpush2.msra.mxu0 0.0
    %3256 = vmatprep.subr.mxu0 0.0
    %3257 = vmatpush2.msra.mxu0 0.0
    %3258 = vmatprep.subr.mxu0 0.0
    %3259 = vmatpush2.msra.mxu0 0.0
    %3260 = vmatprep.subr.mxu0 0.0
    %3261 = vmatpush2.msra.mxu0 0.0
    %3262 = vmatprep.subr.mxu0 0.0
    %3263 = vmatpush2.msra.mxu0 0.0
    %3264 = vmatprep.mubr.f32.mxu0 0.0
    %3265 = vmatmul.mubr.f32.gmra.mxu0 %v3198
    %v3266 = vpop.f32.mrf.mxu0
    %v3267 = vadd.f32 0.0, %v3266
    %v3268 = vpop.f32.mrf.mxu0
    %3269 = vdwg.mxu0
    %v3270 = vpack.c.bf16 %v3267, %v3191
    %v3271 = vpack.c.b16 %v2124, %v2124
    %3272 = vrot.lane.b32.xlu0 %v3271, 32
    %v3273 = vpop.permute.xlu0 %3272
    %v3275 = vsel %vm287, %v3270, 0
    %v3278 = vsel %vm955, %v3273, 0
    %3280 = vmatprep.subr.bf16.mxu0 0
    %3281 = vmatpush1.bf16.msra.mxu0 0
    %3282 = vmatprep.subr.bf16.mxu0 0
    %3283 = vmatpush1.bf16.msra.mxu0 0
    %3284 = vmatprep.subr.bf16.mxu0 0
    %3285 = vmatpush1.bf16.msra.mxu0 0
    %3286 = vmatprep.subr.bf16.mxu0 0
    %3287 = vmatpush1.bf16.msra.mxu0 0
    %3288 = vmatprep.subr.bf16.mxu0 0
    %3289 = vmatpush1.bf16.msra.mxu0 0
    %3290 = vmatprep.subr.bf16.mxu0 0
    %3291 = vmatpush1.bf16.msra.mxu0 0
    %3292 = vmatprep.subr.bf16.mxu0 0
    %3293 = vmatpush1.bf16.msra.mxu0 0
    %3294 = vmatprep.subr.bf16.mxu0 0
    %3295 = vmatpush1.bf16.msra.mxu0 %v3278
    %3296 = vmatprep.subr.bf16.mxu0 0
    %3297 = vmatpush2.bf16.msra.mxu0 0
    %3298 = vmatprep.subr.bf16.mxu0 0
    %3299 = vmatpush2.bf16.msra.mxu0 0
    %3300 = vmatprep.subr.bf16.mxu0 0
    %3301 = vmatpush2.bf16.msra.mxu0 0
    %3302 = vmatprep.subr.bf16.mxu0 0
    %3303 = vmatpush2.bf16.msra.mxu0 0
    %3304 = vmatprep.subr.bf16.mxu0 0
    %3305 = vmatpush2.bf16.msra.mxu0 0
    %3306 = vmatprep.subr.bf16.mxu0 0
    %3307 = vmatpush2.bf16.msra.mxu0 0
    %3308 = vmatprep.subr.bf16.mxu0 0
    %3309 = vmatpush2.bf16.msra.mxu0 0
    %3310 = vmatprep.subr.bf16.mxu0 0
    %3311 = vmatpush2.bf16.msra.mxu0 0
    %3312 = vmatprep.mubr.bf16.mxu0 0
    %3313 = vmatmul.mubr.bf16.gmra.mxu0 %v3275
    %v3314 = vpop.f32.mrf.mxu0
    %v3315 = vadd.f32 0.0, %v3314
    %v3316 = vpop.f32.mrf.mxu0
    %v3317 = vpop.f32.mrf.mxu0
    %v3318 = vadd.f32 0.0, %v3317
    %v3319 = vpop.f32.mrf.mxu0
    %3320 = vdwg.mxu0
    %v3321 = vadd.f32 %v2932, %v3315
    %v3322 = vadd.f32 %v2935, %v3318
    %3323 = vrot.lane.b32.xlu0 %v2168, 104
    %v3324 = vpop.permute.xlu0 %3323
    %3325 = vrot.lane.b32.xlu0 %v2168, 72
    %v3326 = vpop.permute.xlu0 %3325
    %v3327 = vsel %vm287, %v3324, 0
    %v3329 = vsel %vm287, %v3326, 0
    %3331 = vmatprep.subr.mxu0 0.0
    %3332 = vmatpush1.xpose.msra.mxu0 0.0
    %3333 = vmatprep.subr.mxu0 0.0
    %3334 = vmatpush1.xpose.msra.mxu0 0.0
    %3335 = vmatprep.subr.mxu0 0.0
    %3336 = vmatpush1.xpose.msra.mxu0 0.0
    %3337 = vmatprep.subr.mxu0 0.0
    %3338 = vmatpush1.xpose.msra.mxu0 0.0
    %3339 = vmatprep.subr.mxu0 0.0
    %3340 = vmatpush1.xpose.msra.mxu0 0.0
    %3341 = vmatprep.subr.mxu0 0.0
    %3342 = vmatpush1.xpose.msra.mxu0 0.0
    %3343 = vmatprep.subr.mxu0 0.0
    %3344 = vmatpush1.xpose.msra.mxu0 0.0
    %3345 = vmatprep.subr.mxu0 0.0
    %3346 = vmatpush1.xpose.msra.mxu0 0.0
    %3347 = vmatprep.subr.mxu0 0.0
    %3348 = vmatpush1.xpose.msra.mxu0 0.0
    %3349 = vmatprep.subr.mxu0 0.0
    %3350 = vmatpush1.xpose.msra.mxu0 0.0
    %3351 = vmatprep.subr.mxu0 0.0
    %3352 = vmatpush1.xpose.msra.mxu0 0.0
    %3353 = vmatprep.subr.mxu0 0.0
    %3354 = vmatpush1.xpose.msra.mxu0 0.0
    %3355 = vmatprep.subr.mxu0 0.0
    %3356 = vmatpush1.xpose.msra.mxu0 0.0
    %3357 = vmatprep.subr.mxu0 0.0
    %3358 = vmatpush1.xpose.msra.mxu0 0.0
    %3359 = vmatprep.subr.mxu0 0.0
    %3360 = vmatpush1.xpose.msra.mxu0 0.0
    %3361 = vmatprep.subr.mxu0 0.0
    %3362 = vmatpush1.xpose.msra.mxu0 %v3329
    %3363 = vmatprep.subr.mxu0 0.0
    %3364 = vmatpush2.xpose.msra.mxu0 0.0
    %3365 = vmatprep.subr.mxu0 0.0
    %3366 = vmatpush2.xpose.msra.mxu0 0.0
    %3367 = vmatprep.subr.mxu0 0.0
    %3368 = vmatpush2.xpose.msra.mxu0 0.0
    %3369 = vmatprep.subr.mxu0 0.0
    %3370 = vmatpush2.xpose.msra.mxu0 0.0
    %3371 = vmatprep.subr.mxu0 0.0
    %3372 = vmatpush2.xpose.msra.mxu0 0.0
    %3373 = vmatprep.subr.mxu0 0.0
    %3374 = vmatpush2.xpose.msra.mxu0 0.0
    %3375 = vmatprep.subr.mxu0 0.0
    %3376 = vmatpush2.xpose.msra.mxu0 0.0
    %3377 = vmatprep.subr.mxu0 0.0
    %3378 = vmatpush2.xpose.msra.mxu0 0.0
    %3379 = vmatprep.subr.mxu0 0.0
    %3380 = vmatpush2.xpose.msra.mxu0 0.0
    %3381 = vmatprep.subr.mxu0 0.0
    %3382 = vmatpush2.xpose.msra.mxu0 0.0
    %3383 = vmatprep.subr.mxu0 0.0
    %3384 = vmatpush2.xpose.msra.mxu0 0.0
    %3385 = vmatprep.subr.mxu0 0.0
    %3386 = vmatpush2.xpose.msra.mxu0 0.0
    %3387 = vmatprep.subr.mxu0 0.0
    %3388 = vmatpush2.xpose.msra.mxu0 0.0
    %3389 = vmatprep.subr.mxu0 0.0
    %3390 = vmatpush2.xpose.msra.mxu0 0.0
    %3391 = vmatprep.subr.mxu0 0.0
    %3392 = vmatpush2.xpose.msra.mxu0 0.0
    %3393 = vmatprep.subr.mxu0 0.0
    %3394 = vmatpush2.xpose.msra.mxu0 0.0
    %3395 = vmatprep.mubr.f32.mxu0 0.0
    %3396 = vmatmul.mubr.f32.gmra.mxu0 %v3327
    %v3397 = vpop.f32.mrf.mxu0
    %v3398 = vadd.f32 0.0, %v3397
    %v3399 = vpop.f32.mrf.mxu0
    %3400 = vdwg.mxu0
    %3401 = vrot.lane.b32.xlu0 %v2171, 104
    %v3402 = vpop.permute.xlu0 %3401
    %3403 = vrot.lane.b32.xlu0 %v2171, 72
    %v3404 = vpop.permute.xlu0 %3403
    %v3405 = vsel %vm287, %v3402, 0
    %v3407 = vsel %vm287, %v3404, 0
    %3409 = vmatprep.subr.mxu0 0.0
    %3410 = vmatpush1.xpose.msra.mxu0 0.0
    %3411 = vmatprep.subr.mxu0 0.0
    %3412 = vmatpush1.xpose.msra.mxu0 0.0
    %3413 = vmatprep.subr.mxu0 0.0
    %3414 = vmatpush1.xpose.msra.mxu0 0.0
    %3415 = vmatprep.subr.mxu0 0.0
    %3416 = vmatpush1.xpose.msra.mxu0 0.0
    %3417 = vmatprep.subr.mxu0 0.0
    %3418 = vmatpush1.xpose.msra.mxu0 0.0
    %3419 = vmatprep.subr.mxu0 0.0
    %3420 = vmatpush1.xpose.msra.mxu0 0.0
    %3421 = vmatprep.subr.mxu0 0.0
    %3422 = vmatpush1.xpose.msra.mxu0 0.0
    %3423 = vmatprep.subr.mxu0 0.0
    %3424 = vmatpush1.xpose.msra.mxu0 0.0
    %3425 = vmatprep.subr.mxu0 0.0
    %3426 = vmatpush1.xpose.msra.mxu0 0.0
    %3427 = vmatprep.subr.mxu0 0.0
    %3428 = vmatpush1.xpose.msra.mxu0 0.0
    %3429 = vmatprep.subr.mxu0 0.0
    %3430 = vmatpush1.xpose.msra.mxu0 0.0
    %3431 = vmatprep.subr.mxu0 0.0
    %3432 = vmatpush1.xpose.msra.mxu0 0.0
    %3433 = vmatprep.subr.mxu0 0.0
    %3434 = vmatpush1.xpose.msra.mxu0 0.0
    %3435 = vmatprep.subr.mxu0 0.0
    %3436 = vmatpush1.xpose.msra.mxu0 0.0
    %3437 = vmatprep.subr.mxu0 0.0
    %3438 = vmatpush1.xpose.msra.mxu0 0.0
    %3439 = vmatprep.subr.mxu0 0.0
    %3440 = vmatpush1.xpose.msra.mxu0 %v3407
    %3441 = vmatprep.subr.mxu0 0.0
    %3442 = vmatpush2.xpose.msra.mxu0 0.0
    %3443 = vmatprep.subr.mxu0 0.0
    %3444 = vmatpush2.xpose.msra.mxu0 0.0
    %3445 = vmatprep.subr.mxu0 0.0
    %3446 = vmatpush2.xpose.msra.mxu0 0.0
    %3447 = vmatprep.subr.mxu0 0.0
    %3448 = vmatpush2.xpose.msra.mxu0 0.0
    %3449 = vmatprep.subr.mxu0 0.0
    %3450 = vmatpush2.xpose.msra.mxu0 0.0
    %3451 = vmatprep.subr.mxu0 0.0
    %3452 = vmatpush2.xpose.msra.mxu0 0.0
    %3453 = vmatprep.subr.mxu0 0.0
    %3454 = vmatpush2.xpose.msra.mxu0 0.0
    %3455 = vmatprep.subr.mxu0 0.0
    %3456 = vmatpush2.xpose.msra.mxu0 0.0
    %3457 = vmatprep.subr.mxu0 0.0
    %3458 = vmatpush2.xpose.msra.mxu0 0.0
    %3459 = vmatprep.subr.mxu0 0.0
    %3460 = vmatpush2.xpose.msra.mxu0 0.0
    %3461 = vmatprep.subr.mxu0 0.0
    %3462 = vmatpush2.xpose.msra.mxu0 0.0
    %3463 = vmatprep.subr.mxu0 0.0
    %3464 = vmatpush2.xpose.msra.mxu0 0.0
    %3465 = vmatprep.subr.mxu0 0.0
    %3466 = vmatpush2.xpose.msra.mxu0 0.0
    %3467 = vmatprep.subr.mxu0 0.0
    %3468 = vmatpush2.xpose.msra.mxu0 0.0
    %3469 = vmatprep.subr.mxu0 0.0
    %3470 = vmatpush2.xpose.msra.mxu0 0.0
    %3471 = vmatprep.subr.mxu0 0.0
    %3472 = vmatpush2.xpose.msra.mxu0 0.0
    %3473 = vmatprep.mubr.f32.mxu0 0.0
    %3474 = vmatmul.mubr.f32.gmra.mxu0 %v3405
    %v3475 = vpop.f32.mrf.mxu0
    %v3476 = vadd.f32 0.0, %v3475
    %v3477 = vpop.f32.mrf.mxu0
    %3478 = vdwg.mxu0
    %v3479 = vmul.f32 %v3398, 0.35355338
    %v3480 = vmul.f32 %v3476, 0.35355338
    %v3481 = vsel %vm287, %v3479, -inf
    %3482 = vmax.xlane.f32.xlu0 %v3481
    %v3483 = vpop.xlane.xlu0 %3482
    %v3484 = vsel %vm287, %v3480, -inf
    %3485 = vmax.xlane.f32.xlu0 %v3484
    %v3486 = vpop.xlane.xlu0 %3485
    %v3487 = vsub.f32 %v3479, %v3483
    %v3488 = vsub.f32 %v3480, %v3486
    %v3489 = vmul.f32 %v3487, 1.442695
    %v3490 = vpow.pop %v3489
    %v3491 = vmul.f32 %v3488, 1.442695
    %v3492 = vpow.pop %v3491
    %v3493 = vsel %vm287, %v3490, 0.0
    %3494 = vadd.xlane.f32.xlu0 %v3493
    %v3495 = vpop.xlane.xlu0 %3494
    %v3496 = vsel %vm287, %v3492, 0.0
    %3497 = vadd.xlane.f32.xlu0 %v3496
    %v3498 = vpop.xlane.xlu0 %3497
    %v3499 = vrcp.pop %v3495
    %v3500 = vrcp.pop %v3498
    %v3501 = vmul.f32 %v3490, %v3499
    %v3502 = vmul.f32 %v3492, %v3500
    %3503 = vrot.lane.b32.xlu0 %v2168, 40
    %v3504 = vpop.permute.xlu0 %3503
    %v3507 = vsel %vm287, %v3501, 0
    %3509 = vmatprep.subr.mxu0 0.0
    %3510 = vmatpush1.msra.mxu0 0.0
    %3511 = vmatprep.subr.mxu0 0.0
    %3512 = vmatpush1.msra.mxu0 0.0
    %3513 = vmatprep.subr.mxu0 0.0
    %3514 = vmatpush1.msra.mxu0 0.0
    %3515 = vmatprep.subr.mxu0 0.0
    %3516 = vmatpush1.msra.mxu0 0.0
    %3517 = vmatprep.subr.mxu0 0.0
    %3518 = vmatpush1.msra.mxu0 0.0
    %3519 = vmatprep.subr.mxu0 0.0
    %3520 = vmatpush1.msra.mxu0 0.0
    %3521 = vmatprep.subr.mxu0 0.0
    %3522 = vmatpush1.msra.mxu0 0.0
    %3523 = vmatprep.subr.mxu0 0.0
    %3524 = vmatpush1.msra.mxu0 0.0
    %3525 = vmatprep.subr.mxu0 0.0
    %3526 = vmatpush1.msra.mxu0 0.0
    %3527 = vmatprep.subr.mxu0 0.0
    %3528 = vmatpush1.msra.mxu0 0.0
    %3529 = vmatprep.subr.mxu0 0.0
    %3530 = vmatpush1.msra.mxu0 0.0
    %3531 = vmatprep.subr.mxu0 0.0
    %3532 = vmatpush1.msra.mxu0 0.0
    %3533 = vmatprep.subr.mxu0 0.0
    %3534 = vmatpush1.msra.mxu0 0.0
    %3535 = vmatprep.subr.mxu0 0.0
    %3536 = vmatpush1.msra.mxu0 0.0
    %3537 = vmatprep.subr.mxu0 0.0
    %3538 = vmatpush1.msra.mxu0 0.0
    %3539 = vmatprep.subr.mxu0 0.0
    %3540 = vmatpush1.msra.mxu0 %v3504
    %3541 = vmatprep.subr.mxu0 0.0
    %3542 = vmatpush2.msra.mxu0 0.0
    %3543 = vmatprep.subr.mxu0 0.0
    %3544 = vmatpush2.msra.mxu0 0.0
    %3545 = vmatprep.subr.mxu0 0.0
    %3546 = vmatpush2.msra.mxu0 0.0
    %3547 = vmatprep.subr.mxu0 0.0
    %3548 = vmatpush2.msra.mxu0 0.0
    %3549 = vmatprep.subr.mxu0 0.0
    %3550 = vmatpush2.msra.mxu0 0.0
    %3551 = vmatprep.subr.mxu0 0.0
    %3552 = vmatpush2.msra.mxu0 0.0
    %3553 = vmatprep.subr.mxu0 0.0
    %3554 = vmatpush2.msra.mxu0 0.0
    %3555 = vmatprep.subr.mxu0 0.0
    %3556 = vmatpush2.msra.mxu0 0.0
    %3557 = vmatprep.subr.mxu0 0.0
    %3558 = vmatpush2.msra.mxu0 0.0
    %3559 = vmatprep.subr.mxu0 0.0
    %3560 = vmatpush2.msra.mxu0 0.0
    %3561 = vmatprep.subr.mxu0 0.0
    %3562 = vmatpush2.msra.mxu0 0.0
    %3563 = vmatprep.subr.mxu0 0.0
    %3564 = vmatpush2.msra.mxu0 0.0
    %3565 = vmatprep.subr.mxu0 0.0
    %3566 = vmatpush2.msra.mxu0 0.0
    %3567 = vmatprep.subr.mxu0 0.0
    %3568 = vmatpush2.msra.mxu0 0.0
    %3569 = vmatprep.subr.mxu0 0.0
    %3570 = vmatpush2.msra.mxu0 0.0
    %3571 = vmatprep.subr.mxu0 0.0
    %3572 = vmatpush2.msra.mxu0 0.0
    %3573 = vmatprep.mubr.f32.mxu0 0.0
    %3574 = vmatmul.mubr.f32.gmra.mxu0 %v3507
    %v3575 = vpop.f32.mrf.mxu0
    %v3576 = vadd.f32 0.0, %v3575
    %v3577 = vpop.f32.mrf.mxu0
    %3578 = vdwg.mxu0
    %3579 = vrot.lane.b32.xlu0 %v2171, 40
    %v3580 = vpop.permute.xlu0 %3579
    %v3583 = vsel %vm287, %v3502, 0
    %3585 = vmatprep.subr.mxu0 0.0
    %3586 = vmatpush1.msra.mxu0 0.0
    %3587 = vmatprep.subr.mxu0 0.0
    %3588 = vmatpush1.msra.mxu0 0.0
    %3589 = vmatprep.subr.mxu0 0.0
    %3590 = vmatpush1.msra.mxu0 0.0
    %3591 = vmatprep.subr.mxu0 0.0
    %3592 = vmatpush1.msra.mxu0 0.0
    %3593 = vmatprep.subr.mxu0 0.0
    %3594 = vmatpush1.msra.mxu0 0.0
    %3595 = vmatprep.subr.mxu0 0.0
    %3596 = vmatpush1.msra.mxu0 0.0
    %3597 = vmatprep.subr.mxu0 0.0
    %3598 = vmatpush1.msra.mxu0 0.0
    %3599 = vmatprep.subr.mxu0 0.0
    %3600 = vmatpush1.msra.mxu0 0.0
    %3601 = vmatprep.subr.mxu0 0.0
    %3602 = vmatpush1.msra.mxu0 0.0
    %3603 = vmatprep.subr.mxu0 0.0
    %3604 = vmatpush1.msra.mxu0 0.0
    %3605 = vmatprep.subr.mxu0 0.0
    %3606 = vmatpush1.msra.mxu0 0.0
    %3607 = vmatprep.subr.mxu0 0.0
    %3608 = vmatpush1.msra.mxu0 0.0
    %3609 = vmatprep.subr.mxu0 0.0
    %3610 = vmatpush1.msra.mxu0 0.0
    %3611 = vmatprep.subr.mxu0 0.0
    %3612 = vmatpush1.msra.mxu0 0.0
    %3613 = vmatprep.subr.mxu0 0.0
    %3614 = vmatpush1.msra.mxu0 0.0
    %3615 = vmatprep.subr.mxu0 0.0
    %3616 = vmatpush1.msra.mxu0 %v3580
    %3617 = vmatprep.subr.mxu0 0.0
    %3618 = vmatpush2.msra.mxu0 0.0
    %3619 = vmatprep.subr.mxu0 0.0
    %3620 = vmatpush2.msra.mxu0 0.0
    %3621 = vmatprep.subr.mxu0 0.0
    %3622 = vmatpush2.msra.mxu0 0.0
    %3623 = vmatprep.subr.mxu0 0.0
    %3624 = vmatpush2.msra.mxu0 0.0
    %3625 = vmatprep.subr.mxu0 0.0
    %3626 = vmatpush2.msra.mxu0 0.0
    %3627 = vmatprep.subr.mxu0 0.0
    %3628 = vmatpush2.msra.mxu0 0.0
    %3629 = vmatprep.subr.mxu0 0.0
    %3630 = vmatpush2.msra.mxu0 0.0
    %3631 = vmatprep.subr.mxu0 0.0
    %3632 = vmatpush2.msra.mxu0 0.0
    %3633 = vmatprep.subr.mxu0 0.0
    %3634 = vmatpush2.msra.mxu0 0.0
    %3635 = vmatprep.subr.mxu0 0.0
    %3636 = vmatpush2.msra.mxu0 0.0
    %3637 = vmatprep.subr.mxu0 0.0
    %3638 = vmatpush2.msra.mxu0 0.0
    %3639 = vmatprep.subr.mxu0 0.0
    %3640 = vmatpush2.msra.mxu0 0.0
    %3641 = vmatprep.subr.mxu0 0.0
    %3642 = vmatpush2.msra.mxu0 0.0
    %3643 = vmatprep.subr.mxu0 0.0
    %3644 = vmatpush2.msra.mxu0 0.0
    %3645 = vmatprep.subr.mxu0 0.0
    %3646 = vmatpush2.msra.mxu0 0.0
    %3647 = vmatprep.subr.mxu0 0.0
    %3648 = vmatpush2.msra.mxu0 0.0
    %3649 = vmatprep.mubr.f32.mxu0 0.0
    %3650 = vmatmul.mubr.f32.gmra.mxu0 %v3583
    %v3651 = vpop.f32.mrf.mxu0
    %v3652 = vadd.f32 0.0, %v3651
    %v3653 = vpop.f32.mrf.mxu0
    %3654 = vdwg.mxu0
    %v3655 = vpack.c.bf16 %v3652, %v3576
    %v3656 = vpack.c.b16 %v2125, %v2125
    %3657 = vrot.lane.b32.xlu0 %v3656, 32
    %v3658 = vpop.permute.xlu0 %3657
    %v3660 = vsel %vm287, %v3655, 0
    %v3663 = vsel %vm955, %v3658, 0
    %3665 = vmatprep.subr.bf16.mxu0 0
    %3666 = vmatpush1.bf16.msra.mxu0 0
    %3667 = vmatprep.subr.bf16.mxu0 0
    %3668 = vmatpush1.bf16.msra.mxu0 0
    %3669 = vmatprep.subr.bf16.mxu0 0
    %3670 = vmatpush1.bf16.msra.mxu0 0
    %3671 = vmatprep.subr.bf16.mxu0 0
    %3672 = vmatpush1.bf16.msra.mxu0 0
    %3673 = vmatprep.subr.bf16.mxu0 0
    %3674 = vmatpush1.bf16.msra.mxu0 0
    %3675 = vmatprep.subr.bf16.mxu0 0
    %3676 = vmatpush1.bf16.msra.mxu0 0
    %3677 = vmatprep.subr.bf16.mxu0 0
    %3678 = vmatpush1.bf16.msra.mxu0 0
    %3679 = vmatprep.subr.bf16.mxu0 0
    %3680 = vmatpush1.bf16.msra.mxu0 %v3663
    %3681 = vmatprep.subr.bf16.mxu0 0
    %3682 = vmatpush2.bf16.msra.mxu0 0
    %3683 = vmatprep.subr.bf16.mxu0 0
    %3684 = vmatpush2.bf16.msra.mxu0 0
    %3685 = vmatprep.subr.bf16.mxu0 0
    %3686 = vmatpush2.bf16.msra.mxu0 0
    %3687 = vmatprep.subr.bf16.mxu0 0
    %3688 = vmatpush2.bf16.msra.mxu0 0
    %3689 = vmatprep.subr.bf16.mxu0 0
    %3690 = vmatpush2.bf16.msra.mxu0 0
    %3691 = vmatprep.subr.bf16.mxu0 0
    %3692 = vmatpush2.bf16.msra.mxu0 0
    %3693 = vmatprep.subr.bf16.mxu0 0
    %3694 = vmatpush2.bf16.msra.mxu0 0
    %3695 = vmatprep.subr.bf16.mxu0 0
    %3696 = vmatpush2.bf16.msra.mxu0 0
    %3697 = vmatprep.mubr.bf16.mxu0 0
    %3698 = vmatmul.mubr.bf16.gmra.mxu0 %v3660
    %v3699 = vpop.f32.mrf.mxu0
    %v3700 = vadd.f32 0.0, %v3699
    %v3701 = vpop.f32.mrf.mxu0
    %v3702 = vpop.f32.mrf.mxu0
    %v3703 = vadd.f32 0.0, %v3702
    %v3704 = vpop.f32.mrf.mxu0
    %3705 = vdwg.mxu0
    %v3706 = vadd.f32 %v3321, %v3700
    %v3707 = vadd.f32 %v3322, %v3703
    %v3708 = vlaneseq
    %v3709 = vshrl.u32 %v3708, 7
    %v3710 = vsub.s32 5, %v3709
    %v3711 = vrot.slane %v2058, %v3710
    %v3712 = vadd.f32 %v3706, %v3711
    %v3713 = vadd.f32 %v3707, %v3711
    %v3714 = vadd.f32 %v3712, %v2056
    %v3715 = vadd.f32 %v3713, %v2057
    %v3716 = vsel %vm183, %v3714, 0.0
    %3717 = vadd.xlane.f32.xlu0 %v3716
    %v3718 = vpop.xlane.xlu0 %3717
    %v3719 = vsel %vm183, %v3715, 0.0
    %3720 = vadd.xlane.f32.xlu0 %v3719
    %v3721 = vpop.xlane.xlu0 %3720
    %v3722 = vmul.f32 %v3718, %v190
    %v3723 = vmul.f32 %v3721, %v190
    %v3724 = vsub.f32 %v3714, %v3722
    %v3725 = vsub.f32 %v3715, %v3723
    %v3726 = vmul.f32 %v3724, %v3724
    %v3727 = vmul.f32 %v3725, %v3725
    %v3728 = vsel %vm183, %v3726, 0.0
    %3729 = vadd.xlane.f32.xlu0 %v3728
    %v3730 = vpop.xlane.xlu0 %3729
    %v3731 = vsel %vm183, %v3727, 0.0
    %3732 = vadd.xlane.f32.xlu0 %v3731
    %v3733 = vpop.xlane.xlu0 %3732
    %v3734 = vmul.f32 %v3730, %v190
    %v3735 = vmul.f32 %v3733, %v190
    %v3736 = vadd.f32 %v3734, 1e-12
    %v3737 = vadd.f32 %v3735, 1e-12
    %v3738 = vrsqrt.pop %v3736
    %v3739 = vrsqrt.pop %v3737
    %v3740 = vmul.f32 %v3724, %v3738
    %v3741 = vmul.f32 %v3725, %v3739
    %v3742 = vlaneseq
    %v3743 = vshrl.u32 %v3742, 7
    %v3744 = vsub.s32 2, %v3743
    %v3745 = vrot.slane %v2058, %v3744
    %v3746 = vmul.f32 %v3740, %v3745
    %v3747 = vmul.f32 %v3741, %v3745
    %v3748 = vlaneseq
    %v3749 = vshrl.u32 %v3748, 7
    %v3750 = vsub.s32 3, %v3749
    %v3751 = vrot.slane %v2058, %v3750
    %v3752 = vadd.f32 %v3746, %v3751
    %v3753 = vadd.f32 %v3747, %v3751
    %v3754 = vpack.c.bf16 %v3753, %v3752
    %v3755 = vlaneseq
    %v3756 = vshrl.u32 %v3755, 7
    %v3757 = vsub.s32 6, %v3756
    %v3758 = vrot.slane %v2058, %v3757
    %v3763 = vunpack.c.l.b16 %v2063
    %v3764 = vunpack.c.l.b16 %v2064
    %v3765 = vunpack.c.l.b16 %v2065
    %v3766 = vunpack.c.l.b16 %v2066
    %v3767 = vpack.c.b16 %v3764, %v3763
    %v3768 = vpack.c.b16 %v3766, %v3765
    %v3772 = vsel %vm183, %v3754, 0
    %3774 = vmatprep.subr.bf16.mxu0 0
    %3775 = vmatpush1.bf16.msra.mxu0 0
    %3776 = vmatprep.subr.bf16.mxu0 0
    %3777 = vmatpush1.bf16.msra.mxu0 0
    %3778 = vmatprep.subr.bf16.mxu0 0
    %3779 = vmatpush1.bf16.msra.mxu0 0
    %3780 = vmatprep.subr.bf16.mxu0 0
    %3781 = vmatpush1.bf16.msra.mxu0 0
    %3782 = vmatprep.subr.bf16.mxu0 0
    %3783 = vmatpush1.bf16.msra.mxu0 0
    %3784 = vmatprep.subr.bf16.mxu0 0
    %3785 = vmatpush1.bf16.msra.mxu0 0
    %3786 = vmatprep.subr.bf16.mxu0 0
    %3787 = vmatpush1.bf16.msra.mxu0 %v3768
    %3788 = vmatprep.subr.bf16.mxu0 0
    %3789 = vmatpush1.bf16.msra.mxu0 %v3767
    %3790 = vmatprep.subr.bf16.mxu0 0
    %3791 = vmatpush2.bf16.msra.mxu0 0
    %3792 = vmatprep.subr.bf16.mxu0 0
    %3793 = vmatpush2.bf16.msra.mxu0 0
    %3794 = vmatprep.subr.bf16.mxu0 0
    %3795 = vmatpush2.bf16.msra.mxu0 0
    %3796 = vmatprep.subr.bf16.mxu0 0
    %3797 = vmatpush2.bf16.msra.mxu0 0
    %3798 = vmatprep.subr.bf16.mxu0 0
    %3799 = vmatpush2.bf16.msra.mxu0 0
    %3800 = vmatprep.subr.bf16.mxu0 0
    %3801 = vmatpush2.bf16.msra.mxu0 0
    %3802 = vmatprep.subr.bf16.mxu0 0
    %3803 = vmatpush2.bf16.msra.mxu0 0
    %3804 = vmatprep.subr.bf16.mxu0 0
    %3805 = vmatpush2.bf16.msra.mxu0 0
    %3806 = vmatprep.mubr.bf16.mxu0 0
    %3807 = vmatmul.mubr.bf16.gmra.mxu0 %v3772
    %v3808 = vpop.f32.mrf.mxu0
    %v3809 = vadd.f32 %v3758, %v3808
    %v3810 = vpop.f32.mrf.mxu0
    %v3811 = vpop.f32.mrf.mxu0
    %v3812 = vadd.f32 %v3758, %v3811
    %v3813 = vpop.f32.mrf.mxu0
    %3814 = vdwg.mxu0
    %v3815 = vmul.f32 %v3809, 0.5
    %v3816 = vmul.f32 %v3812, 0.5
    %v3817 = vmul.f32 %v3809, 0.70710677
    %v3818 = vmul.f32 %v3812, 0.70710677
    %vm3819 = vcmp.ge.f32.partialorder %v3817, 0.0
    %vm3820 = vcmp.ge.f32.partialorder %v3818, 0.0
    %v3821 = vsub.f32 0.0, %v3817
    %v3822 = vsub.f32 0.0, %v3818
    %v3823 = vsel %vm3819, %v3817, %v3821
    %v3824 = vsel %vm3820, %v3818, %v3822
    %v3825 = vmul.f32 %v3823, 0.3275911
    %v3826 = vmul.f32 %v3824, 0.3275911
    %v3827 = vadd.f32 %v3825, 1.0
    %v3828 = vadd.f32 %v3826, 1.0
    %v3829 = vrcp.pop %v3827
    %v3830 = vmul.f32 1.0, %v3829
    %v3831 = vrcp.pop %v3828
    %v3832 = vmul.f32 1.0, %v3831
    %v3833 = vmul.f32 %v3830, 1.0614054
    %v3834 = vmul.f32 %v3832, 1.0614054
    %v3835 = vadd.f32 %v3833, -1.4531521
    %v3836 = vadd.f32 %v3834, -1.4531521
    %v3837 = vmul.f32 %v3835, %v3830
    %v3838 = vmul.f32 %v3836, %v3832
    %v3839 = vadd.f32 %v3837, 1.4214138
    %v3840 = vadd.f32 %v3838, 1.4214138
    %v3841 = vmul.f32 %v3839, %v3830
    %v3842 = vmul.f32 %v3840, %v3832
    %v3843 = vadd.f32 %v3841, -0.28449672
    %v3844 = vadd.f32 %v3842, -0.28449672
    %v3845 = vmul.f32 %v3843, %v3830
    %v3846 = vmul.f32 %v3844, %v3832
    %v3847 = vadd.f32 %v3845, 0.2548296
    %v3848 = vadd.f32 %v3846, 0.2548296
    %v3849 = vmul.f32 %v3847, %v3830
    %v3850 = vmul.f32 %v3848, %v3832
    %v3851 = vsub.f32 0.0, %v3823
    %v3852 = vsub.f32 0.0, %v3824
    %v3853 = vmul.f32 %v3851, %v3823
    %v3854 = vmul.f32 %v3852, %v3824
    %v3855 = vmul.f32 %v3853, 1.442695
    %v3856 = vpow.pop %v3855
    %v3857 = vmul.f32 %v3854, 1.442695
    %v3858 = vpow.pop %v3857
    %v3859 = vmul.f32 %v3849, %v3856
    %v3860 = vmul.f32 %v3850, %v3858
    %v3861 = vsub.f32 1.0, %v3859
    %v3862 = vsub.f32 1.0, %v3860
    %v3863 = vsub.f32 0.0, %v3861
    %v3864 = vsub.f32 0.0, %v3862
    %v3865 = vsel %vm3819, %v3861, %v3863
    %v3866 = vsel %vm3820, %v3862, %v3864
    %v3867 = vadd.f32 %v3865, 1.0
    %v3868 = vadd.f32 %v3866, 1.0
    %v3869 = vmul.f32 %v3815, %v3867
    %v3870 = vmul.f32 %v3816, %v3868
    %v3871 = vpack.c.bf16 %v3870, %v3869
    %v3872 = vlaneseq
    %v3873 = vshrl.u32 %v3872, 7
    %v3874 = vsub.s32 7, %v3873
    %v3875 = vrot.slane %v2058, %v3874
    %v3884 = vunpack.c.l.b16 %v2067
    %v3885 = vunpack.c.l.b16 %v2068
    %v3886 = vunpack.c.l.b16 %v2069
    %v3887 = vunpack.c.l.b16 %v2070
    %v3888 = vunpack.c.l.b16 %v2071
    %v3889 = vunpack.c.l.b16 %v2072
    %v3890 = vunpack.c.l.b16 %v2073
    %v3891 = vunpack.c.l.b16 %v2074
    %v3892 = vpack.c.b16 %v3885, %v3884
    %v3893 = vpack.c.b16 %v3887, %v3886
    %v3894 = vpack.c.b16 %v3889, %v3888
    %v3895 = vpack.c.b16 %v3891, %v3890
    %v3901 = vsel %vm71, %v3871, 0
    %3903 = vmatprep.subr.bf16.mxu0 0
    %3904 = vmatpush1.bf16.msra.mxu0 0
    %3905 = vmatprep.subr.bf16.mxu0 0
    %3906 = vmatpush1.bf16.msra.mxu0 0
    %3907 = vmatprep.subr.bf16.mxu0 0
    %3908 = vmatpush1.bf16.msra.mxu0 0
    %3909 = vmatprep.subr.bf16.mxu0 0
    %3910 = vmatpush1.bf16.msra.mxu0 0
    %3911 = vmatprep.subr.bf16.mxu0 0
    %3912 = vmatpush1.bf16.msra.mxu0 %v3895
    %3913 = vmatprep.subr.bf16.mxu0 0
    %3914 = vmatpush1.bf16.msra.mxu0 %v3894
    %3915 = vmatprep.subr.bf16.mxu0 0
    %3916 = vmatpush1.bf16.msra.mxu0 %v3893
    %3917 = vmatprep.subr.bf16.mxu0 0
    %3918 = vmatpush1.bf16.msra.mxu0 %v3892
    %3919 = vmatprep.subr.bf16.mxu0 0
    %3920 = vmatpush2.bf16.msra.mxu0 0
    %3921 = vmatprep.subr.bf16.mxu0 0
    %3922 = vmatpush2.bf16.msra.mxu0 0
    %3923 = vmatprep.subr.bf16.mxu0 0
    %3924 = vmatpush2.bf16.msra.mxu0 0
    %3925 = vmatprep.subr.bf16.mxu0 0
    %3926 = vmatpush2.bf16.msra.mxu0 0
    %3927 = vmatprep.subr.bf16.mxu0 0
    %3928 = vmatpush2.bf16.msra.mxu0 0
    %3929 = vmatprep.subr.bf16.mxu0 0
    %3930 = vmatpush2.bf16.msra.mxu0 0
    %3931 = vmatprep.subr.bf16.mxu0 0
    %3932 = vmatpush2.bf16.msra.mxu0 0
    %3933 = vmatprep.subr.bf16.mxu0 0
    %3934 = vmatpush2.bf16.msra.mxu0 0
    %3935 = vmatprep.mubr.bf16.mxu0 0
    %3936 = vmatmul.mubr.bf16.gmra.mxu0 %v3901
    %v3937 = vpop.f32.mrf.mxu0
    %v3938 = vadd.f32 %v3875, %v3937
    %v3939 = vpop.f32.mrf.mxu0
    %v3940 = vpop.f32.mrf.mxu0
    %v3941 = vadd.f32 %v3875, %v3940
    %v3942 = vpop.f32.mrf.mxu0
    %3943 = vdwg.mxu0
    %v3944 = vadd.f32 %v3938, %v3714
    %v3945 = vadd.f32 %v3941, %v3715
    %v3946 = vld [vmem:[#allocation5 + $0x80] sm:$0xf]
    %v3947 = vld [vmem:[#allocation5 + $0x84] sm:$0xf]
    %v3948 = vld [vmem:[#allocation5 + $0x88] sm:$0xf]
    %v3949 = vld [vmem:[#allocation5 + $0x8c] sm:$0xf]
    %v3950 = vld [vmem:[#allocation2 + $0x50] sm:$0x1]
    %v3951 = vpack.c.bf16 %v3945, %v3944
    %v3952 = vlaneseq
    %v3953 = vshrl.u32 %v3952, 7
    %v3954 = vsub.s32 0, %v3953
    %v3955 = vrot.slane %v3950, %v3954
    %v3960 = vunpack.c.l.b16 %v3946
    %v3961 = vunpack.c.l.b16 %v3947
    %v3962 = vunpack.c.l.b16 %v3948
    %v3963 = vunpack.c.l.b16 %v3949
    %v3964 = vpack.c.b16 %v3961, %v3960
    %v3965 = vpack.c.b16 %v3963, %v3962
    %v3969 = vsel %vm183, %v3951, 0
    %3971 = vmatprep.subr.bf16.mxu0 0
    %3972 = vmatpush1.bf16.msra.mxu0 0
    %3973 = vmatprep.subr.bf16.mxu0 0
    %3974 = vmatpush1.bf16.msra.mxu0 0
    %3975 = vmatprep.subr.bf16.mxu0 0
    %3976 = vmatpush1.bf16.msra.mxu0 0
    %3977 = vmatprep.subr.bf16.mxu0 0
    %3978 = vmatpush1.bf16.msra.mxu0 0
    %3979 = vmatprep.subr.bf16.mxu0 0
    %3980 = vmatpush1.bf16.msra.mxu0 0
    %3981 = vmatprep.subr.bf16.mxu0 0
    %3982 = vmatpush1.bf16.msra.mxu0 0
    %3983 = vmatprep.subr.bf16.mxu0 0
    %3984 = vmatpush1.bf16.msra.mxu0 %v3965
    %3985 = vmatprep.subr.bf16.mxu0 0
    %3986 = vmatpush1.bf16.msra.mxu0 %v3964
    %3987 = vmatprep.subr.bf16.mxu0 0
    %3988 = vmatpush2.bf16.msra.mxu0 0
    %3989 = vmatprep.subr.bf16.mxu0 0
    %3990 = vmatpush2.bf16.msra.mxu0 0
    %3991 = vmatprep.subr.bf16.mxu0 0
    %3992 = vmatpush2.bf16.msra.mxu0 0
    %3993 = vmatprep.subr.bf16.mxu0 0
    %3994 = vmatpush2.bf16.msra.mxu0 0
    %3995 = vmatprep.subr.bf16.mxu0 0
    %3996 = vmatpush2.bf16.msra.mxu0 0
    %3997 = vmatprep.subr.bf16.mxu0 0
    %3998 = vmatpush2.bf16.msra.mxu0 0
    %3999 = vmatprep.subr.bf16.mxu0 0
    %4000 = vmatpush2.bf16.msra.mxu0 0
    %4001 = vmatprep.subr.bf16.mxu0 0
    %4002 = vmatpush2.bf16.msra.mxu0 0
    %4003 = vmatprep.mubr.bf16.mxu0 0
    %4004 = vmatmul.mubr.bf16.gmra.mxu0 %v3969
    %v4005 = vpop.f32.mrf.mxu0
    %v4006 = vadd.f32 %v3955, %v4005
    %v4007 = vpop.f32.mrf.mxu0
    %v4008 = vpop.f32.mrf.mxu0
    %v4009 = vadd.f32 %v3955, %v4008
    %v4010 = vpop.f32.mrf.mxu0
    %4011 = vdwg.mxu0
    %vm4012 = vcmask 130048
    %v4013 = vsel %vm4012, %v4006, -inf
    %4014 = vmax.xlane.f32.xlu0 %v4013
    %v4015 = vpop.xlane.xlu0 %4014
    %v4016 = vsel %vm4012, %v4009, -inf
    %4017 = vmax.xlane.f32.xlu0 %v4016
    %v4018 = vpop.xlane.xlu0 %4017
    %v4019 = vsub.f32 %v4006, %v4015
    %v4020 = vsub.f32 %v4009, %v4018
    %v4021 = vmul.f32 %v4019, 1.442695
    %v4022 = vpow.pop %v4021
    %v4023 = vmul.f32 %v4020, 1.442695
    %v4024 = vpow.pop %v4023
    %v4025 = vsel %vm4012, %v4022, 0.0
    %4026 = vadd.xlane.f32.xlu0 %v4025
    %v4027 = vpop.xlane.xlu0 %4026
    %v4028 = vsel %vm4012, %v4024, 0.0
    %4029 = vadd.xlane.f32.xlu0 %v4028
    %v4030 = vpop.xlane.xlu0 %4029
    %v4031 = vrcp.pop %v4027
    %v4032 = vmul.f32 %v4022, %v4031
    %v4033 = vrcp.pop %v4030
    %v4034 = vmul.f32 %v4024, %v4033
    %4035 = vst.msk [vmem:[#allocation7] sm:$0xff] %vm4012, %v4032
    %4036 = vst.msk [vmem:[#allocation7 + $0x8] sm:$0xff] %vm4012, %v4034
    // Predicated region
    $region26: #{tpu_custom_call.1} parent=1 // pred_check
      _
    $region27: #{tpu_custom_call.1} parent=1 // pred_check_branch
      %4038 = sbr.rel (0) target = $region29
    $region28: #{tpu_custom_call.1} parent=1 // pred_region
      %s4040 = ssub.s32 256, 256
      %4041 = vsyncadd [#allocation4], %s4040
      %s4042 = sshll.u32 [#allocation7], 4
      %s4043 = int_to_ptr.vmem [resolvable:$true] %s4042
      %4048 = dma.vmem_to_hbm [thread:$0]  %s4043, 256, %s4, [#allocation4], 128, 128, 8
    $region29: #{tpu_custom_call.1} parent=1 // pred_fallthru
      _
    // Predicated region
    $region30: #{tpu_custom_call.1} parent=1 // pred_check
      _
    $region31: #{tpu_custom_call.1} parent=1 // pred_check_branch
      %4050 = sbr.rel (0) target = $region33
    $region32: #{tpu_custom_call.1} parent=1 // pred_region
      %4051 = dma.done [#allocation4], 256
    $region33: #{tpu_custom_call.1} parent=1 // pred_fallthru
      _
    %4052 = vsyncpa [#allocation3], 1
    %4053 = vsyncpa [#allocation6], 1
    %4054 = vsyncpa [#allocation4], 1

</llo_original>
